<compile_context>
chip_gen: v6e
topology: v6e:2x2x1
jax: 0.10.0
libtpu: 0.0.40
codegen_flags: <defaults>
</compile_context>

<pallas_src>
import random

import jax
import jax.numpy as jnp
from jax import lax
from jax.experimental import pallas as pl
from jax.experimental.pallas import tpu as pltpu


# ----------------------------------------------------------------------------
# Encoder: single-layer LSTM recurrence.  The input-side matmul (x@Wih + b) is
# precomputed outside (parallel); the kernel only does the serial h@Whh part.
# enc_out is written directly in decoder layout (B, S, H).
# ----------------------------------------------------------------------------
def encoder_lstm_kernel(xw_ref, whh_ref, eo_ref, h_out_ref, h_scr, c_scr):
    tb = pl.program_id(0)

    @pl.when(tb == 0)
    def _():
        h_scr[...] = jnp.zeros_like(h_scr)
        c_scr[...] = jnp.zeros_like(c_scr)

    TB = xw_ref.shape[0]
    H = whh_ref.shape[0]              # whh_t is (H, 4H)
    h = h_scr[...]                    # (B, H)
    c = c_scr[...]                    # (B, H)
    whh = whh_ref[...]

    for tt in range(TB):              # static unroll (TB <= 8)
        gates = xw_ref[tt] + jnp.dot(h, whh,
                                     preferred_element_type=jnp.float32)  # (B, 4H)
        i_g = jax.nn.sigmoid(gates[:, 0:H])
        f_g = jax.nn.sigmoid(gates[:, H:2 * H])
        g_g = jnp.tanh(gates[:, 2 * H:3 * H])
        o_g = jax.nn.sigmoid(gates[:, 3 * H:4 * H])
        c = f_g * c + i_g * g_g
        h = o_g * jnp.tanh(c)
        eo_ref[:, pl.ds(tt, 1), :] = h[:, None, :]   # enc_out[:, t, :]  (B,S,H layout)

    h_scr[...] = h
    c_scr[...] = c
    h_out_ref[...] = h                # final hidden (last writeback wins)


def run_encoder(xw, whh_t):
    """xw: (S,B,4H) = x@Wih + b (precomputed); returns enc_out (B,S,H), h (B,H)."""
    S, B, G = xw.shape
    H = whh_t.shape[0]
    # time-block must satisfy the (8,128) tiling on the (B, TB, H) output block
    TB = S if S % 8 else min(S, 8)

    grid_spec = pltpu.PrefetchScalarGridSpec(
        num_scalar_prefetch=0,
        grid=(S // TB,),
        in_specs=[
            pl.BlockSpec((TB, B, G), lambda t: (t, 0, 0)),
            pl.BlockSpec((H, G), lambda t: (0, 0)),
        ],
        out_specs=[
            pl.BlockSpec((B, TB, H), lambda t: (0, t, 0)),
            pl.BlockSpec((B, H), lambda t: (0, 0)),
        ],
        scratch_shapes=[pltpu.VMEM((B, H), jnp.float32),
                        pltpu.VMEM((B, H), jnp.float32)],
    )
    enc_bsh, h = pl.pallas_call(
        encoder_lstm_kernel,
        out_shape=(jax.ShapeDtypeStruct((B, S, H), jnp.float32),
                   jax.ShapeDtypeStruct((B, H), jnp.float32)),
        grid_spec=grid_spec,
        compiler_params=pltpu.CompilerParams(
            dimension_semantics=("arbitrary",),
            vmem_limit_bytes=64 * 1024 * 1024),
    )(xw, whh_t)
    return enc_bsh, h


# ----------------------------------------------------------------------------
# Fused decoder: the entire decode loop in one pallas_call, grid=(T-1,).
# hidden (B,H) and the greedy-token index (B,1) int32 are carried in VMEM
# scratch; trg (T,B) int32 and the teacher-forcing mask (T,) int32 are
# scalar-prefetched into SMEM; all weights / enc / encW stay VMEM-resident.
# The kernel emits RAW logits; log-softmax is a parallel post-pass.
# ----------------------------------------------------------------------------
def fused_decoder_kernel(tf_ref, trg_ref,                           # SMEM
                         h0_ref, enc_ref, encw_ref, embed_ref,
                         wa_h_ref, v_ref,
                         wgx_ref, wgc_ref, wgh_ref, bgi_ref, bgh_ref,
                         wo_h_ref, wo_c_ref, bo_ref,
                         out_ref,
                         h_scr, x_scr, tok_vmem):
    i = pl.program_id(0)              # grid step i produces outputs[i+1]
    B, S, H = enc_ref.shape
    V = bo_ref.shape[1]

    @pl.when(i == 0)
    def _():
        h_scr[...] = h0_ref[...]      # decoder hidden init = encoder final hidden

    # --- input-token selection (int32 index, scalar path) -------------------
    #   i == 0          -> trg[0]
    #   tf_mask[i] == 1 -> trg[i]                 (teacher forcing)
    #   otherwise       -> argmax of previous step's logits (tok_vmem carry)
    use_trg = jnp.logical_or(i == 0, tf_ref[i] > 0)

    # --- embedding lookup: per-row dynamic-slice gather (no one-hot matmul) --
    for b in range(B):
        tok = jnp.where(use_trg, trg_ref[i, b], tok_vmem[b, 0])
        x_scr[pl.ds(b, 1), :] = embed_ref[pl.ds(tok, 1), :]
    x = x_scr[...]                    # (B, E)

    h = h_scr[...]                    # (B, H)
    enc = enc_ref[...]                # (B, S, H)
    encw = encw_ref[...]              # (B, S, H) == enc @ Wa_e + ba   (hoisted)

    # --- Bahdanau attention: score = v . tanh(Wa_h h + (Wa_e enc + b)) ------
    hW = jnp.dot(h, wa_h_ref[...], preferred_element_type=jnp.float32)   # (B, H)
    energy = jnp.tanh(encw + hW[:, None, :])                             # (B, S, H)
    score = jnp.sum(energy * v_ref[...][None, :, :], axis=-1)            # (B, S) lane-dense

    m = jnp.max(score, axis=-1, keepdims=True)
    e = jnp.exp(score - m)
    attn = e / jnp.sum(e, axis=-1, keepdims=True)                        # exact softmax
    ctx = jnp.sum(attn[:, :, None] * enc, axis=1)                        # (B, H)

    # --- GRU cell on [embedded ; context] (weights pre-split, no concat) ----
    gx = (jnp.dot(x, wgx_ref[...], preferred_element_type=jnp.float32)
          + jnp.dot(ctx, wgc_ref[...], preferred_element_type=jnp.float32)
          + bgi_ref[...])                                                # (B, 3H)
    gh = jnp.dot(h, wgh_ref[...], preferred_element_type=jnp.float32) + bgh_ref[...]
    r = jax.nn.sigmoid(gx[:, 0:H] + gh[:, 0:H])
    z = jax.nn.sigmoid(gx[:, H:2 * H] + gh[:, H:2 * H])
    n = jnp.tanh(gx[:, 2 * H:3 * H] + r * gh[:, 2 * H:3 * H])
    h_new = (1.0 - z) * n + z * h                                        # (B, H)

    # --- output projection on [h_new ; context]: RAW logits -----------------
    # (log-softmax is applied in a parallel post-pass; argmax is invariant)
    logits = (jnp.dot(h_new, wo_h_ref[...], preferred_element_type=jnp.float32)
              + jnp.dot(ctx, wo_c_ref[...], preferred_element_type=jnp.float32)
              + bo_ref[...])                                             # (B, V)
    out_ref[0] = logits
    h_scr[...] = h_new

    # --- greedy top-1 index (lowest index on ties, matching torch .max(1)[1])
    iota_v = lax.broadcasted_iota(jnp.int32, (B, V), 1)
    maxv = jnp.max(logits, axis=-1, keepdims=True)
    cand = jnp.where(logits == maxv, iota_v, V)
    tok_vmem[...] = jnp.min(cand, axis=-1, keepdims=True)                # (B, 1) int32


def run_fused_decoder(tf_mask, trg, h0, enc_bsh, encw_bsh, p):
    T, B = trg.shape
    _, S, H = enc_bsh.shape
    V = p['bo'].shape[1]
    E = p['dec_embed'].shape[1]

    tensors = (h0, enc_bsh, encw_bsh, p['dec_embed'],
               p['wa_h_t'], p['v'],
               p['wgx_t'], p['wgc_t'], p['wgh_t'], p['bgi'], p['bgh'],
               p['wo_h_t'], p['wo_c_t'], p['bo'])

    def resident(a):
        z = (0,) * a.ndim
        return pl.BlockSpec(a.shape, lambda i, tf, tg, _z=z: _z)

    grid_spec = pltpu.PrefetchScalarGridSpec(
        num_scalar_prefetch=2,                    # tf_mask, trg -> SMEM
        grid=(T - 1,),
        in_specs=[resident(a) for a in tensors],
        out_specs=pl.BlockSpec((1, B, V), lambda i, tf, tg: (i, 0, 0)),
        scratch_shapes=[pltpu.VMEM((B, H), jnp.float32),   # hidden carry
                        pltpu.VMEM((B, E), jnp.float32),   # embedded-input staging
                        pltpu.VMEM((B, 1), jnp.int32)],    # greedy-token index carry
    )
    # TODO(synk): for realistic V (~32k) add a V-tile grid axis that streams
    # bf16 wo_h_t/wo_c_t/bo tiles (pl.Buffered) with a running-argmax combine.
    return pl.pallas_call(
        fused_decoder_kernel,
        out_shape=jax.ShapeDtypeStruct((T - 1, B, V), jnp.float32),
        grid_spec=grid_spec,
        compiler_params=pltpu.CompilerParams(
            dimension_semantics=("arbitrary",),   # serial recurrence over t
            vmem_limit_bytes=64 * 1024 * 1024),
    )(tf_mask, trg, *tensors)


# ----------------------------------------------------------------------------
# Parameters (deterministic synthetic init) and the Seq2Seq forward.
# ----------------------------------------------------------------------------
def make_params(key, src_vocab, trg_vocab, emb, hid):
    ks = jax.random.split(key, 17)

    def init(k, shape, scale=0.1):
        return (scale * jax.random.normal(k, shape)).astype(jnp.float32)

    return {
        # encoder LSTM
        'src_embed': init(ks[0], (src_vocab, emb)),
        'enc_wih_t': init(ks[1], (emb, 4 * hid)),
        'enc_whh_t': init(ks[2], (hid, 4 * hid)),
        'enc_b':     init(ks[3], (1, 4 * hid)),
        # decoder embedding
        'dec_embed': init(ks[4], (trg_vocab, emb)),
        # attention (split of the [hidden ; enc_out] weight)
        'wa_h_t': init(ks[5], (hid, hid)),
        'wa_e_t': init(ks[6], (hid, hid)),
        'ba':     init(ks[7], (1, hid)),
        'v':      init(ks[8], (1, hid)),
        # GRU cell (split of the [embedded ; context] input weight)
        'wgx_t': init(ks[9], (emb, 3 * hid)),
        'wgc_t': init(ks[10], (hid, 3 * hid)),
        'wgh_t': init(ks[11], (hid, 3 * hid)),
        'bgi':   init(ks[12], (1, 3 * hid)),
        'bgh':   init(ks[13], (1, 3 * hid)),
        # output projection (split of the [h_new ; context] weight)
        'wo_h_t': init(ks[14], (hid, trg_vocab)),
        'wo_c_t': init(ks[15], (hid, trg_vocab)),
        'bo':     init(ks[16], (1, trg_vocab)),
    }


def attn_seq2seq_forward(p, src, trg, tf_mask):
    """src: (S,B) int32, trg: (T,B) int32, tf_mask: (T,) int32 -> (T,B,V) f32."""
    S, B = src.shape
    T = trg.shape[0]
    V = p['bo'].shape[1]

    # ---- encoder ------------------------------------------------------------
    x_emb = p['src_embed'][src]                                      # (S, B, E) gather (glue)
    # hoisted input-side matmul: parallel (S*B,E)x(E,4H), off the recurrence
    xw = jnp.einsum('sbe,eg->sbg', x_emb, p['enc_wih_t']) + p['enc_b']
    enc_bsh, hidden = run_encoder(xw, p['enc_whh_t'])                # (B,S,H), (B,H)
    # hoisted attention projection (+ bias folded): one parallel matmul
    encw_bsh = jnp.einsum('bsh,hk->bsk', enc_bsh, p['wa_e_t']) + p['ba']

    # ---- serial decode loop (Pallas kernel) ---------------------------------
    dec_logits = run_fused_decoder(tf_mask, trg, hidden, enc_bsh, encw_bsh, p)
    # log-softmax is a trivially parallel post-pass (moved off the serial loop)
    dec_out = jax.nn.log_softmax(dec_logits, axis=-1)
    # outputs[0] stays zeros, as in the reference
    return jnp.concatenate([jnp.zeros((1, B, V), jnp.float32), dec_out], axis=0)


if __name__ == "__main__":
    random.seed(0)                     # deterministic teacher-forcing coin flips
    key = jax.random.PRNGKey(0)

    # small but hardware-aligned demo shapes (B mult of 8, E/H/V mult of 128)
    SRC_VOCAB, TRG_VOCAB = 64, 128
    EMB, HID = 128, 128
    S, T, B = 8, 8, 8
    TEACHER_RATIO = 0.5

    kp, ksrc, ktrg = jax.random.split(key, 3)
    params = make_params(kp, SRC_VOCAB, TRG_VOCAB, EMB, HID)
    src = jax.random.randint(ksrc, (S, B), 0, SRC_VOCAB, dtype=jnp.int32)
    trg = jax.random.randint(ktrg, (T, B), 0, TRG_VOCAB, dtype=jnp.int32)

    # Teacher-forcing coin flips drawn once on the host (same random.random()
    # sequence as the reference loop), passed to the kernel as an SMEM mask.
    # tf_mask[t] is the coin drawn at reference iteration t (index 0 unused).
    tf_mask = jnp.array(
        [0] + [1 if random.random() < TEACHER_RATIO else 0 for _ in range(T - 1)],
        dtype=jnp.int32)

    forward = jax.jit(attn_seq2seq_forward)
    outputs = forward(params, src, trg, tf_mask)
    jax.block_until_ready(outputs)
    assert outputs.shape == (T, B, TRG_VOCAB)
    print("KERNEL_OK")
</pallas_src>

<mosaic_0001>
module attributes {stable_mosaic.version = 11 : i64} {
  func.func @encoder_lstm_kernel(%arg0: i32, %arg1: memref<8x8x512xf32, #tpu.memory_space<vmem>>, %arg2: memref<128x512xf32, #tpu.memory_space<vmem>>, %arg3: memref<8x8x128xf32, #tpu.memory_space<vmem>>, %arg4: memref<8x128xf32, #tpu.memory_space<vmem>>, %arg5: memref<8x128xf32, #tpu.memory_space<vmem>>, %arg6: memref<8x128xf32, #tpu.memory_space<vmem>>) attributes {dimension_semantics = [#tpu.dimension_semantics<arbitrary>], iteration_bounds = array<i64: 1>, scalar_prefetch = 0 : i64, scratch_operands = 2 : i64, tpu.core_type = #tpu.core_type<tc>, window_params = [{transform_indices = @transform_0, window_bounds = array<i64: 8, 8, 512>}, {pipeline_mode = #tpu.pipeline_mode<synchronous>, transform_indices = @transform_1, window_bounds = array<i64: 128, 512>}, {transform_indices = @transform_2, window_bounds = array<i64: 8, 8, 128>}, {pipeline_mode = #tpu.pipeline_mode<synchronous>, transform_indices = @transform_3, window_bounds = array<i64: 8, 128>}]} {
    %c0_i32 = arith.constant 0 : i32
    %0 = arith.cmpi eq, %arg0, %c0_i32 : i32
    %1 = arith.extui %0 : i1 to i32
    %c0_i32_0 = arith.constant 0 : i32
    %2 = arith.cmpi ne, %1, %c0_i32_0 : i32
    scf.if %2 {
      %cst_84 = arith.constant 0.000000e+00 : f32
      %257 = vector.broadcast %cst_84 : f32 to vector<8x128xf32>
      %c0_85 = arith.constant 0 : index
      %c0_86 = arith.constant 0 : index
      %258 = vector.load %arg5[%c0_85, %c0_86] : memref<8x128xf32, #tpu.memory_space<vmem>>, vector<8x128xf32>
      tpu.vector_store %arg5[%c0_85, %c0_86], %257 {strides = array<i32>} : memref<8x128xf32, #tpu.memory_space<vmem>>, vector<8x128xf32>,
      %cst_87 = arith.constant 0.000000e+00 : f32
      %259 = vector.broadcast %cst_87 : f32 to vector<8x128xf32>
      %c0_88 = arith.constant 0 : index
      %c0_89 = arith.constant 0 : index
      %260 = vector.load %arg6[%c0_88, %c0_89] : memref<8x128xf32, #tpu.memory_space<vmem>>, vector<8x128xf32>
      tpu.vector_store %arg6[%c0_88, %c0_89], %259 {strides = array<i32>} : memref<8x128xf32, #tpu.memory_space<vmem>>, vector<8x128xf32>,
    } else {
    }
    %c0 = arith.constant 0 : index
    %c0_1 = arith.constant 0 : index
    %3 = vector.load %arg5[%c0, %c0_1] : memref<8x128xf32, #tpu.memory_space<vmem>>, vector<8x128xf32>
    %c0_2 = arith.constant 0 : index
    %c0_3 = arith.constant 0 : index
    %4 = vector.load %arg6[%c0_2, %c0_3] : memref<8x128xf32, #tpu.memory_space<vmem>>, vector<8x128xf32>
    %c0_4 = arith.constant 0 : index
    %c0_5 = arith.constant 0 : index
    %5 = vector.load %arg2[%c0_4, %c0_5] : memref<128x512xf32, #tpu.memory_space<vmem>>, vector<128x512xf32>
    %c0_6 = arith.constant 0 : index
    %c0_7 = arith.constant 0 : index
    %c0_8 = arith.constant 0 : index
    %6 = vector.load %arg1[%c0_6, %c0_7, %c0_8] : memref<8x8x512xf32, #tpu.memory_space<vmem>>, vector<1x8x512xf32>
    %7 = vector.shape_cast %6 : vector<1x8x512xf32> to vector<8x512xf32>
    %cst = arith.constant dense<0.000000e+00> : vector<8x512xf32>
    %8 = tpu.matmul %3, %5, %cst {dimension_numbers = #tpu.dot_dimension_numbers<[1], [0], [0], [1], [0, 0, 1, 1], [], []>} : vector<8x128xf32>, vector<128x512xf32>, vector<8x512xf32> -> vector<8x512xf32>
    %9 = arith.addf %7, %8 : vector<8x512xf32>
    %10 = vector.extract_strided_slice %9 {offsets = [0, 0], sizes = [8, 128], strides = [1, 1]} : vector<8x512xf32> to vector<8x128xf32>
    %11 = arith.negf %10 : vector<8x128xf32>
    %12 = math.exp %11 : vector<8x128xf32>
    %cst_9 = arith.constant 1.000000e+00 : f32
    %13 = vector.broadcast %cst_9 : f32 to vector<8x128xf32>
    %14 = arith.addf %13, %12 : vector<8x128xf32>
    %15 = arith.divf %13, %14 : vector<8x128xf32>
    %16 = vector.extract_strided_slice %9 {offsets = [0, 128], sizes = [8, 128], strides = [1, 1]} : vector<8x512xf32> to vector<8x128xf32>
    %17 = arith.negf %16 : vector<8x128xf32>
    %18 = math.exp %17 : vector<8x128xf32>
    %cst_10 = arith.constant 1.000000e+00 : f32
    %19 = vector.broadcast %cst_10 : f32 to vector<8x128xf32>
    %20 = arith.addf %19, %18 : vector<8x128xf32>
    %21 = arith.divf %19, %20 : vector<8x128xf32>
    %22 = vector.extract_strided_slice %9 {offsets = [0, 256], sizes = [8, 128], strides = [1, 1]} : vector<8x512xf32> to vector<8x128xf32>
    %23 = math.tanh %22 : vector<8x128xf32>
    %24 = vector.extract_strided_slice %9 {offsets = [0, 384], sizes = [8, 128], strides = [1, 1]} : vector<8x512xf32> to vector<8x128xf32>
    %25 = arith.negf %24 : vector<8x128xf32>
    %26 = math.exp %25 : vector<8x128xf32>
    %cst_11 = arith.constant 1.000000e+00 : f32
    %27 = vector.broadcast %cst_11 : f32 to vector<8x128xf32>
    %28 = arith.addf %27, %26 : vector<8x128xf32>
    %29 = arith.divf %27, %28 : vector<8x128xf32>
    %30 = arith.mulf %21, %4 : vector<8x128xf32>
    %31 = arith.mulf %15, %23 : vector<8x128xf32>
    %32 = arith.addf %30, %31 : vector<8x128xf32>
    %33 = math.tanh %32 : vector<8x128xf32>
    %34 = arith.mulf %29, %33 : vector<8x128xf32>
    %35 = vector.shape_cast %34 : vector<8x128xf32> to vector<8x1x128xf32>
    %c0_12 = arith.constant 0 : index
    %c0_13 = arith.constant 0 : index
    %c0_14 = arith.constant 0 : index
    %36 = vector.load %arg3[%c0_12, %c0_13, %c0_14] : memref<8x8x128xf32, #tpu.memory_space<vmem>>, vector<8x1x128xf32>
    tpu.vector_store %arg3[%c0_12, %c0_13, %c0_14], %35 {strides = array<i32>} : memref<8x8x128xf32, #tpu.memory_space<vmem>>, vector<8x1x128xf32>,
    %c1 = arith.constant 1 : index
    %c0_15 = arith.constant 0 : index
    %c0_16 = arith.constant 0 : index
    %37 = vector.load %arg1[%c1, %c0_15, %c0_16] : memref<8x8x512xf32, #tpu.memory_space<vmem>>, vector<1x8x512xf32>
    %38 = vector.shape_cast %37 : vector<1x8x512xf32> to vector<8x512xf32>
    %cst_17 = arith.constant dense<0.000000e+00> : vector<8x512xf32>
    %39 = tpu.matmul %34, %5, %cst_17 {dimension_numbers = #tpu.dot_dimension_numbers<[1], [0], [0], [1], [0, 0, 1, 1], [], []>} : vector<8x128xf32>, vector<128x512xf32>, vector<8x512xf32> -> vector<8x512xf32>
    %40 = arith.addf %38, %39 : vector<8x512xf32>
    %41 = vector.extract_strided_slice %40 {offsets = [0, 0], sizes = [8, 128], strides = [1, 1]} : vector<8x512xf32> to vector<8x128xf32>
    %42 = arith.negf %41 : vector<8x128xf32>
    %43 = math.exp %42 : vector<8x128xf32>
    %cst_18 = arith.constant 1.000000e+00 : f32
    %44 = vector.broadcast %cst_18 : f32 to vector<8x128xf32>
    %45 = arith.addf %44, %43 : vector<8x128xf32>
    %46 = arith.divf %44, %45 : vector<8x128xf32>
    %47 = vector.extract_strided_slice %40 {offsets = [0, 128], sizes = [8, 128], strides = [1, 1]} : vector<8x512xf32> to vector<8x128xf32>
    %48 = arith.negf %47 : vector<8x128xf32>
    %49 = math.exp %48 : vector<8x128xf32>
    %cst_19 = arith.constant 1.000000e+00 : f32
    %50 = vector.broadcast %cst_19 : f32 to vector<8x128xf32>
    %51 = arith.addf %50, %49 : vector<8x128xf32>
    %52 = arith.divf %50, %51 : vector<8x128xf32>
    %53 = vector.extract_strided_slice %40 {offsets = [0, 256], sizes = [8, 128], strides = [1, 1]} : vector<8x512xf32> to vector<8x128xf32>
    %54 = math.tanh %53 : vector<8x128xf32>
    %55 = vector.extract_strided_slice %40 {offsets = [0, 384], sizes = [8, 128], strides = [1, 1]} : vector<8x512xf32> to vector<8x128xf32>
    %56 = arith.negf %55 : vector<8x128xf32>
    %57 = math.exp %56 : vector<8x128xf32>
    %cst_20 = arith.constant 1.000000e+00 : f32
    %58 = vector.broadcast %cst_20 : f32 to vector<8x128xf32>
    %59 = arith.addf %58, %57 : vector<8x128xf32>
    %60 = arith.divf %58, %59 : vector<8x128xf32>
    %61 = arith.mulf %52, %32 : vector<8x128xf32>
    %62 = arith.mulf %46, %54 : vector<8x128xf32>
    %63 = arith.addf %61, %62 : vector<8x128xf32>
    %64 = math.tanh %63 : vector<8x128xf32>
    %65 = arith.mulf %60, %64 : vector<8x128xf32>
    %66 = vector.shape_cast %65 : vector<8x128xf32> to vector<8x1x128xf32>
    %c0_21 = arith.constant 0 : index
    %c1_22 = arith.constant 1 : index
    %c0_23 = arith.constant 0 : index
    %67 = vector.load %arg3[%c0_21, %c1_22, %c0_23] : memref<8x8x128xf32, #tpu.memory_space<vmem>>, vector<8x1x128xf32>
    tpu.vector_store %arg3[%c0_21, %c1_22, %c0_23], %66 {strides = array<i32>} : memref<8x8x128xf32, #tpu.memory_space<vmem>>, vector<8x1x128xf32>,
    %c2 = arith.constant 2 : index
    %c0_24 = arith.constant 0 : index
    %c0_25 = arith.constant 0 : index
    %68 = vector.load %arg1[%c2, %c0_24, %c0_25] : memref<8x8x512xf32, #tpu.memory_space<vmem>>, vector<1x8x512xf32>
    %69 = vector.shape_cast %68 : vector<1x8x512xf32> to vector<8x512xf32>
    %cst_26 = arith.constant dense<0.000000e+00> : vector<8x512xf32>
    %70 = tpu.matmul %65, %5, %cst_26 {dimension_numbers = #tpu.dot_dimension_numbers<[1], [0], [0], [1], [0, 0, 1, 1], [], []>} : vector<8x128xf32>, vector<128x512xf32>, vector<8x512xf32> -> vector<8x512xf32>
    %71 = arith.addf %69, %70 : vector<8x512xf32>
    %72 = vector.extract_strided_slice %71 {offsets = [0, 0], sizes = [8, 128], strides = [1, 1]} : vector<8x512xf32> to vector<8x128xf32>
    %73 = arith.negf %72 : vector<8x128xf32>
    %74 = math.exp %73 : vector<8x128xf32>
    %cst_27 = arith.constant 1.000000e+00 : f32
    %75 = vector.broadcast %cst_27 : f32 to vector<8x128xf32>
    %76 = arith.addf %75, %74 : vector<8x128xf32>
    %77 = arith.divf %75, %76 : vector<8x128xf32>
    %78 = vector.extract_strided_slice %71 {offsets = [0, 128], sizes = [8, 128], strides = [1, 1]} : vector<8x512xf32> to vector<8x128xf32>
    %79 = arith.negf %78 : vector<8x128xf32>
    %80 = math.exp %79 : vector<8x128xf32>
    %cst_28 = arith.constant 1.000000e+00 : f32
    %81 = vector.broadcast %cst_28 : f32 to vector<8x128xf32>
    %82 = arith.addf %81, %80 : vector<8x128xf32>
    %83 = arith.divf %81, %82 : vector<8x128xf32>
    %84 = vector.extract_strided_slice %71 {offsets = [0, 256], sizes = [8, 128], strides = [1, 1]} : vector<8x512xf32> to vector<8x128xf32>
    %85 = math.tanh %84 : vector<8x128xf32>
    %86 = vector.extract_strided_slice %71 {offsets = [0, 384], sizes = [8, 128], strides = [1, 1]} : vector<8x512xf32> to vector<8x128xf32>
    %87 = arith.negf %86 : vector<8x128xf32>
    %88 = math.exp %87 : vector<8x128xf32>
    %cst_29 = arith.constant 1.000000e+00 : f32
    %89 = vector.broadcast %cst_29 : f32 to vector<8x128xf32>
    %90 = arith.addf %89, %88 : vector<8x128xf32>
    %91 = arith.divf %89, %90 : vector<8x128xf32>
    %92 = arith.mulf %83, %63 : vector<8x128xf32>
    %93 = arith.mulf %77, %85 : vector<8x128xf32>
    %94 = arith.addf %92, %93 : vector<8x128xf32>
    %95 = math.tanh %94 : vector<8x128xf32>
    %96 = arith.mulf %91, %95 : vector<8x128xf32>
    %97 = vector.shape_cast %96 : vector<8x128xf32> to vector<8x1x128xf32>
    %c0_30 = arith.constant 0 : index
    %c2_31 = arith.constant 2 : index
    %c0_32 = arith.constant 0 : index
    %98 = vector.load %arg3[%c0_30, %c2_31, %c0_32] : memref<8x8x128xf32, #tpu.memory_space<vmem>>, vector<8x1x128xf32>
    tpu.vector_store %arg3[%c0_30, %c2_31, %c0_32], %97 {strides = array<i32>} : memref<8x8x128xf32, #tpu.memory_space<vmem>>, vector<8x1x128xf32>,
    %c3 = arith.constant 3 : index
    %c0_33 = arith.constant 0 : index
    %c0_34 = arith.constant 0 : index
    %99 = vector.load %arg1[%c3, %c0_33, %c0_34] : memref<8x8x512xf32, #tpu.memory_space<vmem>>, vector<1x8x512xf32>
    %100 = vector.shape_cast %99 : vector<1x8x512xf32> to vector<8x512xf32>
    %cst_35 = arith.constant dense<0.000000e+00> : vector<8x512xf32>
    %101 = tpu.matmul %96, %5, %cst_35 {dimension_numbers = #tpu.dot_dimension_numbers<[1], [0], [0], [1], [0, 0, 1, 1], [], []>} : vector<8x128xf32>, vector<128x512xf32>, vector<8x512xf32> -> vector<8x512xf32>
    %102 = arith.addf %100, %101 : vector<8x512xf32>
    %103 = vector.extract_strided_slice %102 {offsets = [0, 0], sizes = [8, 128], strides = [1, 1]} : vector<8x512xf32> to vector<8x128xf32>
    %104 = arith.negf %103 : vector<8x128xf32>
    %105 = math.exp %104 : vector<8x128xf32>
    %cst_36 = arith.constant 1.000000e+00 : f32
    %106 = vector.broadcast %cst_36 : f32 to vector<8x128xf32>
    %107 = arith.addf %106, %105 : vector<8x128xf32>
    %108 = arith.divf %106, %107 : vector<8x128xf32>
    %109 = vector.extract_strided_slice %102 {offsets = [0, 128], sizes = [8, 128], strides = [1, 1]} : vector<8x512xf32> to vector<8x128xf32>
    %110 = arith.negf %109 : vector<8x128xf32>
    %111 = math.exp %110 : vector<8x128xf32>
    %cst_37 = arith.constant 1.000000e+00 : f32
    %112 = vector.broadcast %cst_37 : f32 to vector<8x128xf32>
    %113 = arith.addf %112, %111 : vector<8x128xf32>
    %114 = arith.divf %112, %113 : vector<8x128xf32>
    %115 = vector.extract_strided_slice %102 {offsets = [0, 256], sizes = [8, 128], strides = [1, 1]} : vector<8x512xf32> to vector<8x128xf32>
    %116 = math.tanh %115 : vector<8x128xf32>
    %117 = vector.extract_strided_slice %102 {offsets = [0, 384], sizes = [8, 128], strides = [1, 1]} : vector<8x512xf32> to vector<8x128xf32>
    %118 = arith.negf %117 : vector<8x128xf32>
    %119 = math.exp %118 : vector<8x128xf32>
    %cst_38 = arith.constant 1.000000e+00 : f32
    %120 = vector.broadcast %cst_38 : f32 to vector<8x128xf32>
    %121 = arith.addf %120, %119 : vector<8x128xf32>
    %122 = arith.divf %120, %121 : vector<8x128xf32>
    %123 = arith.mulf %114, %94 : vector<8x128xf32>
    %124 = arith.mulf %108, %116 : vector<8x128xf32>
    %125 = arith.addf %123, %124 : vector<8x128xf32>
    %126 = math.tanh %125 : vector<8x128xf32>
    %127 = arith.mulf %122, %126 : vector<8x128xf32>
    %128 = vector.shape_cast %127 : vector<8x128xf32> to vector<8x1x128xf32>
    %c0_39 = arith.constant 0 : index
    %c3_40 = arith.constant 3 : index
    %c0_41 = arith.constant 0 : index
    %129 = vector.load %arg3[%c0_39, %c3_40, %c0_41] : memref<8x8x128xf32, #tpu.memory_space<vmem>>, vector<8x1x128xf32>
    tpu.vector_store %arg3[%c0_39, %c3_40, %c0_41], %128 {strides = array<i32>} : memref<8x8x128xf32, #tpu.memory_space<vmem>>, vector<8x1x128xf32>,
    %c4 = arith.constant 4 : index
    %c0_42 = arith.constant 0 : index
    %c0_43 = arith.constant 0 : index
    %130 = vector.load %arg1[%c4, %c0_42, %c0_43] : memref<8x8x512xf32, #tpu.memory_space<vmem>>, vector<1x8x512xf32>
    %131 = vector.shape_cast %130 : vector<1x8x512xf32> to vector<8x512xf32>
    %cst_44 = arith.constant dense<0.000000e+00> : vector<8x512xf32>
    %132 = tpu.matmul %127, %5, %cst_44 {dimension_numbers = #tpu.dot_dimension_numbers<[1], [0], [0], [1], [0, 0, 1, 1], [], []>} : vector<8x128xf32>, vector<128x512xf32>, vector<8x512xf32> -> vector<8x512xf32>
    %133 = arith.addf %131, %132 : vector<8x512xf32>
    %134 = vector.extract_strided_slice %133 {offsets = [0, 0], sizes = [8, 128], strides = [1, 1]} : vector<8x512xf32> to vector<8x128xf32>
    %135 = arith.negf %134 : vector<8x128xf32>
    %136 = math.exp %135 : vector<8x128xf32>
    %cst_45 = arith.constant 1.000000e+00 : f32
    %137 = vector.broadcast %cst_45 : f32 to vector<8x128xf32>
    %138 = arith.addf %137, %136 : vector<8x128xf32>
    %139 = arith.divf %137, %138 : vector<8x128xf32>
    %140 = vector.extract_strided_slice %133 {offsets = [0, 128], sizes = [8, 128], strides = [1, 1]} : vector<8x512xf32> to vector<8x128xf32>
    %141 = arith.negf %140 : vector<8x128xf32>
    %142 = math.exp %141 : vector<8x128xf32>
    %cst_46 = arith.constant 1.000000e+00 : f32
    %143 = vector.broadcast %cst_46 : f32 to vector<8x128xf32>
    %144 = arith.addf %143, %142 : vector<8x128xf32>
    %145 = arith.divf %143, %144 : vector<8x128xf32>
    %146 = vector.extract_strided_slice %133 {offsets = [0, 256], sizes = [8, 128], strides = [1, 1]} : vector<8x512xf32> to vector<8x128xf32>
    %147 = math.tanh %146 : vector<8x128xf32>
    %148 = vector.extract_strided_slice %133 {offsets = [0, 384], sizes = [8, 128], strides = [1, 1]} : vector<8x512xf32> to vector<8x128xf32>
    %149 = arith.negf %148 : vector<8x128xf32>
    %150 = math.exp %149 : vector<8x128xf32>
    %cst_47 = arith.constant 1.000000e+00 : f32
    %151 = vector.broadcast %cst_47 : f32 to vector<8x128xf32>
    %152 = arith.addf %151, %150 : vector<8x128xf32>
    %153 = arith.divf %151, %152 : vector<8x128xf32>
    %154 = arith.mulf %145, %125 : vector<8x128xf32>
    %155 = arith.mulf %139, %147 : vector<8x128xf32>
    %156 = arith.addf %154, %155 : vector<8x128xf32>
    %157 = math.tanh %156 : vector<8x128xf32>
    %158 = arith.mulf %153, %157 : vector<8x128xf32>
    %159 = vector.shape_cast %158 : vector<8x128xf32> to vector<8x1x128xf32>
    %c0_48 = arith.constant 0 : index
    %c4_49 = arith.constant 4 : index
    %c0_50 = arith.constant 0 : index
    %160 = vector.load %arg3[%c0_48, %c4_49, %c0_50] : memref<8x8x128xf32, #tpu.memory_space<vmem>>, vector<8x1x128xf32>
    tpu.vector_store %arg3[%c0_48, %c4_49, %c0_50], %159 {strides = array<i32>} : memref<8x8x128xf32, #tpu.memory_space<vmem>>, vector<8x1x128xf32>,
    %c5 = arith.constant 5 : index
    %c0_51 = arith.constant 0 : index
    %c0_52 = arith.constant 0 : index
    %161 = vector.load %arg1[%c5, %c0_51, %c0_52] : memref<8x8x512xf32, #tpu.memory_space<vmem>>, vector<1x8x512xf32>
    %162 = vector.shape_cast %161 : vector<1x8x512xf32> to vector<8x512xf32>
    %cst_53 = arith.constant dense<0.000000e+00> : vector<8x512xf32>
    %163 = tpu.matmul %158, %5, %cst_53 {dimension_numbers = #tpu.dot_dimension_numbers<[1], [0], [0], [1], [0, 0, 1, 1], [], []>} : vector<8x128xf32>, vector<128x512xf32>, vector<8x512xf32> -> vector<8x512xf32>
    %164 = arith.addf %162, %163 : vector<8x512xf32>
    %165 = vector.extract_strided_slice %164 {offsets = [0, 0], sizes = [8, 128], strides = [1, 1]} : vector<8x512xf32> to vector<8x128xf32>
    %166 = arith.negf %165 : vector<8x128xf32>
    %167 = math.exp %166 : vector<8x128xf32>
    %cst_54 = arith.constant 1.000000e+00 : f32
    %168 = vector.broadcast %cst_54 : f32 to vector<8x128xf32>
    %169 = arith.addf %168, %167 : vector<8x128xf32>
    %170 = arith.divf %168, %169 : vector<8x128xf32>
    %171 = vector.extract_strided_slice %164 {offsets = [0, 128], sizes = [8, 128], strides = [1, 1]} : vector<8x512xf32> to vector<8x128xf32>
    %172 = arith.negf %171 : vector<8x128xf32>
    %173 = math.exp %172 : vector<8x128xf32>
    %cst_55 = arith.constant 1.000000e+00 : f32
    %174 = vector.broadcast %cst_55 : f32 to vector<8x128xf32>
    %175 = arith.addf %174, %173 : vector<8x128xf32>
    %176 = arith.divf %174, %175 : vector<8x128xf32>
    %177 = vector.extract_strided_slice %164 {offsets = [0, 256], sizes = [8, 128], strides = [1, 1]} : vector<8x512xf32> to vector<8x128xf32>
    %178 = math.tanh %177 : vector<8x128xf32>
    %179 = vector.extract_strided_slice %164 {offsets = [0, 384], sizes = [8, 128], strides = [1, 1]} : vector<8x512xf32> to vector<8x128xf32>
    %180 = arith.negf %179 : vector<8x128xf32>
    %181 = math.exp %180 : vector<8x128xf32>
    %cst_56 = arith.constant 1.000000e+00 : f32
    %182 = vector.broadcast %cst_56 : f32 to vector<8x128xf32>
    %183 = arith.addf %182, %181 : vector<8x128xf32>
    %184 = arith.divf %182, %183 : vector<8x128xf32>
    %185 = arith.mulf %176, %156 : vector<8x128xf32>
    %186 = arith.mulf %170, %178 : vector<8x128xf32>
    %187 = arith.addf %185, %186 : vector<8x128xf32>
    %188 = math.tanh %187 : vector<8x128xf32>
    %189 = arith.mulf %184, %188 : vector<8x128xf32>
    %190 = vector.shape_cast %189 : vector<8x128xf32> to vector<8x1x128xf32>
    %c0_57 = arith.constant 0 : index
    %c5_58 = arith.constant 5 : index
    %c0_59 = arith.constant 0 : index
    %191 = vector.load %arg3[%c0_57, %c5_58, %c0_59] : memref<8x8x128xf32, #tpu.memory_space<vmem>>, vector<8x1x128xf32>
    tpu.vector_store %arg3[%c0_57, %c5_58, %c0_59], %190 {strides = array<i32>} : memref<8x8x128xf32, #tpu.memory_space<vmem>>, vector<8x1x128xf32>,
    %c6 = arith.constant 6 : index
    %c0_60 = arith.constant 0 : index
    %c0_61 = arith.constant 0 : index
    %192 = vector.load %arg1[%c6, %c0_60, %c0_61] : memref<8x8x512xf32, #tpu.memory_space<vmem>>, vector<1x8x512xf32>
    %193 = vector.shape_cast %192 : vector<1x8x512xf32> to vector<8x512xf32>
    %cst_62 = arith.constant dense<0.000000e+00> : vector<8x512xf32>
    %194 = tpu.matmul %189, %5, %cst_62 {dimension_numbers = #tpu.dot_dimension_numbers<[1], [0], [0], [1], [0, 0, 1, 1], [], []>} : vector<8x128xf32>, vector<128x512xf32>, vector<8x512xf32> -> vector<8x512xf32>
    %195 = arith.addf %193, %194 : vector<8x512xf32>
    %196 = vector.extract_strided_slice %195 {offsets = [0, 0], sizes = [8, 128], strides = [1, 1]} : vector<8x512xf32> to vector<8x128xf32>
    %197 = arith.negf %196 : vector<8x128xf32>
    %198 = math.exp %197 : vector<8x128xf32>
    %cst_63 = arith.constant 1.000000e+00 : f32
    %199 = vector.broadcast %cst_63 : f32 to vector<8x128xf32>
    %200 = arith.addf %199, %198 : vector<8x128xf32>
    %201 = arith.divf %199, %200 : vector<8x128xf32>
    %202 = vector.extract_strided_slice %195 {offsets = [0, 128], sizes = [8, 128], strides = [1, 1]} : vector<8x512xf32> to vector<8x128xf32>
    %203 = arith.negf %202 : vector<8x128xf32>
    %204 = math.exp %203 : vector<8x128xf32>
    %cst_64 = arith.constant 1.000000e+00 : f32
    %205 = vector.broadcast %cst_64 : f32 to vector<8x128xf32>
    %206 = arith.addf %205, %204 : vector<8x128xf32>
    %207 = arith.divf %205, %206 : vector<8x128xf32>
    %208 = vector.extract_strided_slice %195 {offsets = [0, 256], sizes = [8, 128], strides = [1, 1]} : vector<8x512xf32> to vector<8x128xf32>
    %209 = math.tanh %208 : vector<8x128xf32>
    %210 = vector.extract_strided_slice %195 {offsets = [0, 384], sizes = [8, 128], strides = [1, 1]} : vector<8x512xf32> to vector<8x128xf32>
    %211 = arith.negf %210 : vector<8x128xf32>
    %212 = math.exp %211 : vector<8x128xf32>
    %cst_65 = arith.constant 1.000000e+00 : f32
    %213 = vector.broadcast %cst_65 : f32 to vector<8x128xf32>
    %214 = arith.addf %213, %212 : vector<8x128xf32>
    %215 = arith.divf %213, %214 : vector<8x128xf32>
    %216 = arith.mulf %207, %187 : vector<8x128xf32>
    %217 = arith.mulf %201, %209 : vector<8x128xf32>
    %218 = arith.addf %216, %217 : vector<8x128xf32>
    %219 = math.tanh %218 : vector<8x128xf32>
    %220 = arith.mulf %215, %219 : vector<8x128xf32>
    %221 = vector.shape_cast %220 : vector<8x128xf32> to vector<8x1x128xf32>
    %c0_66 = arith.constant 0 : index
    %c6_67 = arith.constant 6 : index
    %c0_68 = arith.constant 0 : index
    %222 = vector.load %arg3[%c0_66, %c6_67, %c0_68] : memref<8x8x128xf32, #tpu.memory_space<vmem>>, vector<8x1x128xf32>
    tpu.vector_store %arg3[%c0_66, %c6_67, %c0_68], %221 {strides = array<i32>} : memref<8x8x128xf32, #tpu.memory_space<vmem>>, vector<8x1x128xf32>,
    %c7 = arith.constant 7 : index
    %c0_69 = arith.constant 0 : index
    %c0_70 = arith.constant 0 : index
    %223 = vector.load %arg1[%c7, %c0_69, %c0_70] : memref<8x8x512xf32, #tpu.memory_space<vmem>>, vector<1x8x512xf32>
    %224 = vector.shape_cast %223 : vector<1x8x512xf32> to vector<8x512xf32>
    %cst_71 = arith.constant dense<0.000000e+00> : vector<8x512xf32>
    %225 = tpu.matmul %220, %5, %cst_71 {dimension_numbers = #tpu.dot_dimension_numbers<[1], [0], [0], [1], [0, 0, 1, 1], [], []>} : vector<8x128xf32>, vector<128x512xf32>, vector<8x512xf32> -> vector<8x512xf32>
    %226 = arith.addf %224, %225 : vector<8x512xf32>
    %227 = vector.extract_strided_slice %226 {offsets = [0, 0], sizes = [8, 128], strides = [1, 1]} : vector<8x512xf32> to vector<8x128xf32>
    %228 = arith.negf %227 : vector<8x128xf32>
    %229 = math.exp %228 : vector<8x128xf32>
    %cst_72 = arith.constant 1.000000e+00 : f32
    %230 = vector.broadcast %cst_72 : f32 to vector<8x128xf32>
    %231 = arith.addf %230, %229 : vector<8x128xf32>
    %232 = arith.divf %230, %231 : vector<8x128xf32>
    %233 = vector.extract_strided_slice %226 {offsets = [0, 128], sizes = [8, 128], strides = [1, 1]} : vector<8x512xf32> to vector<8x128xf32>
    %234 = arith.negf %233 : vector<8x128xf32>
    %235 = math.exp %234 : vector<8x128xf32>
    %cst_73 = arith.constant 1.000000e+00 : f32
    %236 = vector.broadcast %cst_73 : f32 to vector<8x128xf32>
    %237 = arith.addf %236, %235 : vector<8x128xf32>
    %238 = arith.divf %236, %237 : vector<8x128xf32>
    %239 = vector.extract_strided_slice %226 {offsets = [0, 256], sizes = [8, 128], strides = [1, 1]} : vector<8x512xf32> to vector<8x128xf32>
    %240 = math.tanh %239 : vector<8x128xf32>
    %241 = vector.extract_strided_slice %226 {offsets = [0, 384], sizes = [8, 128], strides = [1, 1]} : vector<8x512xf32> to vector<8x128xf32>
    %242 = arith.negf %241 : vector<8x128xf32>
    %243 = math.exp %242 : vector<8x128xf32>
    %cst_74 = arith.constant 1.000000e+00 : f32
    %244 = vector.broadcast %cst_74 : f32 to vector<8x128xf32>
    %245 = arith.addf %244, %243 : vector<8x128xf32>
    %246 = arith.divf %244, %245 : vector<8x128xf32>
    %247 = arith.mulf %238, %218 : vector<8x128xf32>
    %248 = arith.mulf %232, %240 : vector<8x128xf32>
    %249 = arith.addf %247, %248 : vector<8x128xf32>
    %250 = math.tanh %249 : vector<8x128xf32>
    %251 = arith.mulf %246, %250 : vector<8x128xf32>
    %252 = vector.shape_cast %251 : vector<8x128xf32> to vector<8x1x128xf32>
    %c0_75 = arith.constant 0 : index
    %c7_76 = arith.constant 7 : index
    %c0_77 = arith.constant 0 : index
    %253 = vector.load %arg3[%c0_75, %c7_76, %c0_77] : memref<8x8x128xf32, #tpu.memory_space<vmem>>, vector<8x1x128xf32>
    tpu.vector_store %arg3[%c0_75, %c7_76, %c0_77], %252 {strides = array<i32>} : memref<8x8x128xf32, #tpu.memory_space<vmem>>, vector<8x1x128xf32>,
    %c0_78 = arith.constant 0 : index
    %c0_79 = arith.constant 0 : index
    %254 = vector.load %arg5[%c0_78, %c0_79] : memref<8x128xf32, #tpu.memory_space<vmem>>, vector<8x128xf32>
    tpu.vector_store %arg5[%c0_78, %c0_79], %251 {strides = array<i32>} : memref<8x128xf32, #tpu.memory_space<vmem>>, vector<8x128xf32>,
    %c0_80 = arith.constant 0 : index
    %c0_81 = arith.constant 0 : index
    %255 = vector.load %arg6[%c0_80, %c0_81] : memref<8x128xf32, #tpu.memory_space<vmem>>, vector<8x128xf32>
    tpu.vector_store %arg6[%c0_80, %c0_81], %249 {strides = array<i32>} : memref<8x128xf32, #tpu.memory_space<vmem>>, vector<8x128xf32>,
    %c0_82 = arith.constant 0 : index
    %c0_83 = arith.constant 0 : index
    %256 = vector.load %arg4[%c0_82, %c0_83] : memref<8x128xf32, #tpu.memory_space<vmem>>, vector<8x128xf32>
    tpu.vector_store %arg4[%c0_82, %c0_83], %251 {strides = array<i32>} : memref<8x128xf32, #tpu.memory_space<vmem>>, vector<8x128xf32>,
    return
  }
  func.func @transform_0(%arg0: i32) -> (i32, i32, i32) {
    %c0_i32 = arith.constant 0 : i32
    %c0_i32_0 = arith.constant 0 : i32
    %c0_i32_1 = arith.constant 0 : i32
    return %arg0, %c0_i32, %c0_i32_0 : i32, i32, i32
  }
  func.func @transform_1(%arg0: i32) -> (i32, i32) {
    %c0_i32 = arith.constant 0 : i32
    %c0_i32_0 = arith.constant 0 : i32
    %c0_i32_1 = arith.constant 0 : i32
    return %c0_i32, %c0_i32_0 : i32, i32
  }
  func.func @transform_2(%arg0: i32) -> (i32, i32, i32) {
    %c0_i32 = arith.constant 0 : i32
    %c0_i32_0 = arith.constant 0 : i32
    %c0_i32_1 = arith.constant 0 : i32
    return %c0_i32, %arg0, %c0_i32_0 : i32, i32, i32
  }
  func.func @transform_3(%arg0: i32) -> (i32, i32) {
    %c0_i32 = arith.constant 0 : i32
    %c0_i32_0 = arith.constant 0 : i32
    %c0_i32_1 = arith.constant 0 : i32
    return %c0_i32, %c0_i32_0 : i32, i32
  }
}

module attributes {stable_mosaic.version = 11 : i64} {
  func.func @fused_decoder_kernel(%arg0: i32, %arg1: memref<8xi32, #tpu.memory_space<smem>>, %arg2: memref<8x8xi32, #tpu.memory_space<smem>>, %arg3: memref<8x128xf32, #tpu.memory_space<vmem>>, %arg4: memref<8x8x128xf32, #tpu.memory_space<vmem>>, %arg5: memref<8x8x128xf32, #tpu.memory_space<vmem>>, %arg6: memref<128x128xf32, #tpu.memory_space<vmem>>, %arg7: memref<128x128xf32, #tpu.memory_space<vmem>>, %arg8: memref<1x128xf32, #tpu.memory_space<vmem>>, %arg9: memref<128x384xf32, #tpu.memory_space<vmem>>, %arg10: memref<128x384xf32, #tpu.memory_space<vmem>>, %arg11: memref<128x384xf32, #tpu.memory_space<vmem>>, %arg12: memref<1x384xf32, #tpu.memory_space<vmem>>, %arg13: memref<1x384xf32, #tpu.memory_space<vmem>>, %arg14: memref<128x128xf32, #tpu.memory_space<vmem>>, %arg15: memref<128x128xf32, #tpu.memory_space<vmem>>, %arg16: memref<1x128xf32, #tpu.memory_space<vmem>>, %arg17: memref<1x8x128xf32, #tpu.memory_space<vmem>>, %arg18: memref<8x128xf32, #tpu.memory_space<vmem>>, %arg19: memref<8x128xf32, #tpu.memory_space<vmem>>, %arg20: memref<8x1xi32, #tpu.memory_space<vmem>>) attributes {dimension_semantics = [#tpu.dimension_semantics<arbitrary>], iteration_bounds = array<i64: 7>, scalar_prefetch = 2 : i64, scratch_operands = 3 : i64, tpu.core_type = #tpu.core_type<tc>, window_params = [{pipeline_mode = #tpu.pipeline_mode<synchronous>, transform_indices = @transform_0, window_bounds = array<i64: 8, 128>}, {pipeline_mode = #tpu.pipeline_mode<synchronous>, transform_indices = @transform_1, window_bounds = array<i64: 8, 8, 128>}, {pipeline_mode = #tpu.pipeline_mode<synchronous>, transform_indices = @transform_2, window_bounds = array<i64: 8, 8, 128>}, {pipeline_mode = #tpu.pipeline_mode<synchronous>, transform_indices = @transform_3, window_bounds = array<i64: 128, 128>}, {pipeline_mode = #tpu.pipeline_mode<synchronous>, transform_indices = @transform_4, window_bounds = array<i64: 128, 128>}, {pipeline_mode = #tpu.pipeline_mode<synchronous>, transform_indices = @transform_5, window_bounds = array<i64: 1, 128>}, {pipeline_mode = #tpu.pipeline_mode<synchronous>, transform_indices = @transform_6, window_bounds = array<i64: 128, 384>}, {pipeline_mode = #tpu.pipeline_mode<synchronous>, transform_indices = @transform_7, window_bounds = array<i64: 128, 384>}, {pipeline_mode = #tpu.pipeline_mode<synchronous>, transform_indices = @transform_8, window_bounds = array<i64: 128, 384>}, {pipeline_mode = #tpu.pipeline_mode<synchronous>, transform_indices = @transform_9, window_bounds = array<i64: 1, 384>}, {pipeline_mode = #tpu.pipeline_mode<synchronous>, transform_indices = @transform_10, window_bounds = array<i64: 1, 384>}, {pipeline_mode = #tpu.pipeline_mode<synchronous>, transform_indices = @transform_11, window_bounds = array<i64: 128, 128>}, {pipeline_mode = #tpu.pipeline_mode<synchronous>, transform_indices = @transform_12, window_bounds = array<i64: 128, 128>}, {pipeline_mode = #tpu.pipeline_mode<synchronous>, transform_indices = @transform_13, window_bounds = array<i64: 1, 128>}, {transform_indices = @transform_14, window_bounds = array<i64: 1, 8, 128>}]} {
    %c0_i32 = arith.constant 0 : i32
    %0 = arith.cmpi eq, %arg0, %c0_i32 : i32
    %1 = arith.extui %0 : i1 to i32
    %c0_i32_0 = arith.constant 0 : i32
    %2 = arith.cmpi ne, %1, %c0_i32_0 : i32
    scf.if %2 {
      %c0_94 = arith.constant 0 : index
      %c0_95 = arith.constant 0 : index
      %161 = vector.load %arg3[%c0_94, %c0_95] : memref<8x128xf32, #tpu.memory_space<vmem>>, vector<8x128xf32>
      %c0_96 = arith.constant 0 : index
      %c0_97 = arith.constant 0 : index
      %162 = vector.load %arg18[%c0_96, %c0_97] : memref<8x128xf32, #tpu.memory_space<vmem>>, vector<8x128xf32>
      tpu.vector_store %arg18[%c0_96, %c0_97], %161 {strides = array<i32>} : memref<8x128xf32, #tpu.memory_space<vmem>>, vector<8x128xf32>,
    } else {
    }
    %c0_i32_1 = arith.constant 0 : i32
    %3 = arith.cmpi eq, %arg0, %c0_i32_1 : i32
    %4 = arith.index_cast %arg0 : i32 to index
    %5 = memref.load %arg1[%4] : memref<8xi32, #tpu.memory_space<smem>>
    %c0_i32_2 = arith.constant 0 : i32
    %6 = arith.cmpi sgt, %5, %c0_i32_2 : i32
    %7 = arith.ori %3, %6 : i1
    %8 = arith.index_cast %arg0 : i32 to index
    %c0 = arith.constant 0 : index
    %9 = memref.load %arg2[%8, %c0] : memref<8x8xi32, #tpu.memory_space<smem>>
    %c0_3 = arith.constant 0 : index
    %c0_4 = arith.constant 0 : index
    %10 = vector.load %arg20[%c0_3, %c0_4] : memref<8x1xi32, #tpu.memory_space<vmem>>, vector<1x1xi32>
    %11 = vector.extract %10[0, 0] : i32 from vector<1x1xi32>
    %12 = arith.select %7, %9, %11 : i32
    %13 = arith.index_cast %12 : i32 to index
    %c0_5 = arith.constant 0 : index
    %14 = vector.load %arg6[%13, %c0_5] : memref<128x128xf32, #tpu.memory_space<vmem>>, vector<1x128xf32>
    %c0_6 = arith.constant 0 : index
    %c0_7 = arith.constant 0 : index
    %15 = vector.load %arg19[%c0_6, %c0_7] : memref<8x128xf32, #tpu.memory_space<vmem>>, vector<1x128xf32>
    tpu.vector_store %arg19[%c0_6, %c0_7], %14 {strides = array<i32>} : memref<8x128xf32, #tpu.memory_space<vmem>>, vector<1x128xf32>,
    %16 = arith.index_cast %arg0 : i32 to index
    %c1 = arith.constant 1 : index
    %17 = memref.load %arg2[%16, %c1] : memref<8x8xi32, #tpu.memory_space<smem>>
    %c1_8 = arith.constant 1 : index
    %c0_9 = arith.constant 0 : index
    %18 = vector.load %arg20[%c1_8, %c0_9] : memref<8x1xi32, #tpu.memory_space<vmem>>, vector<1x1xi32>
    %19 = vector.extract %18[0, 0] : i32 from vector<1x1xi32>
    %20 = arith.select %7, %17, %19 : i32
    %21 = arith.index_cast %20 : i32 to index
    %c0_10 = arith.constant 0 : index
    %22 = vector.load %arg6[%21, %c0_10] : memref<128x128xf32, #tpu.memory_space<vmem>>, vector<1x128xf32>
    %c1_11 = arith.constant 1 : index
    %c0_12 = arith.constant 0 : index
    %23 = vector.load %arg19[%c1_11, %c0_12] : memref<8x128xf32, #tpu.memory_space<vmem>>, vector<1x128xf32>
    tpu.vector_store %arg19[%c1_11, %c0_12], %22 {strides = array<i32>} : memref<8x128xf32, #tpu.memory_space<vmem>>, vector<1x128xf32>,
    %24 = arith.index_cast %arg0 : i32 to index
    %c2 = arith.constant 2 : index
    %25 = memref.load %arg2[%24, %c2] : memref<8x8xi32, #tpu.memory_space<smem>>
    %c2_13 = arith.constant 2 : index
    %c0_14 = arith.constant 0 : index
    %26 = vector.load %arg20[%c2_13, %c0_14] : memref<8x1xi32, #tpu.memory_space<vmem>>, vector<1x1xi32>
    %27 = vector.extract %26[0, 0] : i32 from vector<1x1xi32>
    %28 = arith.select %7, %25, %27 : i32
    %29 = arith.index_cast %28 : i32 to index
    %c0_15 = arith.constant 0 : index
    %30 = vector.load %arg6[%29, %c0_15] : memref<128x128xf32, #tpu.memory_space<vmem>>, vector<1x128xf32>
    %c2_16 = arith.constant 2 : index
    %c0_17 = arith.constant 0 : index
    %31 = vector.load %arg19[%c2_16, %c0_17] : memref<8x128xf32, #tpu.memory_space<vmem>>, vector<1x128xf32>
    tpu.vector_store %arg19[%c2_16, %c0_17], %30 {strides = array<i32>} : memref<8x128xf32, #tpu.memory_space<vmem>>, vector<1x128xf32>,
    %32 = arith.index_cast %arg0 : i32 to index
    %c3 = arith.constant 3 : index
    %33 = memref.load %arg2[%32, %c3] : memref<8x8xi32, #tpu.memory_space<smem>>
    %c3_18 = arith.constant 3 : index
    %c0_19 = arith.constant 0 : index
    %34 = vector.load %arg20[%c3_18, %c0_19] : memref<8x1xi32, #tpu.memory_space<vmem>>, vector<1x1xi32>
    %35 = vector.extract %34[0, 0] : i32 from vector<1x1xi32>
    %36 = arith.select %7, %33, %35 : i32
    %37 = arith.index_cast %36 : i32 to index
    %c0_20 = arith.constant 0 : index
    %38 = vector.load %arg6[%37, %c0_20] : memref<128x128xf32, #tpu.memory_space<vmem>>, vector<1x128xf32>
    %c3_21 = arith.constant 3 : index
    %c0_22 = arith.constant 0 : index
    %39 = vector.load %arg19[%c3_21, %c0_22] : memref<8x128xf32, #tpu.memory_space<vmem>>, vector<1x128xf32>
    tpu.vector_store %arg19[%c3_21, %c0_22], %38 {strides = array<i32>} : memref<8x128xf32, #tpu.memory_space<vmem>>, vector<1x128xf32>,
    %40 = arith.index_cast %arg0 : i32 to index
    %c4 = arith.constant 4 : index
    %41 = memref.load %arg2[%40, %c4] : memref<8x8xi32, #tpu.memory_space<smem>>
    %c4_23 = arith.constant 4 : index
    %c0_24 = arith.constant 0 : index
    %42 = vector.load %arg20[%c4_23, %c0_24] : memref<8x1xi32, #tpu.memory_space<vmem>>, vector<1x1xi32>
    %43 = vector.extract %42[0, 0] : i32 from vector<1x1xi32>
    %44 = arith.select %7, %41, %43 : i32
    %45 = arith.index_cast %44 : i32 to index
    %c0_25 = arith.constant 0 : index
    %46 = vector.load %arg6[%45, %c0_25] : memref<128x128xf32, #tpu.memory_space<vmem>>, vector<1x128xf32>
    %c4_26 = arith.constant 4 : index
    %c0_27 = arith.constant 0 : index
    %47 = vector.load %arg19[%c4_26, %c0_27] : memref<8x128xf32, #tpu.memory_space<vmem>>, vector<1x128xf32>
    tpu.vector_store %arg19[%c4_26, %c0_27], %46 {strides = array<i32>} : memref<8x128xf32, #tpu.memory_space<vmem>>, vector<1x128xf32>,
    %48 = arith.index_cast %arg0 : i32 to index
    %c5 = arith.constant 5 : index
    %49 = memref.load %arg2[%48, %c5] : memref<8x8xi32, #tpu.memory_space<smem>>
    %c5_28 = arith.constant 5 : index
    %c0_29 = arith.constant 0 : index
    %50 = vector.load %arg20[%c5_28, %c0_29] : memref<8x1xi32, #tpu.memory_space<vmem>>, vector<1x1xi32>
    %51 = vector.extract %50[0, 0] : i32 from vector<1x1xi32>
    %52 = arith.select %7, %49, %51 : i32
    %53 = arith.index_cast %52 : i32 to index
    %c0_30 = arith.constant 0 : index
    %54 = vector.load %arg6[%53, %c0_30] : memref<128x128xf32, #tpu.memory_space<vmem>>, vector<1x128xf32>
    %c5_31 = arith.constant 5 : index
    %c0_32 = arith.constant 0 : index
    %55 = vector.load %arg19[%c5_31, %c0_32] : memref<8x128xf32, #tpu.memory_space<vmem>>, vector<1x128xf32>
    tpu.vector_store %arg19[%c5_31, %c0_32], %54 {strides = array<i32>} : memref<8x128xf32, #tpu.memory_space<vmem>>, vector<1x128xf32>,
    %56 = arith.index_cast %arg0 : i32 to index
    %c6 = arith.constant 6 : index
    %57 = memref.load %arg2[%56, %c6] : memref<8x8xi32, #tpu.memory_space<smem>>
    %c6_33 = arith.constant 6 : index
    %c0_34 = arith.constant 0 : index
    %58 = vector.load %arg20[%c6_33, %c0_34] : memref<8x1xi32, #tpu.memory_space<vmem>>, vector<1x1xi32>
    %59 = vector.extract %58[0, 0] : i32 from vector<1x1xi32>
    %60 = arith.select %7, %57, %59 : i32
    %61 = arith.index_cast %60 : i32 to index
    %c0_35 = arith.constant 0 : index
    %62 = vector.load %arg6[%61, %c0_35] : memref<128x128xf32, #tpu.memory_space<vmem>>, vector<1x128xf32>
    %c6_36 = arith.constant 6 : index
    %c0_37 = arith.constant 0 : index
    %63 = vector.load %arg19[%c6_36, %c0_37] : memref<8x128xf32, #tpu.memory_space<vmem>>, vector<1x128xf32>
    tpu.vector_store %arg19[%c6_36, %c0_37], %62 {strides = array<i32>} : memref<8x128xf32, #tpu.memory_space<vmem>>, vector<1x128xf32>,
    %64 = arith.index_cast %arg0 : i32 to index
    %c7 = arith.constant 7 : index
    %65 = memref.load %arg2[%64, %c7] : memref<8x8xi32, #tpu.memory_space<smem>>
    %c7_38 = arith.constant 7 : index
    %c0_39 = arith.constant 0 : index
    %66 = vector.load %arg20[%c7_38, %c0_39] : memref<8x1xi32, #tpu.memory_space<vmem>>, vector<1x1xi32>
    %67 = vector.extract %66[0, 0] : i32 from vector<1x1xi32>
    %68 = arith.select %7, %65, %67 : i32
    %69 = arith.index_cast %68 : i32 to index
    %c0_40 = arith.constant 0 : index
    %70 = vector.load %arg6[%69, %c0_40] : memref<128x128xf32, #tpu.memory_space<vmem>>, vector<1x128xf32>
    %c7_41 = arith.constant 7 : index
    %c0_42 = arith.constant 0 : index
    %71 = vector.load %arg19[%c7_41, %c0_42] : memref<8x128xf32, #tpu.memory_space<vmem>>, vector<1x128xf32>
    tpu.vector_store %arg19[%c7_41, %c0_42], %70 {strides = array<i32>} : memref<8x128xf32, #tpu.memory_space<vmem>>, vector<1x128xf32>,
    %c0_43 = arith.constant 0 : index
    %c0_44 = arith.constant 0 : index
    %72 = vector.load %arg19[%c0_43, %c0_44] : memref<8x128xf32, #tpu.memory_space<vmem>>, vector<8x128xf32>
    %c0_45 = arith.constant 0 : index
    %c0_46 = arith.constant 0 : index
    %73 = vector.load %arg18[%c0_45, %c0_46] : memref<8x128xf32, #tpu.memory_space<vmem>>, vector<8x128xf32>
    %c0_47 = arith.constant 0 : index
    %c0_48 = arith.constant 0 : index
    %c0_49 = arith.constant 0 : index
    %74 = vector.load %arg4[%c0_47, %c0_48, %c0_49] : memref<8x8x128xf32, #tpu.memory_space<vmem>>, vector<8x8x128xf32>
    %c0_50 = arith.constant 0 : index
    %c0_51 = arith.constant 0 : index
    %c0_52 = arith.constant 0 : index
    %75 = vector.load %arg5[%c0_50, %c0_51, %c0_52] : memref<8x8x128xf32, #tpu.memory_space<vmem>>, vector<8x8x128xf32>
    %c0_53 = arith.constant 0 : index
    %c0_54 = arith.constant 0 : index
    %76 = vector.load %arg7[%c0_53, %c0_54] : memref<128x128xf32, #tpu.memory_space<vmem>>, vector<128x128xf32>
    %cst = arith.constant dense<0.000000e+00> : vector<8x128xf32>
    %77 = tpu.matmul %73, %76, %cst {dimension_numbers = #tpu.dot_dimension_numbers<[1], [0], [0], [1], [0, 0, 1, 1], [], []>} : vector<8x128xf32>, vector<128x128xf32>, vector<8x128xf32> -> vector<8x128xf32>
    %78 = vector.shape_cast %77 : vector<8x128xf32> to vector<8x1x128xf32>
    %79 = vector.broadcast %78 : vector<8x1x128xf32> to vector<8x8x128xf32>
    %80 = arith.addf %75, %79 : vector<8x8x128xf32>
    %81 = math.tanh %80 : vector<8x8x128xf32>
    %c0_55 = arith.constant 0 : index
    %c0_56 = arith.constant 0 : index
    %82 = vector.load %arg8[%c0_55, %c0_56] : memref<1x128xf32, #tpu.memory_space<vmem>>, vector<1x128xf32>
    %83 = vector.shape_cast %82 : vector<1x128xf32> to vector<1x1x128xf32>
    %84 = vector.broadcast %83 : vector<1x1x128xf32> to vector<8x8x128xf32>
    %85 = arith.mulf %81, %84 : vector<8x8x128xf32>
    %cst_57 = arith.constant dense<0.000000e+00> : vector<8x8xf32>
    %86 = vector.multi_reduction <add>, %85, %cst_57 [2] : vector<8x8x128xf32> to vector<8x8xf32>
    %cst_58 = arith.constant dense<0xFF800000> : vector<8xf32>
    %87 = vector.multi_reduction <maximumf>, %86, %cst_58 [1] : vector<8x8xf32> to vector<8xf32>
    %88 = vector.shape_cast %87 : vector<8xf32> to vector<8x1xf32>
    %89 = vector.broadcast %88 : vector<8x1xf32> to vector<8x8xf32>
    %90 = arith.subf %86, %89 : vector<8x8xf32>
    %91 = math.exp %90 : vector<8x8xf32>
    %cst_59 = arith.constant dense<0.000000e+00> : vector<8xf32>
    %92 = vector.multi_reduction <add>, %91, %cst_59 [1] : vector<8x8xf32> to vector<8xf32>
    %93 = vector.shape_cast %92 : vector<8xf32> to vector<8x1xf32>
    %94 = vector.broadcast %93 : vector<8x1xf32> to vector<8x8xf32>
    %95 = arith.divf %91, %94 : vector<8x8xf32>
    %96 = vector.shape_cast %95 : vector<8x8xf32> to vector<8x8x1xf32>
    %97 = vector.broadcast %96 : vector<8x8x1xf32> to vector<8x8x128xf32>
    %98 = arith.mulf %97, %74 : vector<8x8x128xf32>
    %cst_60 = arith.constant dense<0.000000e+00> : vector<8x128xf32>
    %99 = vector.multi_reduction <add>, %98, %cst_60 [1] : vector<8x8x128xf32> to vector<8x128xf32>
    %c0_61 = arith.constant 0 : index
    %c0_62 = arith.constant 0 : index
    %100 = vector.load %arg9[%c0_61, %c0_62] : memref<128x384xf32, #tpu.memory_space<vmem>>, vector<128x384xf32>
    %cst_63 = arith.constant dense<0.000000e+00> : vector<8x384xf32>
    %101 = tpu.matmul %72, %100, %cst_63 {dimension_numbers = #tpu.dot_dimension_numbers<[1], [0], [0], [1], [0, 0, 1, 1], [], []>} : vector<8x128xf32>, vector<128x384xf32>, vector<8x384xf32> -> vector<8x384xf32>
    %c0_64 = arith.constant 0 : index
    %c0_65 = arith.constant 0 : index
    %102 = vector.load %arg10[%c0_64, %c0_65] : memref<128x384xf32, #tpu.memory_space<vmem>>, vector<128x384xf32>
    %cst_66 = arith.constant dense<0.000000e+00> : vector<8x384xf32>
    %103 = tpu.matmul %99, %102, %cst_66 {dimension_numbers = #tpu.dot_dimension_numbers<[1], [0], [0], [1], [0, 0, 1, 1], [], []>} : vector<8x128xf32>, vector<128x384xf32>, vector<8x384xf32> -> vector<8x384xf32>
    %104 = arith.addf %101, %103 : vector<8x384xf32>
    %c0_67 = arith.constant 0 : index
    %c0_68 = arith.constant 0 : index
    %105 = vector.load %arg12[%c0_67, %c0_68] : memref<1x384xf32, #tpu.memory_space<vmem>>, vector<1x384xf32>
    %106 = vector.broadcast %105 : vector<1x384xf32> to vector<8x384xf32>
    %107 = arith.addf %104, %106 : vector<8x384xf32>
    %c0_69 = arith.constant 0 : index
    %c0_70 = arith.constant 0 : index
    %108 = vector.load %arg11[%c0_69, %c0_70] : memref<128x384xf32, #tpu.memory_space<vmem>>, vector<128x384xf32>
    %cst_71 = arith.constant dense<0.000000e+00> : vector<8x384xf32>
    %109 = tpu.matmul %73, %108, %cst_71 {dimension_numbers = #tpu.dot_dimension_numbers<[1], [0], [0], [1], [0, 0, 1, 1], [], []>} : vector<8x128xf32>, vector<128x384xf32>, vector<8x384xf32> -> vector<8x384xf32>
    %c0_72 = arith.constant 0 : index
    %c0_73 = arith.constant 0 : index
    %110 = vector.load %arg13[%c0_72, %c0_73] : memref<1x384xf32, #tpu.memory_space<vmem>>, vector<1x384xf32>
    %111 = vector.broadcast %110 : vector<1x384xf32> to vector<8x384xf32>
    %112 = arith.addf %109, %111 : vector<8x384xf32>
    %113 = vector.extract_strided_slice %107 {offsets = [0, 0], sizes = [8, 128], strides = [1, 1]} : vector<8x384xf32> to vector<8x128xf32>
    %114 = vector.extract_strided_slice %112 {offsets = [0, 0], sizes = [8, 128], strides = [1, 1]} : vector<8x384xf32> to vector<8x128xf32>
    %115 = arith.addf %113, %114 : vector<8x128xf32>
    %116 = arith.negf %115 : vector<8x128xf32>
    %117 = math.exp %116 : vector<8x128xf32>
    %cst_74 = arith.constant 1.000000e+00 : f32
    %118 = vector.broadcast %cst_74 : f32 to vector<8x128xf32>
    %119 = arith.addf %118, %117 : vector<8x128xf32>
    %120 = arith.divf %118, %119 : vector<8x128xf32>
    %121 = vector.extract_strided_slice %107 {offsets = [0, 128], sizes = [8, 128], strides = [1, 1]} : vector<8x384xf32> to vector<8x128xf32>
    %122 = vector.extract_strided_slice %112 {offsets = [0, 128], sizes = [8, 128], strides = [1, 1]} : vector<8x384xf32> to vector<8x128xf32>
    %123 = arith.addf %121, %122 : vector<8x128xf32>
    %124 = arith.negf %123 : vector<8x128xf32>
    %125 = math.exp %124 : vector<8x128xf32>
    %cst_75 = arith.constant 1.000000e+00 : f32
    %126 = vector.broadcast %cst_75 : f32 to vector<8x128xf32>
    %127 = arith.addf %126, %125 : vector<8x128xf32>
    %128 = arith.divf %126, %127 : vector<8x128xf32>
    %129 = vector.extract_strided_slice %107 {offsets = [0, 256], sizes = [8, 128], strides = [1, 1]} : vector<8x384xf32> to vector<8x128xf32>
    %130 = vector.extract_strided_slice %112 {offsets = [0, 256], sizes = [8, 128], strides = [1, 1]} : vector<8x384xf32> to vector<8x128xf32>
    %131 = arith.mulf %120, %130 : vector<8x128xf32>
    %132 = arith.addf %129, %131 : vector<8x128xf32>
    %133 = math.tanh %132 : vector<8x128xf32>
    %cst_76 = arith.constant 1.000000e+00 : f32
    %134 = vector.broadcast %cst_76 : f32 to vector<8x128xf32>
    %135 = arith.subf %134, %128 : vector<8x128xf32>
    %136 = arith.mulf %135, %133 : vector<8x128xf32>
    %137 = arith.mulf %128, %73 : vector<8x128xf32>
    %138 = arith.addf %136, %137 : vector<8x128xf32>
    %c0_77 = arith.constant 0 : index
    %c0_78 = arith.constant 0 : index
    %139 = vector.load %arg14[%c0_77, %c0_78] : memref<128x128xf32, #tpu.memory_space<vmem>>, vector<128x128xf32>
    %cst_79 = arith.constant dense<0.000000e+00> : vector<8x128xf32>
    %140 = tpu.matmul %138, %139, %cst_79 {dimension_numbers = #tpu.dot_dimension_numbers<[1], [0], [0], [1], [0, 0, 1, 1], [], []>} : vector<8x128xf32>, vector<128x128xf32>, vector<8x128xf32> -> vector<8x128xf32>
    %c0_80 = arith.constant 0 : index
    %c0_81 = arith.constant 0 : index
    %141 = vector.load %arg15[%c0_80, %c0_81] : memref<128x128xf32, #tpu.memory_space<vmem>>, vector<128x128xf32>
    %cst_82 = arith.constant dense<0.000000e+00> : vector<8x128xf32>
    %142 = tpu.matmul %99, %141, %cst_82 {dimension_numbers = #tpu.dot_dimension_numbers<[1], [0], [0], [1], [0, 0, 1, 1], [], []>} : vector<8x128xf32>, vector<128x128xf32>, vector<8x128xf32> -> vector<8x128xf32>
    %143 = arith.addf %140, %142 : vector<8x128xf32>
    %c0_83 = arith.constant 0 : index
    %c0_84 = arith.constant 0 : index
    %144 = vector.load %arg16[%c0_83, %c0_84] : memref<1x128xf32, #tpu.memory_space<vmem>>, vector<1x128xf32>
    %145 = vector.broadcast %144 : vector<1x128xf32> to vector<8x128xf32>
    %146 = arith.addf %143, %145 : vector<8x128xf32>
    %c0_85 = arith.constant 0 : index
    %c0_86 = arith.constant 0 : index
    %c0_87 = arith.constant 0 : index
    %147 = vector.load %arg17[%c0_85, %c0_86, %c0_87] : memref<1x8x128xf32, #tpu.memory_space<vmem>>, vector<1x8x128xf32>
    %148 = vector.shape_cast %147 : vector<1x8x128xf32> to vector<8x128xf32>
    %149 = vector.shape_cast %146 : vector<8x128xf32> to vector<1x8x128xf32>
    tpu.vector_store %arg17[%c0_85, %c0_86, %c0_87], %149 {strides = array<i32>} : memref<1x8x128xf32, #tpu.memory_space<vmem>>, vector<1x8x128xf32>,
    %c0_88 = arith.constant 0 : index
    %c0_89 = arith.constant 0 : index
    %150 = vector.load %arg18[%c0_88, %c0_89] : memref<8x128xf32, #tpu.memory_space<vmem>>, vector<8x128xf32>
    tpu.vector_store %arg18[%c0_88, %c0_89], %138 {strides = array<i32>} : memref<8x128xf32, #tpu.memory_space<vmem>>, vector<8x128xf32>,
    %151 = tpu.iota {dimensions = array<i32: 1>} : vector<8x128xi32>
    %cst_90 = arith.constant dense<0xFF800000> : vector<8xf32>
    %152 = vector.multi_reduction <maximumf>, %146, %cst_90 [1] : vector<8x128xf32> to vector<8xf32>
    %153 = vector.shape_cast %152 : vector<8xf32> to vector<8x1xf32>
    %154 = vector.broadcast %153 : vector<8x1xf32> to vector<8x128xf32>
    %155 = arith.cmpf oeq, %146, %154 : vector<8x128xf32>
    %c128_i32 = arith.constant 128 : i32
    %156 = vector.broadcast %c128_i32 : i32 to vector<8x128xi32>
    %157 = arith.select %155, %151, %156 : vector<8x128xi1>, vector<8x128xi32>
    %cst_91 = arith.constant dense<2147483647> : vector<8xi32>
    %158 = vector.multi_reduction <minsi>, %157, %cst_91 [1] : vector<8x128xi32> to vector<8xi32>
    %159 = vector.shape_cast %158 : vector<8xi32> to vector<8x1xi32>
    %c0_92 = arith.constant 0 : index
    %c0_93 = arith.constant 0 : index
    %160 = vector.load %arg20[%c0_92, %c0_93] : memref<8x1xi32, #tpu.memory_space<vmem>>, vector<8x1xi32>
    tpu.vector_store %arg20[%c0_92, %c0_93], %159 {strides = array<i32>} : memref<8x1xi32, #tpu.memory_space<vmem>>, vector<8x1xi32>,
    return
  }
  func.func @transform_0(%arg0: i32, %arg1: memref<8xi32, #tpu.memory_space<smem>>, %arg2: memref<8x8xi32, #tpu.memory_space<smem>>) -> (i32, i32) {
    %c0_i32 = arith.constant 0 : i32
    %c0_i32_0 = arith.constant 0 : i32
    %c0_i32_1 = arith.constant 0 : i32
    return %c0_i32, %c0_i32_0 : i32, i32
  }
  func.func @transform_1(%arg0: i32, %arg1: memref<8xi32, #tpu.memory_space<smem>>, %arg2: memref<8x8xi32, #tpu.memory_space<smem>>) -> (i32, i32, i32) {
    %c0_i32 = arith.constant 0 : i32
    %c0_i32_0 = arith.constant 0 : i32
    %c0_i32_1 = arith.constant 0 : i32
    %c0_i32_2 = arith.constant 0 : i32
    return %c0_i32, %c0_i32_0, %c0_i32_1 : i32, i32, i32
  }
  func.func @transform_2(%arg0: i32, %arg1: memref<8xi32, #tpu.memory_space<smem>>, %arg2: memref<8x8xi32, #tpu.memory_space<smem>>) -> (i32, i32, i32) {
    %c0_i32 = arith.constant 0 : i32
    %c0_i32_0 = arith.constant 0 : i32
    %c0_i32_1 = arith.constant 0 : i32
    %c0_i32_2 = arith.constant 0 : i32
    return %c0_i32, %c0_i32_0, %c0_i32_1 : i32, i32, i32
  }
  func.func @transform_3(%arg0: i32, %arg1: memref<8xi32, #tpu.memory_space<smem>>, %arg2: memref<8x8xi32, #tpu.memory_space<smem>>) -> (i32, i32) {
    %c0_i32 = arith.constant 0 : i32
    %c0_i32_0 = arith.constant 0 : i32
    %c0_i32_1 = arith.constant 0 : i32
    return %c0_i32, %c0_i32_0 : i32, i32
  }
  func.func @transform_4(%arg0: i32, %arg1: memref<8xi32, #tpu.memory_space<smem>>, %arg2: memref<8x8xi32, #tpu.memory_space<smem>>) -> (i32, i32) {
    %c0_i32 = arith.constant 0 : i32
    %c0_i32_0 = arith.constant 0 : i32
    %c0_i32_1 = arith.constant 0 : i32
    return %c0_i32, %c0_i32_0 : i32, i32
  }
  func.func @transform_5(%arg0: i32, %arg1: memref<8xi32, #tpu.memory_space<smem>>, %arg2: memref<8x8xi32, #tpu.memory_space<smem>>) -> (i32, i32) {
    %c0_i32 = arith.constant 0 : i32
    %c0_i32_0 = arith.constant 0 : i32
    %c0_i32_1 = arith.constant 0 : i32
    return %c0_i32, %c0_i32_0 : i32, i32
  }
  func.func @transform_6(%arg0: i32, %arg1: memref<8xi32, #tpu.memory_space<smem>>, %arg2: memref<8x8xi32, #tpu.memory_space<smem>>) -> (i32, i32) {
    %c0_i32 = arith.constant 0 : i32
    %c0_i32_0 = arith.constant 0 : i32
    %c0_i32_1 = arith.constant 0 : i32
    return %c0_i32, %c0_i32_0 : i32, i32
  }
  func.func @transform_7(%arg0: i32, %arg1: memref<8xi32, #tpu.memory_space<smem>>, %arg2: memref<8x8xi32, #tpu.memory_space<smem>>) -> (i32, i32) {
    %c0_i32 = arith.constant 0 : i32
    %c0_i32_0 = arith.constant 0 : i32
    %c0_i32_1 = arith.constant 0 : i32
    return %c0_i32, %c0_i32_0 : i32, i32
  }
  func.func @transform_8(%arg0: i32, %arg1: memref<8xi32, #tpu.memory_space<smem>>, %arg2: memref<8x8xi32, #tpu.memory_space<smem>>) -> (i32, i32) {
    %c0_i32 = arith.constant 0 : i32
    %c0_i32_0 = arith.constant 0 : i32
    %c0_i32_1 = arith.constant 0 : i32
    return %c0_i32, %c0_i32_0 : i32, i32
  }
  func.func @transform_9(%arg0: i32, %arg1: memref<8xi32, #tpu.memory_space<smem>>, %arg2: memref<8x8xi32, #tpu.memory_space<smem>>) -> (i32, i32) {
    %c0_i32 = arith.constant 0 : i32
    %c0_i32_0 = arith.constant 0 : i32
    %c0_i32_1 = arith.constant 0 : i32
    return %c0_i32, %c0_i32_0 : i32, i32
  }
  func.func @transform_10(%arg0: i32, %arg1: memref<8xi32, #tpu.memory_space<smem>>, %arg2: memref<8x8xi32, #tpu.memory_space<smem>>) -> (i32, i32) {
    %c0_i32 = arith.constant 0 : i32
    %c0_i32_0 = arith.constant 0 : i32
    %c0_i32_1 = arith.constant 0 : i32
    return %c0_i32, %c0_i32_0 : i32, i32
  }
  func.func @transform_11(%arg0: i32, %arg1: memref<8xi32, #tpu.memory_space<smem>>, %arg2: memref<8x8xi32, #tpu.memory_space<smem>>) -> (i32, i32) {
    %c0_i32 = arith.constant 0 : i32
    %c0_i32_0 = arith.constant 0 : i32
    %c0_i32_1 = arith.constant 0 : i32
    return %c0_i32, %c0_i32_0 : i32, i32
  }
  func.func @transform_12(%arg0: i32, %arg1: memref<8xi32, #tpu.memory_space<smem>>, %arg2: memref<8x8xi32, #tpu.memory_space<smem>>) -> (i32, i32) {
    %c0_i32 = arith.constant 0 : i32
    %c0_i32_0 = arith.constant 0 : i32
    %c0_i32_1 = arith.constant 0 : i32
    return %c0_i32, %c0_i32_0 : i32, i32
  }
  func.func @transform_13(%arg0: i32, %arg1: memref<8xi32, #tpu.memory_space<smem>>, %arg2: memref<8x8xi32, #tpu.memory_space<smem>>) -> (i32, i32) {
    %c0_i32 = arith.constant 0 : i32
    %c0_i32_0 = arith.constant 0 : i32
    %c0_i32_1 = arith.constant 0 : i32
    return %c0_i32, %c0_i32_0 : i32, i32
  }
  func.func @transform_14(%arg0: i32, %arg1: memref<8xi32, #tpu.memory_space<smem>>, %arg2: memref<8x8xi32, #tpu.memory_space<smem>>) -> (i32, i32, i32) {
    %c0_i32 = arith.constant 0 : i32
    %c0_i32_0 = arith.constant 0 : i32
    %c0_i32_1 = arith.constant 0 : i32
    return %arg0, %c0_i32, %c0_i32_0 : i32, i32, i32
  }
}

</mosaic_0001>

<llo_original>
// kernel: attn_seq2seq_forward.2
$region0: #{attn_seq2seq_forward.2}
  #allocation0 [shape = 'u32[]', space=smem, size = 0x4, offset = 0x4, fixed_abs, tag = 'smem constant byte address 0x4 - core index']
  #allocation1 [shape = 'u32[144,128]{1,0:T(1,128)}', space=vmem, size = 0x12000, scoped, tag = 'internal scratch']
  #allocation2 [shape = 'f32[8,128]{1,0:T(8,128)}', space=vmem, size = 0x1000, scoped, tag = 'scratch operand']
  #allocation3 [shape = 'f32[8,128]{1,0:T(8,128)}', space=vmem, size = 0x1000, scoped, tag = 'scratch operand']
  %s0 = inlined_call_operand.vmem [shape: f32[8,8,512], index: 0, kind: input, shape index: {}]
  %s1 = inlined_call_operand.vmem [shape: f32[128,512], index: 1, kind: input, shape index: {}]
  %s2 = inlined_call_operand.vmem [shape: f32[8,8,128], index: 2, kind: output, shape index: {0}]
  %s3 = inlined_call_operand.vmem [shape: f32[8,128], index: 3, kind: output, shape index: {1}]
  %4 = xla_tuple %s2, %s3
  %s5 = sld [smem:[#allocation0]]
  $region30: #{attn_seq2seq_forward.2} parent=0
    _
  %s7 = ssub.s32 1, %s5
  %s8 = scalar_select 0, %s7, %s5
  // Predicated region
  $region2: #{attn_seq2seq_forward.2} parent=0 // pred_check
    _
  $region3: #{attn_seq2seq_forward.2} parent=0 // pred_check_branch
    %10 = sbr.rel (0) target = $region5
  $region4: #{attn_seq2seq_forward.2} parent=0 // pred_region
    _
  $region5: #{attn_seq2seq_forward.2} parent=0 // pred_fallthru
    _
  // Predicated region
  $region6: #{attn_seq2seq_forward.2} parent=0 // pred_check
    _
  $region7: #{attn_seq2seq_forward.2} parent=0 // pred_check_branch
    %12 = sbr.rel (0) target = $region9
  $region8: #{attn_seq2seq_forward.2} parent=0 // pred_region
    _
  $region9: #{attn_seq2seq_forward.2} parent=0 // pred_fallthru
    _
  %p13 = scmp.eq.s32.totalorder 0, 0
  // Predicated region
  $region10: #{attn_seq2seq_forward.2} parent=0 // pred_check
    %p14 = pneg %p13
  $region11: #{attn_seq2seq_forward.2} parent=0 // pred_check_branch
    %16 = sbr.rel (%p14) target = $region13
  $region12: #{attn_seq2seq_forward.2} parent=0 // pred_region
    %17 = vst [vmem:[#allocation2] sm:$0xff] 0.0
    %18 = vst [vmem:[#allocation3] sm:$0xff] 0.0
  $region13: #{attn_seq2seq_forward.2} parent=0 // pred_fallthru
    _
  %v19 = vld [vmem:[#allocation2] sm:$0xff]
  %v20 = vld [vmem:[#allocation3] sm:$0xff]
  %v21 = vld [vmem:[%s1] sm:$0xff]
  %v22 = vld [vmem:[%s1 + $0x8] sm:$0xff]
  %v23 = vld [vmem:[%s1 + $0x10] sm:$0xff]
  %v24 = vld [vmem:[%s1 + $0x18] sm:$0xff]
  %v25 = vld [vmem:[%s1 + $0x20] sm:$0xff]
  %v26 = vld [vmem:[%s1 + $0x28] sm:$0xff]
  %v27 = vld [vmem:[%s1 + $0x30] sm:$0xff]
  %v28 = vld [vmem:[%s1 + $0x38] sm:$0xff]
  %v29 = vld [vmem:[%s1 + $0x40] sm:$0xff]
  %v30 = vld [vmem:[%s1 + $0x48] sm:$0xff]
  %v31 = vld [vmem:[%s1 + $0x50] sm:$0xff]
  %v32 = vld [vmem:[%s1 + $0x58] sm:$0xff]
  %v33 = vld [vmem:[%s1 + $0x60] sm:$0xff]
  %v34 = vld [vmem:[%s1 + $0x68] sm:$0xff]
  %v35 = vld [vmem:[%s1 + $0x70] sm:$0xff]
  %v36 = vld [vmem:[%s1 + $0x78] sm:$0xff]
  %v37 = vld [vmem:[%s1 + $0x80] sm:$0xff]
  %v38 = vld [vmem:[%s1 + $0x88] sm:$0xff]
  %v39 = vld [vmem:[%s1 + $0x90] sm:$0xff]
  %v40 = vld [vmem:[%s1 + $0x98] sm:$0xff]
  %v41 = vld [vmem:[%s1 + $0xa0] sm:$0xff]
  %v42 = vld [vmem:[%s1 + $0xa8] sm:$0xff]
  %v43 = vld [vmem:[%s1 + $0xb0] sm:$0xff]
  %v44 = vld [vmem:[%s1 + $0xb8] sm:$0xff]
  %v45 = vld [vmem:[%s1 + $0xc0] sm:$0xff]
  %v46 = vld [vmem:[%s1 + $0xc8] sm:$0xff]
  %v47 = vld [vmem:[%s1 + $0xd0] sm:$0xff]
  %v48 = vld [vmem:[%s1 + $0xd8] sm:$0xff]
  %v49 = vld [vmem:[%s1 + $0xe0] sm:$0xff]
  %v50 = vld [vmem:[%s1 + $0xe8] sm:$0xff]
  %v51 = vld [vmem:[%s1 + $0xf0] sm:$0xff]
  %v52 = vld [vmem:[%s1 + $0xf8] sm:$0xff]
  %v53 = vld [vmem:[%s1 + $0x100] sm:$0xff]
  %v54 = vld [vmem:[%s1 + $0x108] sm:$0xff]
  %v55 = vld [vmem:[%s1 + $0x110] sm:$0xff]
  %v56 = vld [vmem:[%s1 + $0x118] sm:$0xff]
  %v57 = vld [vmem:[%s1 + $0x120] sm:$0xff]
  %v58 = vld [vmem:[%s1 + $0x128] sm:$0xff]
  %v59 = vld [vmem:[%s1 + $0x130] sm:$0xff]
  %v60 = vld [vmem:[%s1 + $0x138] sm:$0xff]
  %v61 = vld [vmem:[%s1 + $0x140] sm:$0xff]
  %v62 = vld [vmem:[%s1 + $0x148] sm:$0xff]
  %v63 = vld [vmem:[%s1 + $0x150] sm:$0xff]
  %v64 = vld [vmem:[%s1 + $0x158] sm:$0xff]
  %v65 = vld [vmem:[%s1 + $0x160] sm:$0xff]
  %v66 = vld [vmem:[%s1 + $0x168] sm:$0xff]
  %v67 = vld [vmem:[%s1 + $0x170] sm:$0xff]
  %v68 = vld [vmem:[%s1 + $0x178] sm:$0xff]
  %v69 = vld [vmem:[%s1 + $0x180] sm:$0xff]
  %v70 = vld [vmem:[%s1 + $0x188] sm:$0xff]
  %v71 = vld [vmem:[%s1 + $0x190] sm:$0xff]
  %v72 = vld [vmem:[%s1 + $0x198] sm:$0xff]
  %v73 = vld [vmem:[%s1 + $0x1a0] sm:$0xff]
  %v74 = vld [vmem:[%s1 + $0x1a8] sm:$0xff]
  %v75 = vld [vmem:[%s1 + $0x1b0] sm:$0xff]
  %v76 = vld [vmem:[%s1 + $0x1b8] sm:$0xff]
  %v77 = vld [vmem:[%s1 + $0x1c0] sm:$0xff]
  %v78 = vld [vmem:[%s1 + $0x1c8] sm:$0xff]
  %v79 = vld [vmem:[%s1 + $0x1d0] sm:$0xff]
  %v80 = vld [vmem:[%s1 + $0x1d8] sm:$0xff]
  %v81 = vld [vmem:[%s1 + $0x1e0] sm:$0xff]
  %v82 = vld [vmem:[%s1 + $0x1e8] sm:$0xff]
  %v83 = vld [vmem:[%s1 + $0x1f0] sm:$0xff]
  %v84 = vld [vmem:[%s1 + $0x1f8] sm:$0xff]
  %v85 = vld [vmem:[%s0] sm:$0xff]
  %v86 = vld [vmem:[%s0 + $0x8] sm:$0xff]
  %v87 = vld [vmem:[%s0 + $0x10] sm:$0xff]
  %v88 = vld [vmem:[%s0 + $0x18] sm:$0xff]
  %89 = vmatprep.subr.mxu0 %v82
  %90 = vmatpush1.msra.mxu0 %v81
  %91 = vmatprep.subr.mxu0 %v78
  %92 = vmatpush1.msra.mxu0 %v77
  %93 = vmatprep.subr.mxu0 %v74
  %94 = vmatpush1.msra.mxu0 %v73
  %95 = vmatprep.subr.mxu0 %v70
  %96 = vmatpush1.msra.mxu0 %v69
  %97 = vmatprep.subr.mxu0 %v66
  %98 = vmatpush1.msra.mxu0 %v65
  %99 = vmatprep.subr.mxu0 %v62
  %100 = vmatpush1.msra.mxu0 %v61
  %101 = vmatprep.subr.mxu0 %v58
  %102 = vmatpush1.msra.mxu0 %v57
  %103 = vmatprep.subr.mxu0 %v54
  %104 = vmatpush1.msra.mxu0 %v53
  %105 = vmatprep.subr.mxu0 %v50
  %106 = vmatpush1.msra.mxu0 %v49
  %107 = vmatprep.subr.mxu0 %v46
  %108 = vmatpush1.msra.mxu0 %v45
  %109 = vmatprep.subr.mxu0 %v42
  %110 = vmatpush1.msra.mxu0 %v41
  %111 = vmatprep.subr.mxu0 %v38
  %112 = vmatpush1.msra.mxu0 %v37
  %113 = vmatprep.subr.mxu0 %v34
  %114 = vmatpush1.msra.mxu0 %v33
  %115 = vmatprep.subr.mxu0 %v30
  %116 = vmatpush1.msra.mxu0 %v29
  %117 = vmatprep.subr.mxu0 %v26
  %118 = vmatpush1.msra.mxu0 %v25
  %119 = vmatprep.subr.mxu0 %v22
  %120 = vmatpush1.msra.mxu0 %v21
  %121 = vmatprep.subr.mxu0 0.0
  %122 = vmatpush2.msra.mxu0 0.0
  %123 = vmatprep.subr.mxu0 0.0
  %124 = vmatpush2.msra.mxu0 0.0
  %125 = vmatprep.subr.mxu0 0.0
  %126 = vmatpush2.msra.mxu0 0.0
  %127 = vmatprep.subr.mxu0 0.0
  %128 = vmatpush2.msra.mxu0 0.0
  %129 = vmatprep.subr.mxu0 0.0
  %130 = vmatpush2.msra.mxu0 0.0
  %131 = vmatprep.subr.mxu0 0.0
  %132 = vmatpush2.msra.mxu0 0.0
  %133 = vmatprep.subr.mxu0 0.0
  %134 = vmatpush2.msra.mxu0 0.0
  %135 = vmatprep.subr.mxu0 0.0
  %136 = vmatpush2.msra.mxu0 0.0
  %137 = vmatprep.subr.mxu0 0.0
  %138 = vmatpush2.msra.mxu0 0.0
  %139 = vmatprep.subr.mxu0 0.0
  %140 = vmatpush2.msra.mxu0 0.0
  %141 = vmatprep.subr.mxu0 0.0
  %142 = vmatpush2.msra.mxu0 0.0
  %143 = vmatprep.subr.mxu0 0.0
  %144 = vmatpush2.msra.mxu0 0.0
  %145 = vmatprep.subr.mxu0 0.0
  %146 = vmatpush2.msra.mxu0 0.0
  %147 = vmatprep.subr.mxu0 0.0
  %148 = vmatpush2.msra.mxu0 0.0
  %149 = vmatprep.subr.mxu0 0.0
  %150 = vmatpush2.msra.mxu0 0.0
  %151 = vmatprep.subr.mxu0 0.0
  %152 = vmatpush2.msra.mxu0 0.0
  %153 = vmatprep.mubr.f32.mxu0 0.0
  %154 = vmatmul.mubr.f32.gmra.mxu0 %v19
  %v155 = vpop.f32.mrf.mxu0
  %v156 = vadd.f32 0.0, %v155
  %v157 = vpop.f32.mrf.mxu0
  %v158 = vadd.f32 0.0, %v157
  %159 = vdwg.mxu0
  %160 = vmatprep.subr.mxu0 %v84
  %161 = vmatpush1.msra.mxu0 %v83
  %162 = vmatprep.subr.mxu0 %v80
  %163 = vmatpush1.msra.mxu0 %v79
  %164 = vmatprep.subr.mxu0 %v76
  %165 = vmatpush1.msra.mxu0 %v75
  %166 = vmatprep.subr.mxu0 %v72
  %167 = vmatpush1.msra.mxu0 %v71
  %168 = vmatprep.subr.mxu0 %v68
  %169 = vmatpush1.msra.mxu0 %v67
  %170 = vmatprep.subr.mxu0 %v64
  %171 = vmatpush1.msra.mxu0 %v63
  %172 = vmatprep.subr.mxu0 %v60
  %173 = vmatpush1.msra.mxu0 %v59
  %174 = vmatprep.subr.mxu0 %v56
  %175 = vmatpush1.msra.mxu0 %v55
  %176 = vmatprep.subr.mxu0 %v52
  %177 = vmatpush1.msra.mxu0 %v51
  %178 = vmatprep.subr.mxu0 %v48
  %179 = vmatpush1.msra.mxu0 %v47
  %180 = vmatprep.subr.mxu0 %v44
  %181 = vmatpush1.msra.mxu0 %v43
  %182 = vmatprep.subr.mxu0 %v40
  %183 = vmatpush1.msra.mxu0 %v39
  %184 = vmatprep.subr.mxu0 %v36
  %185 = vmatpush1.msra.mxu0 %v35
  %186 = vmatprep.subr.mxu0 %v32
  %187 = vmatpush1.msra.mxu0 %v31
  %188 = vmatprep.subr.mxu0 %v28
  %189 = vmatpush1.msra.mxu0 %v27
  %190 = vmatprep.subr.mxu0 %v24
  %191 = vmatpush1.msra.mxu0 %v23
  %192 = vmatprep.subr.mxu0 0.0
  %193 = vmatpush2.msra.mxu0 0.0
  %194 = vmatprep.subr.mxu0 0.0
  %195 = vmatpush2.msra.mxu0 0.0
  %196 = vmatprep.subr.mxu0 0.0
  %197 = vmatpush2.msra.mxu0 0.0
  %198 = vmatprep.subr.mxu0 0.0
  %199 = vmatpush2.msra.mxu0 0.0
  %200 = vmatprep.subr.mxu0 0.0
  %201 = vmatpush2.msra.mxu0 0.0
  %202 = vmatprep.subr.mxu0 0.0
  %203 = vmatpush2.msra.mxu0 0.0
  %204 = vmatprep.subr.mxu0 0.0
  %205 = vmatpush2.msra.mxu0 0.0
  %206 = vmatprep.subr.mxu0 0.0
  %207 = vmatpush2.msra.mxu0 0.0
  %208 = vmatprep.subr.mxu0 0.0
  %209 = vmatpush2.msra.mxu0 0.0
  %210 = vmatprep.subr.mxu0 0.0
  %211 = vmatpush2.msra.mxu0 0.0
  %212 = vmatprep.subr.mxu0 0.0
  %213 = vmatpush2.msra.mxu0 0.0
  %214 = vmatprep.subr.mxu0 0.0
  %215 = vmatpush2.msra.mxu0 0.0
  %216 = vmatprep.subr.mxu0 0.0
  %217 = vmatpush2.msra.mxu0 0.0
  %218 = vmatprep.subr.mxu0 0.0
  %219 = vmatpush2.msra.mxu0 0.0
  %220 = vmatprep.subr.mxu0 0.0
  %221 = vmatpush2.msra.mxu0 0.0
  %222 = vmatprep.subr.mxu0 0.0
  %223 = vmatpush2.msra.mxu0 0.0
  %224 = vmatprep.mubr.f32.mxu0 0.0
  %225 = vmatmul.mubr.f32.gmra.mxu0 %v19
  %v226 = vpop.f32.mrf.mxu0
  %v227 = vadd.f32 0.0, %v226
  %v228 = vpop.f32.mrf.mxu0
  %v229 = vadd.f32 0.0, %v228
  %230 = vdwg.mxu0
  %v231 = vadd.f32 %v85, %v156
  %v232 = vadd.f32 %v86, %v158
  %v233 = vadd.f32 %v87, %v227
  %v234 = vadd.f32 %v88, %v229
  %v235 = vxor.u32 %v231, 2147483648
  %v236 = vmul.f32 %v235, 1.442695
  %v237 = vpow.pop %v236
  %v238 = vadd.f32 %v237, 1.0
  %v239 = vrcp.pop %v238
  %v240 = vmul.f32 1.0, %v239
  %v241 = vxor.u32 %v232, 2147483648
  %v242 = vmul.f32 %v241, 1.442695
  %v243 = vpow.pop %v242
  %v244 = vadd.f32 %v243, 1.0
  %v245 = vrcp.pop %v244
  %v246 = vmul.f32 1.0, %v245
  %v247 = vtanh.pop %v233
  %v248 = vxor.u32 %v234, 2147483648
  %v249 = vmul.f32 %v248, 1.442695
  %v250 = vpow.pop %v249
  %v251 = vadd.f32 %v250, 1.0
  %v252 = vrcp.pop %v251
  %v253 = vmul.f32 1.0, %v252
  %v254 = vmul.f32 %v246, %v20
  %v255 = vmul.f32 %v240, %v247
  %v256 = vadd.f32 %v254, %v255
  %v257 = vtanh.pop %v256
  %v258 = vmul.f32 %v253, %v257
  %v260 = vcombine.high %v258, %v258
  %v262 = vunpack.c.l.s4 1966171168
  %v263 = vunpack.c.0.s8 %v262
  %v264 = vlaneseq
  %v265 = vshrl.u32 %v264, 7
  %v266 = vsub.s32 %v263, %v265
  %v267 = vrot.slane %v258, %v266
  %v269 = vunpack.c.l.s4 1966171168
  %v270 = vunpack.c.0.s8 %v269
  %v271 = vlaneseq
  %v272 = vshrl.u32 %v271, 7
  %v273 = vsub.s32 %v270, %v272
  %v274 = vrot.slane %v260, %v273
  %v275 = vcombine.high %v267, %v267
  %v276 = vcombine.high %v274, %v274
  %v278 = vunpack.c.l.s4 1966171168
  %v279 = vunpack.c.0.s8 %v278
  %v280 = vlaneseq
  %v281 = vshrl.u32 %v280, 7
  %v282 = vsub.s32 %v279, %v281
  %v283 = vrot.slane %v267, %v282
  %v285 = vunpack.c.l.s4 1966171168
  %v286 = vunpack.c.0.s8 %v285
  %v287 = vlaneseq
  %v288 = vshrl.u32 %v287, 7
  %v289 = vsub.s32 %v286, %v288
  %v290 = vrot.slane %v274, %v289
  %v292 = vunpack.c.l.s4 1966171168
  %v293 = vunpack.c.0.s8 %v292
  %v294 = vlaneseq
  %v295 = vshrl.u32 %v294, 7
  %v296 = vsub.s32 %v293, %v295
  %v297 = vrot.slane %v275, %v296
  %v299 = vunpack.c.l.s4 1966171168
  %v300 = vunpack.c.0.s8 %v299
  %v301 = vlaneseq
  %v302 = vshrl.u32 %v301, 7
  %v303 = vsub.s32 %v300, %v302
  %v304 = vrot.slane %v276, %v303
  %v305 = vcombine.high %v283, %v283
  %v306 = vcombine.high %v290, %v290
  %v307 = vcombine.high %v297, %v297
  %v308 = vcombine.high %v304, %v304
  %317 = vst [vmem:[%s2] sm:$0x1] %v283
  %318 = vst [vmem:[%s2 + $0x8] sm:$0x1] %v297
  %319 = vst [vmem:[%s2 + $0x10] sm:$0x1] %v305
  %320 = vst [vmem:[%s2 + $0x18] sm:$0x1] %v307
  %321 = vst [vmem:[%s2 + $0x20] sm:$0x1] %v290
  %322 = vst [vmem:[%s2 + $0x28] sm:$0x1] %v304
  %323 = vst [vmem:[%s2 + $0x30] sm:$0x1] %v306
  %324 = vst [vmem:[%s2 + $0x38] sm:$0x1] %v308
  %s325 = scalar_lea.vmem %s0, 32
  %v326 = vld [vmem:[%s325] sm:$0xff]
  %v327 = vld [vmem:[%s325 + $0x8] sm:$0xff]
  %v328 = vld [vmem:[%s325 + $0x10] sm:$0xff]
  %v329 = vld [vmem:[%s325 + $0x18] sm:$0xff]
  %330 = vmatprep.subr.mxu0 %v82
  %331 = vmatpush1.msra.mxu0 %v81
  %332 = vmatprep.subr.mxu0 %v78
  %333 = vmatpush1.msra.mxu0 %v77
  %334 = vmatprep.subr.mxu0 %v74
  %335 = vmatpush1.msra.mxu0 %v73
  %336 = vmatprep.subr.mxu0 %v70
  %337 = vmatpush1.msra.mxu0 %v69
  %338 = vmatprep.subr.mxu0 %v66
  %339 = vmatpush1.msra.mxu0 %v65
  %340 = vmatprep.subr.mxu0 %v62
  %341 = vmatpush1.msra.mxu0 %v61
  %342 = vmatprep.subr.mxu0 %v58
  %343 = vmatpush1.msra.mxu0 %v57
  %344 = vmatprep.subr.mxu0 %v54
  %345 = vmatpush1.msra.mxu0 %v53
  %346 = vmatprep.subr.mxu0 %v50
  %347 = vmatpush1.msra.mxu0 %v49
  %348 = vmatprep.subr.mxu0 %v46
  %349 = vmatpush1.msra.mxu0 %v45
  %350 = vmatprep.subr.mxu0 %v42
  %351 = vmatpush1.msra.mxu0 %v41
  %352 = vmatprep.subr.mxu0 %v38
  %353 = vmatpush1.msra.mxu0 %v37
  %354 = vmatprep.subr.mxu0 %v34
  %355 = vmatpush1.msra.mxu0 %v33
  %356 = vmatprep.subr.mxu0 %v30
  %357 = vmatpush1.msra.mxu0 %v29
  %358 = vmatprep.subr.mxu0 %v26
  %359 = vmatpush1.msra.mxu0 %v25
  %360 = vmatprep.subr.mxu0 %v22
  %361 = vmatpush1.msra.mxu0 %v21
  %362 = vmatprep.subr.mxu0 0.0
  %363 = vmatpush2.msra.mxu0 0.0
  %364 = vmatprep.subr.mxu0 0.0
  %365 = vmatpush2.msra.mxu0 0.0
  %366 = vmatprep.subr.mxu0 0.0
  %367 = vmatpush2.msra.mxu0 0.0
  %368 = vmatprep.subr.mxu0 0.0
  %369 = vmatpush2.msra.mxu0 0.0
  %370 = vmatprep.subr.mxu0 0.0
  %371 = vmatpush2.msra.mxu0 0.0
  %372 = vmatprep.subr.mxu0 0.0
  %373 = vmatpush2.msra.mxu0 0.0
  %374 = vmatprep.subr.mxu0 0.0
  %375 = vmatpush2.msra.mxu0 0.0
  %376 = vmatprep.subr.mxu0 0.0
  %377 = vmatpush2.msra.mxu0 0.0
  %378 = vmatprep.subr.mxu0 0.0
  %379 = vmatpush2.msra.mxu0 0.0
  %380 = vmatprep.subr.mxu0 0.0
  %381 = vmatpush2.msra.mxu0 0.0
  %382 = vmatprep.subr.mxu0 0.0
  %383 = vmatpush2.msra.mxu0 0.0
  %384 = vmatprep.subr.mxu0 0.0
  %385 = vmatpush2.msra.mxu0 0.0
  %386 = vmatprep.subr.mxu0 0.0
  %387 = vmatpush2.msra.mxu0 0.0
  %388 = vmatprep.subr.mxu0 0.0
  %389 = vmatpush2.msra.mxu0 0.0
  %390 = vmatprep.subr.mxu0 0.0
  %391 = vmatpush2.msra.mxu0 0.0
  %392 = vmatprep.subr.mxu0 0.0
  %393 = vmatpush2.msra.mxu0 0.0
  %394 = vmatprep.mubr.f32.mxu0 0.0
  %395 = vmatmul.mubr.f32.gmra.mxu0 %v258
  %v396 = vpop.f32.mrf.mxu0
  %v397 = vadd.f32 0.0, %v396
  %v398 = vpop.f32.mrf.mxu0
  %v399 = vadd.f32 0.0, %v398
  %400 = vdwg.mxu0
  %401 = vmatprep.subr.mxu0 %v84
  %402 = vmatpush1.msra.mxu0 %v83
  %403 = vmatprep.subr.mxu0 %v80
  %404 = vmatpush1.msra.mxu0 %v79
  %405 = vmatprep.subr.mxu0 %v76
  %406 = vmatpush1.msra.mxu0 %v75
  %407 = vmatprep.subr.mxu0 %v72
  %408 = vmatpush1.msra.mxu0 %v71
  %409 = vmatprep.subr.mxu0 %v68
  %410 = vmatpush1.msra.mxu0 %v67
  %411 = vmatprep.subr.mxu0 %v64
  %412 = vmatpush1.msra.mxu0 %v63
  %413 = vmatprep.subr.mxu0 %v60
  %414 = vmatpush1.msra.mxu0 %v59
  %415 = vmatprep.subr.mxu0 %v56
  %416 = vmatpush1.msra.mxu0 %v55
  %417 = vmatprep.subr.mxu0 %v52
  %418 = vmatpush1.msra.mxu0 %v51
  %419 = vmatprep.subr.mxu0 %v48
  %420 = vmatpush1.msra.mxu0 %v47
  %421 = vmatprep.subr.mxu0 %v44
  %422 = vmatpush1.msra.mxu0 %v43
  %423 = vmatprep.subr.mxu0 %v40
  %424 = vmatpush1.msra.mxu0 %v39
  %425 = vmatprep.subr.mxu0 %v36
  %426 = vmatpush1.msra.mxu0 %v35
  %427 = vmatprep.subr.mxu0 %v32
  %428 = vmatpush1.msra.mxu0 %v31
  %429 = vmatprep.subr.mxu0 %v28
  %430 = vmatpush1.msra.mxu0 %v27
  %431 = vmatprep.subr.mxu0 %v24
  %432 = vmatpush1.msra.mxu0 %v23
  %433 = vmatprep.subr.mxu0 0.0
  %434 = vmatpush2.msra.mxu0 0.0
  %435 = vmatprep.subr.mxu0 0.0
  %436 = vmatpush2.msra.mxu0 0.0
  %437 = vmatprep.subr.mxu0 0.0
  %438 = vmatpush2.msra.mxu0 0.0
  %439 = vmatprep.subr.mxu0 0.0
  %440 = vmatpush2.msra.mxu0 0.0
  %441 = vmatprep.subr.mxu0 0.0
  %442 = vmatpush2.msra.mxu0 0.0
  %443 = vmatprep.subr.mxu0 0.0
  %444 = vmatpush2.msra.mxu0 0.0
  %445 = vmatprep.subr.mxu0 0.0
  %446 = vmatpush2.msra.mxu0 0.0
  %447 = vmatprep.subr.mxu0 0.0
  %448 = vmatpush2.msra.mxu0 0.0
  %449 = vmatprep.subr.mxu0 0.0
  %450 = vmatpush2.msra.mxu0 0.0
  %451 = vmatprep.subr.mxu0 0.0
  %452 = vmatpush2.msra.mxu0 0.0
  %453 = vmatprep.subr.mxu0 0.0
  %454 = vmatpush2.msra.mxu0 0.0
  %455 = vmatprep.subr.mxu0 0.0
  %456 = vmatpush2.msra.mxu0 0.0
  %457 = vmatprep.subr.mxu0 0.0
  %458 = vmatpush2.msra.mxu0 0.0
  %459 = vmatprep.subr.mxu0 0.0
  %460 = vmatpush2.msra.mxu0 0.0
  %461 = vmatprep.subr.mxu0 0.0
  %462 = vmatpush2.msra.mxu0 0.0
  %463 = vmatprep.subr.mxu0 0.0
  %464 = vmatpush2.msra.mxu0 0.0
  %465 = vmatprep.mubr.f32.mxu0 0.0
  %466 = vmatmul.mubr.f32.gmra.mxu0 %v258
  %v467 = vpop.f32.mrf.mxu0
  %v468 = vadd.f32 0.0, %v467
  %v469 = vpop.f32.mrf.mxu0
  %v470 = vadd.f32 0.0, %v469
  %471 = vdwg.mxu0
  %v472 = vadd.f32 %v326, %v397
  %v473 = vadd.f32 %v327, %v399
  %v474 = vadd.f32 %v328, %v468
  %v475 = vadd.f32 %v329, %v470
  %v476 = vxor.u32 %v472, 2147483648
  %v477 = vmul.f32 %v476, 1.442695
  %v478 = vpow.pop %v477
  %v479 = vadd.f32 %v478, 1.0
  %v480 = vrcp.pop %v479
  %v481 = vmul.f32 1.0, %v480
  %v482 = vxor.u32 %v473, 2147483648
  %v483 = vmul.f32 %v482, 1.442695
  %v484 = vpow.pop %v483
  %v485 = vadd.f32 %v484, 1.0
  %v486 = vrcp.pop %v485
  %v487 = vmul.f32 1.0, %v486
  %v488 = vtanh.pop %v474
  %v489 = vxor.u32 %v475, 2147483648
  %v490 = vmul.f32 %v489, 1.442695
  %v491 = vpow.pop %v490
  %v492 = vadd.f32 %v491, 1.0
  %v493 = vrcp.pop %v492
  %v494 = vmul.f32 1.0, %v493
  %v495 = vmul.f32 %v487, %v256
  %v496 = vmul.f32 %v481, %v488
  %v497 = vadd.f32 %v495, %v496
  %v498 = vtanh.pop %v497
  %v499 = vmul.f32 %v494, %v498
  %v501 = vcombine.high %v499, %v499
  %v503 = vunpack.c.l.s4 1966171168
  %v504 = vunpack.c.0.s8 %v503
  %v505 = vlaneseq
  %v506 = vshrl.u32 %v505, 7
  %v507 = vsub.s32 %v504, %v506
  %v508 = vrot.slane %v499, %v507
  %v510 = vunpack.c.l.s4 1966171168
  %v511 = vunpack.c.0.s8 %v510
  %v512 = vlaneseq
  %v513 = vshrl.u32 %v512, 7
  %v514 = vsub.s32 %v511, %v513
  %v515 = vrot.slane %v501, %v514
  %v516 = vcombine.high %v508, %v508
  %v517 = vcombine.high %v515, %v515
  %v519 = vunpack.c.l.s4 1966171168
  %v520 = vunpack.c.0.s8 %v519
  %v521 = vlaneseq
  %v522 = vshrl.u32 %v521, 7
  %v523 = vsub.s32 %v520, %v522
  %v524 = vrot.slane %v508, %v523
  %v526 = vunpack.c.l.s4 1966171168
  %v527 = vunpack.c.0.s8 %v526
  %v528 = vlaneseq
  %v529 = vshrl.u32 %v528, 7
  %v530 = vsub.s32 %v527, %v529
  %v531 = vrot.slane %v515, %v530
  %v533 = vunpack.c.l.s4 1966171168
  %v534 = vunpack.c.0.s8 %v533
  %v535 = vlaneseq
  %v536 = vshrl.u32 %v535, 7
  %v537 = vsub.s32 %v534, %v536
  %v538 = vrot.slane %v516, %v537
  %v540 = vunpack.c.l.s4 1966171168
  %v541 = vunpack.c.0.s8 %v540
  %v542 = vlaneseq
  %v543 = vshrl.u32 %v542, 7
  %v544 = vsub.s32 %v541, %v543
  %v545 = vrot.slane %v517, %v544
  %v546 = vcombine.high %v524, %v524
  %v547 = vcombine.high %v531, %v531
  %v548 = vcombine.high %v538, %v538
  %v549 = vcombine.high %v545, %v545
  %558 = vst [vmem:[%s2 + $0x1] sm:$0x1] %v524
  %559 = vst [vmem:[%s2 + $0x9] sm:$0x1] %v538
  %560 = vst [vmem:[%s2 + $0x11] sm:$0x1] %v546
  %561 = vst [vmem:[%s2 + $0x19] sm:$0x1] %v548
  %562 = vst [vmem:[%s2 + $0x21] sm:$0x1] %v531
  %563 = vst [vmem:[%s2 + $0x29] sm:$0x1] %v545
  %564 = vst [vmem:[%s2 + $0x31] sm:$0x1] %v547
  %565 = vst [vmem:[%s2 + $0x39] sm:$0x1] %v549
  %s566 = scalar_lea.vmem %s0, 64
  %v567 = vld [vmem:[%s566] sm:$0xff]
  %v568 = vld [vmem:[%s566 + $0x8] sm:$0xff]
  %v569 = vld [vmem:[%s566 + $0x10] sm:$0xff]
  %v570 = vld [vmem:[%s566 + $0x18] sm:$0xff]
  %571 = vmatprep.subr.mxu0 %v82
  %572 = vmatpush1.msra.mxu0 %v81
  %573 = vmatprep.subr.mxu0 %v78
  %574 = vmatpush1.msra.mxu0 %v77
  %575 = vmatprep.subr.mxu0 %v74
  %576 = vmatpush1.msra.mxu0 %v73
  %577 = vmatprep.subr.mxu0 %v70
  %578 = vmatpush1.msra.mxu0 %v69
  %579 = vmatprep.subr.mxu0 %v66
  %580 = vmatpush1.msra.mxu0 %v65
  %581 = vmatprep.subr.mxu0 %v62
  %582 = vmatpush1.msra.mxu0 %v61
  %583 = vmatprep.subr.mxu0 %v58
  %584 = vmatpush1.msra.mxu0 %v57
  %585 = vmatprep.subr.mxu0 %v54
  %586 = vmatpush1.msra.mxu0 %v53
  %587 = vmatprep.subr.mxu0 %v50
  %588 = vmatpush1.msra.mxu0 %v49
  %589 = vmatprep.subr.mxu0 %v46
  %590 = vmatpush1.msra.mxu0 %v45
  %591 = vmatprep.subr.mxu0 %v42
  %592 = vmatpush1.msra.mxu0 %v41
  %593 = vmatprep.subr.mxu0 %v38
  %594 = vmatpush1.msra.mxu0 %v37
  %595 = vmatprep.subr.mxu0 %v34
  %596 = vmatpush1.msra.mxu0 %v33
  %597 = vmatprep.subr.mxu0 %v30
  %598 = vmatpush1.msra.mxu0 %v29
  %599 = vmatprep.subr.mxu0 %v26
  %600 = vmatpush1.msra.mxu0 %v25
  %601 = vmatprep.subr.mxu0 %v22
  %602 = vmatpush1.msra.mxu0 %v21
  %603 = vmatprep.subr.mxu0 0.0
  %604 = vmatpush2.msra.mxu0 0.0
  %605 = vmatprep.subr.mxu0 0.0
  %606 = vmatpush2.msra.mxu0 0.0
  %607 = vmatprep.subr.mxu0 0.0
  %608 = vmatpush2.msra.mxu0 0.0
  %609 = vmatprep.subr.mxu0 0.0
  %610 = vmatpush2.msra.mxu0 0.0
  %611 = vmatprep.subr.mxu0 0.0
  %612 = vmatpush2.msra.mxu0 0.0
  %613 = vmatprep.subr.mxu0 0.0
  %614 = vmatpush2.msra.mxu0 0.0
  %615 = vmatprep.subr.mxu0 0.0
  %616 = vmatpush2.msra.mxu0 0.0
  %617 = vmatprep.subr.mxu0 0.0
  %618 = vmatpush2.msra.mxu0 0.0
  %619 = vmatprep.subr.mxu0 0.0
  %620 = vmatpush2.msra.mxu0 0.0
  %621 = vmatprep.subr.mxu0 0.0
  %622 = vmatpush2.msra.mxu0 0.0
  %623 = vmatprep.subr.mxu0 0.0
  %624 = vmatpush2.msra.mxu0 0.0
  %625 = vmatprep.subr.mxu0 0.0
  %626 = vmatpush2.msra.mxu0 0.0
  %627 = vmatprep.subr.mxu0 0.0
  %628 = vmatpush2.msra.mxu0 0.0
  %629 = vmatprep.subr.mxu0 0.0
  %630 = vmatpush2.msra.mxu0 0.0
  %631 = vmatprep.subr.mxu0 0.0
  %632 = vmatpush2.msra.mxu0 0.0
  %633 = vmatprep.subr.mxu0 0.0
  %634 = vmatpush2.msra.mxu0 0.0
  %635 = vmatprep.mubr.f32.mxu0 0.0
  %636 = vmatmul.mubr.f32.gmra.mxu0 %v499
  %v637 = vpop.f32.mrf.mxu0
  %v638 = vadd.f32 0.0, %v637
  %v639 = vpop.f32.mrf.mxu0
  %v640 = vadd.f32 0.0, %v639
  %641 = vdwg.mxu0
  %642 = vmatprep.subr.mxu0 %v84
  %643 = vmatpush1.msra.mxu0 %v83
  %644 = vmatprep.subr.mxu0 %v80
  %645 = vmatpush1.msra.mxu0 %v79
  %646 = vmatprep.subr.mxu0 %v76
  %647 = vmatpush1.msra.mxu0 %v75
  %648 = vmatprep.subr.mxu0 %v72
  %649 = vmatpush1.msra.mxu0 %v71
  %650 = vmatprep.subr.mxu0 %v68
  %651 = vmatpush1.msra.mxu0 %v67
  %652 = vmatprep.subr.mxu0 %v64
  %653 = vmatpush1.msra.mxu0 %v63
  %654 = vmatprep.subr.mxu0 %v60
  %655 = vmatpush1.msra.mxu0 %v59
  %656 = vmatprep.subr.mxu0 %v56
  %657 = vmatpush1.msra.mxu0 %v55
  %658 = vmatprep.subr.mxu0 %v52
  %659 = vmatpush1.msra.mxu0 %v51
  %660 = vmatprep.subr.mxu0 %v48
  %661 = vmatpush1.msra.mxu0 %v47
  %662 = vmatprep.subr.mxu0 %v44
  %663 = vmatpush1.msra.mxu0 %v43
  %664 = vmatprep.subr.mxu0 %v40
  %665 = vmatpush1.msra.mxu0 %v39
  %666 = vmatprep.subr.mxu0 %v36
  %667 = vmatpush1.msra.mxu0 %v35
  %668 = vmatprep.subr.mxu0 %v32
  %669 = vmatpush1.msra.mxu0 %v31
  %670 = vmatprep.subr.mxu0 %v28
  %671 = vmatpush1.msra.mxu0 %v27
  %672 = vmatprep.subr.mxu0 %v24
  %673 = vmatpush1.msra.mxu0 %v23
  %674 = vmatprep.subr.mxu0 0.0
  %675 = vmatpush2.msra.mxu0 0.0
  %676 = vmatprep.subr.mxu0 0.0
  %677 = vmatpush2.msra.mxu0 0.0
  %678 = vmatprep.subr.mxu0 0.0
  %679 = vmatpush2.msra.mxu0 0.0
  %680 = vmatprep.subr.mxu0 0.0
  %681 = vmatpush2.msra.mxu0 0.0
  %682 = vmatprep.subr.mxu0 0.0
  %683 = vmatpush2.msra.mxu0 0.0
  %684 = vmatprep.subr.mxu0 0.0
  %685 = vmatpush2.msra.mxu0 0.0
  %686 = vmatprep.subr.mxu0 0.0
  %687 = vmatpush2.msra.mxu0 0.0
  %688 = vmatprep.subr.mxu0 0.0
  %689 = vmatpush2.msra.mxu0 0.0
  %690 = vmatprep.subr.mxu0 0.0
  %691 = vmatpush2.msra.mxu0 0.0
  %692 = vmatprep.subr.mxu0 0.0
  %693 = vmatpush2.msra.mxu0 0.0
  %694 = vmatprep.subr.mxu0 0.0
  %695 = vmatpush2.msra.mxu0 0.0
  %696 = vmatprep.subr.mxu0 0.0
  %697 = vmatpush2.msra.mxu0 0.0
  %698 = vmatprep.subr.mxu0 0.0
  %699 = vmatpush2.msra.mxu0 0.0
  %700 = vmatprep.subr.mxu0 0.0
  %701 = vmatpush2.msra.mxu0 0.0
  %702 = vmatprep.subr.mxu0 0.0
  %703 = vmatpush2.msra.mxu0 0.0
  %704 = vmatprep.subr.mxu0 0.0
  %705 = vmatpush2.msra.mxu0 0.0
  %706 = vmatprep.mubr.f32.mxu0 0.0
  %707 = vmatmul.mubr.f32.gmra.mxu0 %v499
  %v708 = vpop.f32.mrf.mxu0
  %v709 = vadd.f32 0.0, %v708
  %v710 = vpop.f32.mrf.mxu0
  %v711 = vadd.f32 0.0, %v710
  %712 = vdwg.mxu0
  %v713 = vadd.f32 %v567, %v638
  %v714 = vadd.f32 %v568, %v640
  %v715 = vadd.f32 %v569, %v709
  %v716 = vadd.f32 %v570, %v711
  %v717 = vxor.u32 %v713, 2147483648
  %v718 = vmul.f32 %v717, 1.442695
  %v719 = vpow.pop %v718
  %v720 = vadd.f32 %v719, 1.0
  %v721 = vrcp.pop %v720
  %v722 = vmul.f32 1.0, %v721
  %v723 = vxor.u32 %v714, 2147483648
  %v724 = vmul.f32 %v723, 1.442695
  %v725 = vpow.pop %v724
  %v726 = vadd.f32 %v725, 1.0
  %v727 = vrcp.pop %v726
  %v728 = vmul.f32 1.0, %v727
  %v729 = vtanh.pop %v715
  %v730 = vxor.u32 %v716, 2147483648
  %v731 = vmul.f32 %v730, 1.442695
  %v732 = vpow.pop %v731
  %v733 = vadd.f32 %v732, 1.0
  %v734 = vrcp.pop %v733
  %v735 = vmul.f32 1.0, %v734
  %v736 = vmul.f32 %v728, %v497
  %v737 = vmul.f32 %v722, %v729
  %v738 = vadd.f32 %v736, %v737
  %v739 = vtanh.pop %v738
  %v740 = vmul.f32 %v735, %v739
  %v742 = vcombine.high %v740, %v740
  %v744 = vunpack.c.l.s4 1966171168
  %v745 = vunpack.c.0.s8 %v744
  %v746 = vlaneseq
  %v747 = vshrl.u32 %v746, 7
  %v748 = vsub.s32 %v745, %v747
  %v749 = vrot.slane %v740, %v748
  %v751 = vunpack.c.l.s4 1966171168
  %v752 = vunpack.c.0.s8 %v751
  %v753 = vlaneseq
  %v754 = vshrl.u32 %v753, 7
  %v755 = vsub.s32 %v752, %v754
  %v756 = vrot.slane %v742, %v755
  %v757 = vcombine.high %v749, %v749
  %v758 = vcombine.high %v756, %v756
  %v760 = vunpack.c.l.s4 1966171168
  %v761 = vunpack.c.0.s8 %v760
  %v762 = vlaneseq
  %v763 = vshrl.u32 %v762, 7
  %v764 = vsub.s32 %v761, %v763
  %v765 = vrot.slane %v749, %v764
  %v767 = vunpack.c.l.s4 1966171168
  %v768 = vunpack.c.0.s8 %v767
  %v769 = vlaneseq
  %v770 = vshrl.u32 %v769, 7
  %v771 = vsub.s32 %v768, %v770
  %v772 = vrot.slane %v756, %v771
  %v774 = vunpack.c.l.s4 1966171168
  %v775 = vunpack.c.0.s8 %v774
  %v776 = vlaneseq
  %v777 = vshrl.u32 %v776, 7
  %v778 = vsub.s32 %v775, %v777
  %v779 = vrot.slane %v757, %v778
  %v781 = vunpack.c.l.s4 1966171168
  %v782 = vunpack.c.0.s8 %v781
  %v783 = vlaneseq
  %v784 = vshrl.u32 %v783, 7
  %v785 = vsub.s32 %v782, %v784
  %v786 = vrot.slane %v758, %v785
  %v787 = vcombine.high %v765, %v765
  %v788 = vcombine.high %v772, %v772
  %v789 = vcombine.high %v779, %v779
  %v790 = vcombine.high %v786, %v786
  %799 = vst [vmem:[%s2 + $0x2] sm:$0x1] %v765
  %800 = vst [vmem:[%s2 + $0xa] sm:$0x1] %v779
  %801 = vst [vmem:[%s2 + $0x12] sm:$0x1] %v787
  %802 = vst [vmem:[%s2 + $0x1a] sm:$0x1] %v789
  %803 = vst [vmem:[%s2 + $0x22] sm:$0x1] %v772
  %804 = vst [vmem:[%s2 + $0x2a] sm:$0x1] %v786
  %805 = vst [vmem:[%s2 + $0x32] sm:$0x1] %v788
  %806 = vst [vmem:[%s2 + $0x3a] sm:$0x1] %v790
  %s807 = scalar_lea.vmem %s0, 96
  %v808 = vld [vmem:[%s807] sm:$0xff]
  %v809 = vld [vmem:[%s807 + $0x8] sm:$0xff]
  %v810 = vld [vmem:[%s807 + $0x10] sm:$0xff]
  %v811 = vld [vmem:[%s807 + $0x18] sm:$0xff]
  %812 = vmatprep.subr.mxu0 %v82
  %813 = vmatpush1.msra.mxu0 %v81
  %814 = vmatprep.subr.mxu0 %v78
  %815 = vmatpush1.msra.mxu0 %v77
  %816 = vmatprep.subr.mxu0 %v74
  %817 = vmatpush1.msra.mxu0 %v73
  %818 = vmatprep.subr.mxu0 %v70
  %819 = vmatpush1.msra.mxu0 %v69
  %820 = vmatprep.subr.mxu0 %v66
  %821 = vmatpush1.msra.mxu0 %v65
  %822 = vmatprep.subr.mxu0 %v62
  %823 = vmatpush1.msra.mxu0 %v61
  %824 = vmatprep.subr.mxu0 %v58
  %825 = vmatpush1.msra.mxu0 %v57
  %826 = vmatprep.subr.mxu0 %v54
  %827 = vmatpush1.msra.mxu0 %v53
  %828 = vmatprep.subr.mxu0 %v50
  %829 = vmatpush1.msra.mxu0 %v49
  %830 = vmatprep.subr.mxu0 %v46
  %831 = vmatpush1.msra.mxu0 %v45
  %832 = vmatprep.subr.mxu0 %v42
  %833 = vmatpush1.msra.mxu0 %v41
  %834 = vmatprep.subr.mxu0 %v38
  %835 = vmatpush1.msra.mxu0 %v37
  %836 = vmatprep.subr.mxu0 %v34
  %837 = vmatpush1.msra.mxu0 %v33
  %838 = vmatprep.subr.mxu0 %v30
  %839 = vmatpush1.msra.mxu0 %v29
  %840 = vmatprep.subr.mxu0 %v26
  %841 = vmatpush1.msra.mxu0 %v25
  %842 = vmatprep.subr.mxu0 %v22
  %843 = vmatpush1.msra.mxu0 %v21
  %844 = vmatprep.subr.mxu0 0.0
  %845 = vmatpush2.msra.mxu0 0.0
  %846 = vmatprep.subr.mxu0 0.0
  %847 = vmatpush2.msra.mxu0 0.0
  %848 = vmatprep.subr.mxu0 0.0
  %849 = vmatpush2.msra.mxu0 0.0
  %850 = vmatprep.subr.mxu0 0.0
  %851 = vmatpush2.msra.mxu0 0.0
  %852 = vmatprep.subr.mxu0 0.0
  %853 = vmatpush2.msra.mxu0 0.0
  %854 = vmatprep.subr.mxu0 0.0
  %855 = vmatpush2.msra.mxu0 0.0
  %856 = vmatprep.subr.mxu0 0.0
  %857 = vmatpush2.msra.mxu0 0.0
  %858 = vmatprep.subr.mxu0 0.0
  %859 = vmatpush2.msra.mxu0 0.0
  %860 = vmatprep.subr.mxu0 0.0
  %861 = vmatpush2.msra.mxu0 0.0
  %862 = vmatprep.subr.mxu0 0.0
  %863 = vmatpush2.msra.mxu0 0.0
  %864 = vmatprep.subr.mxu0 0.0
  %865 = vmatpush2.msra.mxu0 0.0
  %866 = vmatprep.subr.mxu0 0.0
  %867 = vmatpush2.msra.mxu0 0.0
  %868 = vmatprep.subr.mxu0 0.0
  %869 = vmatpush2.msra.mxu0 0.0
  %870 = vmatprep.subr.mxu0 0.0
  %871 = vmatpush2.msra.mxu0 0.0
  %872 = vmatprep.subr.mxu0 0.0
  %873 = vmatpush2.msra.mxu0 0.0
  %874 = vmatprep.subr.mxu0 0.0
  %875 = vmatpush2.msra.mxu0 0.0
  %876 = vmatprep.mubr.f32.mxu0 0.0
  %877 = vmatmul.mubr.f32.gmra.mxu0 %v740
  %v878 = vpop.f32.mrf.mxu0
  %v879 = vadd.f32 0.0, %v878
  %v880 = vpop.f32.mrf.mxu0
  %v881 = vadd.f32 0.0, %v880
  %882 = vdwg.mxu0
  %883 = vmatprep.subr.mxu0 %v84
  %884 = vmatpush1.msra.mxu0 %v83
  %885 = vmatprep.subr.mxu0 %v80
  %886 = vmatpush1.msra.mxu0 %v79
  %887 = vmatprep.subr.mxu0 %v76
  %888 = vmatpush1.msra.mxu0 %v75
  %889 = vmatprep.subr.mxu0 %v72
  %890 = vmatpush1.msra.mxu0 %v71
  %891 = vmatprep.subr.mxu0 %v68
  %892 = vmatpush1.msra.mxu0 %v67
  %893 = vmatprep.subr.mxu0 %v64
  %894 = vmatpush1.msra.mxu0 %v63
  %895 = vmatprep.subr.mxu0 %v60
  %896 = vmatpush1.msra.mxu0 %v59
  %897 = vmatprep.subr.mxu0 %v56
  %898 = vmatpush1.msra.mxu0 %v55
  %899 = vmatprep.subr.mxu0 %v52
  %900 = vmatpush1.msra.mxu0 %v51
  %901 = vmatprep.subr.mxu0 %v48
  %902 = vmatpush1.msra.mxu0 %v47
  %903 = vmatprep.subr.mxu0 %v44
  %904 = vmatpush1.msra.mxu0 %v43
  %905 = vmatprep.subr.mxu0 %v40
  %906 = vmatpush1.msra.mxu0 %v39
  %907 = vmatprep.subr.mxu0 %v36
  %908 = vmatpush1.msra.mxu0 %v35
  %909 = vmatprep.subr.mxu0 %v32
  %910 = vmatpush1.msra.mxu0 %v31
  %911 = vmatprep.subr.mxu0 %v28
  %912 = vmatpush1.msra.mxu0 %v27
  %913 = vmatprep.subr.mxu0 %v24
  %914 = vmatpush1.msra.mxu0 %v23
  %915 = vmatprep.subr.mxu0 0.0
  %916 = vmatpush2.msra.mxu0 0.0
  %917 = vmatprep.subr.mxu0 0.0
  %918 = vmatpush2.msra.mxu0 0.0
  %919 = vmatprep.subr.mxu0 0.0
  %920 = vmatpush2.msra.mxu0 0.0
  %921 = vmatprep.subr.mxu0 0.0
  %922 = vmatpush2.msra.mxu0 0.0
  %923 = vmatprep.subr.mxu0 0.0
  %924 = vmatpush2.msra.mxu0 0.0
  %925 = vmatprep.subr.mxu0 0.0
  %926 = vmatpush2.msra.mxu0 0.0
  %927 = vmatprep.subr.mxu0 0.0
  %928 = vmatpush2.msra.mxu0 0.0
  %929 = vmatprep.subr.mxu0 0.0
  %930 = vmatpush2.msra.mxu0 0.0
  %931 = vmatprep.subr.mxu0 0.0
  %932 = vmatpush2.msra.mxu0 0.0
  %933 = vmatprep.subr.mxu0 0.0
  %934 = vmatpush2.msra.mxu0 0.0
  %935 = vmatprep.subr.mxu0 0.0
  %936 = vmatpush2.msra.mxu0 0.0
  %937 = vmatprep.subr.mxu0 0.0
  %938 = vmatpush2.msra.mxu0 0.0
  %939 = vmatprep.subr.mxu0 0.0
  %940 = vmatpush2.msra.mxu0 0.0
  %941 = vmatprep.subr.mxu0 0.0
  %942 = vmatpush2.msra.mxu0 0.0
  %943 = vmatprep.subr.mxu0 0.0
  %944 = vmatpush2.msra.mxu0 0.0
  %945 = vmatprep.subr.mxu0 0.0
  %946 = vmatpush2.msra.mxu0 0.0
  %947 = vmatprep.mubr.f32.mxu0 0.0
  %948 = vmatmul.mubr.f32.gmra.mxu0 %v740
  %v949 = vpop.f32.mrf.mxu0
  %v950 = vadd.f32 0.0, %v949
  %v951 = vpop.f32.mrf.mxu0
  %v952 = vadd.f32 0.0, %v951
  %953 = vdwg.mxu0
  %v954 = vadd.f32 %v808, %v879
  %v955 = vadd.f32 %v809, %v881
  %v956 = vadd.f32 %v810, %v950
  %v957 = vadd.f32 %v811, %v952
  %v958 = vxor.u32 %v954, 2147483648
  %v959 = vmul.f32 %v958, 1.442695
  %v960 = vpow.pop %v959
  %v961 = vadd.f32 %v960, 1.0
  %v962 = vrcp.pop %v961
  %v963 = vmul.f32 1.0, %v962
  %v964 = vxor.u32 %v955, 2147483648
  %v965 = vmul.f32 %v964, 1.442695
  %v966 = vpow.pop %v965
  %v967 = vadd.f32 %v966, 1.0
  %v968 = vrcp.pop %v967
  %v969 = vmul.f32 1.0, %v968
  %v970 = vtanh.pop %v956
  %v971 = vxor.u32 %v957, 2147483648
  %v972 = vmul.f32 %v971, 1.442695
  %v973 = vpow.pop %v972
  %v974 = vadd.f32 %v973, 1.0
  %v975 = vrcp.pop %v974
  %v976 = vmul.f32 1.0, %v975
  %v977 = vmul.f32 %v969, %v738
  %v978 = vmul.f32 %v963, %v970
  %v979 = vadd.f32 %v977, %v978
  %v980 = vtanh.pop %v979
  %v981 = vmul.f32 %v976, %v980
  %v983 = vcombine.high %v981, %v981
  %v985 = vunpack.c.l.s4 1966171168
  %v986 = vunpack.c.0.s8 %v985
  %v987 = vlaneseq
  %v988 = vshrl.u32 %v987, 7
  %v989 = vsub.s32 %v986, %v988
  %v990 = vrot.slane %v981, %v989
  %v992 = vunpack.c.l.s4 1966171168
  %v993 = vunpack.c.0.s8 %v992
  %v994 = vlaneseq
  %v995 = vshrl.u32 %v994, 7
  %v996 = vsub.s32 %v993, %v995
  %v997 = vrot.slane %v983, %v996
  %v998 = vcombine.high %v990, %v990
  %v999 = vcombine.high %v997, %v997
  %v1001 = vunpack.c.l.s4 1966171168
  %v1002 = vunpack.c.0.s8 %v1001
  %v1003 = vlaneseq
  %v1004 = vshrl.u32 %v1003, 7
  %v1005 = vsub.s32 %v1002, %v1004
  %v1006 = vrot.slane %v990, %v1005
  %v1008 = vunpack.c.l.s4 1966171168
  %v1009 = vunpack.c.0.s8 %v1008
  %v1010 = vlaneseq
  %v1011 = vshrl.u32 %v1010, 7
  %v1012 = vsub.s32 %v1009, %v1011
  %v1013 = vrot.slane %v997, %v1012
  %v1015 = vunpack.c.l.s4 1966171168
  %v1016 = vunpack.c.0.s8 %v1015
  %v1017 = vlaneseq
  %v1018 = vshrl.u32 %v1017, 7
  %v1019 = vsub.s32 %v1016, %v1018
  %v1020 = vrot.slane %v998, %v1019
  %v1022 = vunpack.c.l.s4 1966171168
  %v1023 = vunpack.c.0.s8 %v1022
  %v1024 = vlaneseq
  %v1025 = vshrl.u32 %v1024, 7
  %v1026 = vsub.s32 %v1023, %v1025
  %v1027 = vrot.slane %v999, %v1026
  %v1028 = vcombine.high %v1006, %v1006
  %v1029 = vcombine.high %v1013, %v1013
  %v1030 = vcombine.high %v1020, %v1020
  %v1031 = vcombine.high %v1027, %v1027
  %1040 = vst [vmem:[%s2 + $0x3] sm:$0x1] %v1006
  %1041 = vst [vmem:[%s2 + $0xb] sm:$0x1] %v1020
  %1042 = vst [vmem:[%s2 + $0x13] sm:$0x1] %v1028
  %1043 = vst [vmem:[%s2 + $0x1b] sm:$0x1] %v1030
  %1044 = vst [vmem:[%s2 + $0x23] sm:$0x1] %v1013
  %1045 = vst [vmem:[%s2 + $0x2b] sm:$0x1] %v1027
  %1046 = vst [vmem:[%s2 + $0x33] sm:$0x1] %v1029
  %1047 = vst [vmem:[%s2 + $0x3b] sm:$0x1] %v1031
  %s1048 = scalar_lea.vmem %s0, 128
  %v1049 = vld [vmem:[%s1048] sm:$0xff]
  %v1050 = vld [vmem:[%s1048 + $0x8] sm:$0xff]
  %v1051 = vld [vmem:[%s1048 + $0x10] sm:$0xff]
  %v1052 = vld [vmem:[%s1048 + $0x18] sm:$0xff]
  %1053 = vmatprep.subr.mxu0 %v82
  %1054 = vmatpush1.msra.mxu0 %v81
  %1055 = vmatprep.subr.mxu0 %v78
  %1056 = vmatpush1.msra.mxu0 %v77
  %1057 = vmatprep.subr.mxu0 %v74
  %1058 = vmatpush1.msra.mxu0 %v73
  %1059 = vmatprep.subr.mxu0 %v70
  %1060 = vmatpush1.msra.mxu0 %v69
  %1061 = vmatprep.subr.mxu0 %v66
  %1062 = vmatpush1.msra.mxu0 %v65
  %1063 = vmatprep.subr.mxu0 %v62
  %1064 = vmatpush1.msra.mxu0 %v61
  %1065 = vmatprep.subr.mxu0 %v58
  %1066 = vmatpush1.msra.mxu0 %v57
  %1067 = vmatprep.subr.mxu0 %v54
  %1068 = vmatpush1.msra.mxu0 %v53
  %1069 = vmatprep.subr.mxu0 %v50
  %1070 = vmatpush1.msra.mxu0 %v49
  %1071 = vmatprep.subr.mxu0 %v46
  %1072 = vmatpush1.msra.mxu0 %v45
  %1073 = vmatprep.subr.mxu0 %v42
  %1074 = vmatpush1.msra.mxu0 %v41
  %1075 = vmatprep.subr.mxu0 %v38
  %1076 = vmatpush1.msra.mxu0 %v37
  %1077 = vmatprep.subr.mxu0 %v34
  %1078 = vmatpush1.msra.mxu0 %v33
  %1079 = vmatprep.subr.mxu0 %v30
  %1080 = vmatpush1.msra.mxu0 %v29
  %1081 = vmatprep.subr.mxu0 %v26
  %1082 = vmatpush1.msra.mxu0 %v25
  %1083 = vmatprep.subr.mxu0 %v22
  %1084 = vmatpush1.msra.mxu0 %v21
  %1085 = vmatprep.subr.mxu0 0.0
  %1086 = vmatpush2.msra.mxu0 0.0
  %1087 = vmatprep.subr.mxu0 0.0
  %1088 = vmatpush2.msra.mxu0 0.0
  %1089 = vmatprep.subr.mxu0 0.0
  %1090 = vmatpush2.msra.mxu0 0.0
  %1091 = vmatprep.subr.mxu0 0.0
  %1092 = vmatpush2.msra.mxu0 0.0
  %1093 = vmatprep.subr.mxu0 0.0
  %1094 = vmatpush2.msra.mxu0 0.0
  %1095 = vmatprep.subr.mxu0 0.0
  %1096 = vmatpush2.msra.mxu0 0.0
  %1097 = vmatprep.subr.mxu0 0.0
  %1098 = vmatpush2.msra.mxu0 0.0
  %1099 = vmatprep.subr.mxu0 0.0
  %1100 = vmatpush2.msra.mxu0 0.0
  %1101 = vmatprep.subr.mxu0 0.0
  %1102 = vmatpush2.msra.mxu0 0.0
  %1103 = vmatprep.subr.mxu0 0.0
  %1104 = vmatpush2.msra.mxu0 0.0
  %1105 = vmatprep.subr.mxu0 0.0
  %1106 = vmatpush2.msra.mxu0 0.0
  %1107 = vmatprep.subr.mxu0 0.0
  %1108 = vmatpush2.msra.mxu0 0.0
  %1109 = vmatprep.subr.mxu0 0.0
  %1110 = vmatpush2.msra.mxu0 0.0
  %1111 = vmatprep.subr.mxu0 0.0
  %1112 = vmatpush2.msra.mxu0 0.0
  %1113 = vmatprep.subr.mxu0 0.0
  %1114 = vmatpush2.msra.mxu0 0.0
  %1115 = vmatprep.subr.mxu0 0.0
  %1116 = vmatpush2.msra.mxu0 0.0
  %1117 = vmatprep.mubr.f32.mxu0 0.0
  %1118 = vmatmul.mubr.f32.gmra.mxu0 %v981
  %v1119 = vpop.f32.mrf.mxu0
  %v1120 = vadd.f32 0.0, %v1119
  %v1121 = vpop.f32.mrf.mxu0
  %v1122 = vadd.f32 0.0, %v1121
  %1123 = vdwg.mxu0
  %1124 = vmatprep.subr.mxu0 %v84
  %1125 = vmatpush1.msra.mxu0 %v83
  %1126 = vmatprep.subr.mxu0 %v80
  %1127 = vmatpush1.msra.mxu0 %v79
  %1128 = vmatprep.subr.mxu0 %v76
  %1129 = vmatpush1.msra.mxu0 %v75
  %1130 = vmatprep.subr.mxu0 %v72
  %1131 = vmatpush1.msra.mxu0 %v71
  %1132 = vmatprep.subr.mxu0 %v68
  %1133 = vmatpush1.msra.mxu0 %v67
  %1134 = vmatprep.subr.mxu0 %v64
  %1135 = vmatpush1.msra.mxu0 %v63
  %1136 = vmatprep.subr.mxu0 %v60
  %1137 = vmatpush1.msra.mxu0 %v59
  %1138 = vmatprep.subr.mxu0 %v56
  %1139 = vmatpush1.msra.mxu0 %v55
  %1140 = vmatprep.subr.mxu0 %v52
  %1141 = vmatpush1.msra.mxu0 %v51
  %1142 = vmatprep.subr.mxu0 %v48
  %1143 = vmatpush1.msra.mxu0 %v47
  %1144 = vmatprep.subr.mxu0 %v44
  %1145 = vmatpush1.msra.mxu0 %v43
  %1146 = vmatprep.subr.mxu0 %v40
  %1147 = vmatpush1.msra.mxu0 %v39
  %1148 = vmatprep.subr.mxu0 %v36
  %1149 = vmatpush1.msra.mxu0 %v35
  %1150 = vmatprep.subr.mxu0 %v32
  %1151 = vmatpush1.msra.mxu0 %v31
  %1152 = vmatprep.subr.mxu0 %v28
  %1153 = vmatpush1.msra.mxu0 %v27
  %1154 = vmatprep.subr.mxu0 %v24
  %1155 = vmatpush1.msra.mxu0 %v23
  %1156 = vmatprep.subr.mxu0 0.0
  %1157 = vmatpush2.msra.mxu0 0.0
  %1158 = vmatprep.subr.mxu0 0.0
  %1159 = vmatpush2.msra.mxu0 0.0
  %1160 = vmatprep.subr.mxu0 0.0
  %1161 = vmatpush2.msra.mxu0 0.0
  %1162 = vmatprep.subr.mxu0 0.0
  %1163 = vmatpush2.msra.mxu0 0.0
  %1164 = vmatprep.subr.mxu0 0.0
  %1165 = vmatpush2.msra.mxu0 0.0
  %1166 = vmatprep.subr.mxu0 0.0
  %1167 = vmatpush2.msra.mxu0 0.0
  %1168 = vmatprep.subr.mxu0 0.0
  %1169 = vmatpush2.msra.mxu0 0.0
  %1170 = vmatprep.subr.mxu0 0.0
  %1171 = vmatpush2.msra.mxu0 0.0
  %1172 = vmatprep.subr.mxu0 0.0
  %1173 = vmatpush2.msra.mxu0 0.0
  %1174 = vmatprep.subr.mxu0 0.0
  %1175 = vmatpush2.msra.mxu0 0.0
  %1176 = vmatprep.subr.mxu0 0.0
  %1177 = vmatpush2.msra.mxu0 0.0
  %1178 = vmatprep.subr.mxu0 0.0
  %1179 = vmatpush2.msra.mxu0 0.0
  %1180 = vmatprep.subr.mxu0 0.0
  %1181 = vmatpush2.msra.mxu0 0.0
  %1182 = vmatprep.subr.mxu0 0.0
  %1183 = vmatpush2.msra.mxu0 0.0
  %1184 = vmatprep.subr.mxu0 0.0
  %1185 = vmatpush2.msra.mxu0 0.0
  %1186 = vmatprep.subr.mxu0 0.0
  %1187 = vmatpush2.msra.mxu0 0.0
  %1188 = vmatprep.mubr.f32.mxu0 0.0
  %1189 = vmatmul.mubr.f32.gmra.mxu0 %v981
  %v1190 = vpop.f32.mrf.mxu0
  %v1191 = vadd.f32 0.0, %v1190
  %v1192 = vpop.f32.mrf.mxu0
  %v1193 = vadd.f32 0.0, %v1192
  %1194 = vdwg.mxu0
  %v1195 = vadd.f32 %v1049, %v1120
  %v1196 = vadd.f32 %v1050, %v1122
  %v1197 = vadd.f32 %v1051, %v1191
  %v1198 = vadd.f32 %v1052, %v1193
  %v1199 = vxor.u32 %v1195, 2147483648
  %v1200 = vmul.f32 %v1199, 1.442695
  %v1201 = vpow.pop %v1200
  %v1202 = vadd.f32 %v1201, 1.0
  %v1203 = vrcp.pop %v1202
  %v1204 = vmul.f32 1.0, %v1203
  %v1205 = vxor.u32 %v1196, 2147483648
  %v1206 = vmul.f32 %v1205, 1.442695
  %v1207 = vpow.pop %v1206
  %v1208 = vadd.f32 %v1207, 1.0
  %v1209 = vrcp.pop %v1208
  %v1210 = vmul.f32 1.0, %v1209
  %v1211 = vtanh.pop %v1197
  %v1212 = vxor.u32 %v1198, 2147483648
  %v1213 = vmul.f32 %v1212, 1.442695
  %v1214 = vpow.pop %v1213
  %v1215 = vadd.f32 %v1214, 1.0
  %v1216 = vrcp.pop %v1215
  %v1217 = vmul.f32 1.0, %v1216
  %v1218 = vmul.f32 %v1210, %v979
  %v1219 = vmul.f32 %v1204, %v1211
  %v1220 = vadd.f32 %v1218, %v1219
  %v1221 = vtanh.pop %v1220
  %v1222 = vmul.f32 %v1217, %v1221
  %v1224 = vcombine.high %v1222, %v1222
  %v1226 = vunpack.c.l.s4 1966171168
  %v1227 = vunpack.c.0.s8 %v1226
  %v1228 = vlaneseq
  %v1229 = vshrl.u32 %v1228, 7
  %v1230 = vsub.s32 %v1227, %v1229
  %v1231 = vrot.slane %v1222, %v1230
  %v1233 = vunpack.c.l.s4 1966171168
  %v1234 = vunpack.c.0.s8 %v1233
  %v1235 = vlaneseq
  %v1236 = vshrl.u32 %v1235, 7
  %v1237 = vsub.s32 %v1234, %v1236
  %v1238 = vrot.slane %v1224, %v1237
  %v1239 = vcombine.high %v1231, %v1231
  %v1240 = vcombine.high %v1238, %v1238
  %v1242 = vunpack.c.l.s4 1966171168
  %v1243 = vunpack.c.0.s8 %v1242
  %v1244 = vlaneseq
  %v1245 = vshrl.u32 %v1244, 7
  %v1246 = vsub.s32 %v1243, %v1245
  %v1247 = vrot.slane %v1231, %v1246
  %v1249 = vunpack.c.l.s4 1966171168
  %v1250 = vunpack.c.0.s8 %v1249
  %v1251 = vlaneseq
  %v1252 = vshrl.u32 %v1251, 7
  %v1253 = vsub.s32 %v1250, %v1252
  %v1254 = vrot.slane %v1238, %v1253
  %v1256 = vunpack.c.l.s4 1966171168
  %v1257 = vunpack.c.0.s8 %v1256
  %v1258 = vlaneseq
  %v1259 = vshrl.u32 %v1258, 7
  %v1260 = vsub.s32 %v1257, %v1259
  %v1261 = vrot.slane %v1239, %v1260
  %v1263 = vunpack.c.l.s4 1966171168
  %v1264 = vunpack.c.0.s8 %v1263
  %v1265 = vlaneseq
  %v1266 = vshrl.u32 %v1265, 7
  %v1267 = vsub.s32 %v1264, %v1266
  %v1268 = vrot.slane %v1240, %v1267
  %v1269 = vcombine.high %v1247, %v1247
  %v1270 = vcombine.high %v1254, %v1254
  %v1271 = vcombine.high %v1261, %v1261
  %v1272 = vcombine.high %v1268, %v1268
  %1281 = vst [vmem:[%s2 + $0x4] sm:$0x1] %v1247
  %1282 = vst [vmem:[%s2 + $0xc] sm:$0x1] %v1261
  %1283 = vst [vmem:[%s2 + $0x14] sm:$0x1] %v1269
  %1284 = vst [vmem:[%s2 + $0x1c] sm:$0x1] %v1271
  %1285 = vst [vmem:[%s2 + $0x24] sm:$0x1] %v1254
  %1286 = vst [vmem:[%s2 + $0x2c] sm:$0x1] %v1268
  %1287 = vst [vmem:[%s2 + $0x34] sm:$0x1] %v1270
  %1288 = vst [vmem:[%s2 + $0x3c] sm:$0x1] %v1272
  %s1289 = scalar_lea.vmem %s0, 160
  %v1290 = vld [vmem:[%s1289] sm:$0xff]
  %v1291 = vld [vmem:[%s1289 + $0x8] sm:$0xff]
  %v1292 = vld [vmem:[%s1289 + $0x10] sm:$0xff]
  %v1293 = vld [vmem:[%s1289 + $0x18] sm:$0xff]
  %1294 = vmatprep.subr.mxu0 %v82
  %1295 = vmatpush1.msra.mxu0 %v81
  %1296 = vmatprep.subr.mxu0 %v78
  %1297 = vmatpush1.msra.mxu0 %v77
  %1298 = vmatprep.subr.mxu0 %v74
  %1299 = vmatpush1.msra.mxu0 %v73
  %1300 = vmatprep.subr.mxu0 %v70
  %1301 = vmatpush1.msra.mxu0 %v69
  %1302 = vmatprep.subr.mxu0 %v66
  %1303 = vmatpush1.msra.mxu0 %v65
  %1304 = vmatprep.subr.mxu0 %v62
  %1305 = vmatpush1.msra.mxu0 %v61
  %1306 = vmatprep.subr.mxu0 %v58
  %1307 = vmatpush1.msra.mxu0 %v57
  %1308 = vmatprep.subr.mxu0 %v54
  %1309 = vmatpush1.msra.mxu0 %v53
  %1310 = vmatprep.subr.mxu0 %v50
  %1311 = vmatpush1.msra.mxu0 %v49
  %1312 = vmatprep.subr.mxu0 %v46
  %1313 = vmatpush1.msra.mxu0 %v45
  %1314 = vmatprep.subr.mxu0 %v42
  %1315 = vmatpush1.msra.mxu0 %v41
  %1316 = vmatprep.subr.mxu0 %v38
  %1317 = vmatpush1.msra.mxu0 %v37
  %1318 = vmatprep.subr.mxu0 %v34
  %1319 = vmatpush1.msra.mxu0 %v33
  %1320 = vmatprep.subr.mxu0 %v30
  %1321 = vmatpush1.msra.mxu0 %v29
  %1322 = vmatprep.subr.mxu0 %v26
  %1323 = vmatpush1.msra.mxu0 %v25
  %1324 = vmatprep.subr.mxu0 %v22
  %1325 = vmatpush1.msra.mxu0 %v21
  %1326 = vmatprep.subr.mxu0 0.0
  %1327 = vmatpush2.msra.mxu0 0.0
  %1328 = vmatprep.subr.mxu0 0.0
  %1329 = vmatpush2.msra.mxu0 0.0
  %1330 = vmatprep.subr.mxu0 0.0
  %1331 = vmatpush2.msra.mxu0 0.0
  %1332 = vmatprep.subr.mxu0 0.0
  %1333 = vmatpush2.msra.mxu0 0.0
  %1334 = vmatprep.subr.mxu0 0.0
  %1335 = vmatpush2.msra.mxu0 0.0
  %1336 = vmatprep.subr.mxu0 0.0
  %1337 = vmatpush2.msra.mxu0 0.0
  %1338 = vmatprep.subr.mxu0 0.0
  %1339 = vmatpush2.msra.mxu0 0.0
  %1340 = vmatprep.subr.mxu0 0.0
  %1341 = vmatpush2.msra.mxu0 0.0
  %1342 = vmatprep.subr.mxu0 0.0
  %1343 = vmatpush2.msra.mxu0 0.0
  %1344 = vmatprep.subr.mxu0 0.0
  %1345 = vmatpush2.msra.mxu0 0.0
  %1346 = vmatprep.subr.mxu0 0.0
  %1347 = vmatpush2.msra.mxu0 0.0
  %1348 = vmatprep.subr.mxu0 0.0
  %1349 = vmatpush2.msra.mxu0 0.0
  %1350 = vmatprep.subr.mxu0 0.0
  %1351 = vmatpush2.msra.mxu0 0.0
  %1352 = vmatprep.subr.mxu0 0.0
  %1353 = vmatpush2.msra.mxu0 0.0
  %1354 = vmatprep.subr.mxu0 0.0
  %1355 = vmatpush2.msra.mxu0 0.0
  %1356 = vmatprep.subr.mxu0 0.0
  %1357 = vmatpush2.msra.mxu0 0.0
  %1358 = vmatprep.mubr.f32.mxu0 0.0
  %1359 = vmatmul.mubr.f32.gmra.mxu0 %v1222
  %v1360 = vpop.f32.mrf.mxu0
  %v1361 = vadd.f32 0.0, %v1360
  %v1362 = vpop.f32.mrf.mxu0
  %v1363 = vadd.f32 0.0, %v1362
  %1364 = vdwg.mxu0
  %1365 = vmatprep.subr.mxu0 %v84
  %1366 = vmatpush1.msra.mxu0 %v83
  %1367 = vmatprep.subr.mxu0 %v80
  %1368 = vmatpush1.msra.mxu0 %v79
  %1369 = vmatprep.subr.mxu0 %v76
  %1370 = vmatpush1.msra.mxu0 %v75
  %1371 = vmatprep.subr.mxu0 %v72
  %1372 = vmatpush1.msra.mxu0 %v71
  %1373 = vmatprep.subr.mxu0 %v68
  %1374 = vmatpush1.msra.mxu0 %v67
  %1375 = vmatprep.subr.mxu0 %v64
  %1376 = vmatpush1.msra.mxu0 %v63
  %1377 = vmatprep.subr.mxu0 %v60
  %1378 = vmatpush1.msra.mxu0 %v59
  %1379 = vmatprep.subr.mxu0 %v56
  %1380 = vmatpush1.msra.mxu0 %v55
  %1381 = vmatprep.subr.mxu0 %v52
  %1382 = vmatpush1.msra.mxu0 %v51
  %1383 = vmatprep.subr.mxu0 %v48
  %1384 = vmatpush1.msra.mxu0 %v47
  %1385 = vmatprep.subr.mxu0 %v44
  %1386 = vmatpush1.msra.mxu0 %v43
  %1387 = vmatprep.subr.mxu0 %v40
  %1388 = vmatpush1.msra.mxu0 %v39
  %1389 = vmatprep.subr.mxu0 %v36
  %1390 = vmatpush1.msra.mxu0 %v35
  %1391 = vmatprep.subr.mxu0 %v32
  %1392 = vmatpush1.msra.mxu0 %v31
  %1393 = vmatprep.subr.mxu0 %v28
  %1394 = vmatpush1.msra.mxu0 %v27
  %1395 = vmatprep.subr.mxu0 %v24
  %1396 = vmatpush1.msra.mxu0 %v23
  %1397 = vmatprep.subr.mxu0 0.0
  %1398 = vmatpush2.msra.mxu0 0.0
  %1399 = vmatprep.subr.mxu0 0.0
  %1400 = vmatpush2.msra.mxu0 0.0
  %1401 = vmatprep.subr.mxu0 0.0
  %1402 = vmatpush2.msra.mxu0 0.0
  %1403 = vmatprep.subr.mxu0 0.0
  %1404 = vmatpush2.msra.mxu0 0.0
  %1405 = vmatprep.subr.mxu0 0.0
  %1406 = vmatpush2.msra.mxu0 0.0
  %1407 = vmatprep.subr.mxu0 0.0
  %1408 = vmatpush2.msra.mxu0 0.0
  %1409 = vmatprep.subr.mxu0 0.0
  %1410 = vmatpush2.msra.mxu0 0.0
  %1411 = vmatprep.subr.mxu0 0.0
  %1412 = vmatpush2.msra.mxu0 0.0
  %1413 = vmatprep.subr.mxu0 0.0
  %1414 = vmatpush2.msra.mxu0 0.0
  %1415 = vmatprep.subr.mxu0 0.0
  %1416 = vmatpush2.msra.mxu0 0.0
  %1417 = vmatprep.subr.mxu0 0.0
  %1418 = vmatpush2.msra.mxu0 0.0
  %1419 = vmatprep.subr.mxu0 0.0
  %1420 = vmatpush2.msra.mxu0 0.0
  %1421 = vmatprep.subr.mxu0 0.0
  %1422 = vmatpush2.msra.mxu0 0.0
  %1423 = vmatprep.subr.mxu0 0.0
  %1424 = vmatpush2.msra.mxu0 0.0
  %1425 = vmatprep.subr.mxu0 0.0
  %1426 = vmatpush2.msra.mxu0 0.0
  %1427 = vmatprep.subr.mxu0 0.0
  %1428 = vmatpush2.msra.mxu0 0.0
  %1429 = vmatprep.mubr.f32.mxu0 0.0
  %1430 = vmatmul.mubr.f32.gmra.mxu0 %v1222
  %v1431 = vpop.f32.mrf.mxu0
  %v1432 = vadd.f32 0.0, %v1431
  %v1433 = vpop.f32.mrf.mxu0
  %v1434 = vadd.f32 0.0, %v1433
  %1435 = vdwg.mxu0
  %v1436 = vadd.f32 %v1290, %v1361
  %v1437 = vadd.f32 %v1291, %v1363
  %v1438 = vadd.f32 %v1292, %v1432
  %v1439 = vadd.f32 %v1293, %v1434
  %v1440 = vxor.u32 %v1436, 2147483648
  %v1441 = vmul.f32 %v1440, 1.442695
  %v1442 = vpow.pop %v1441
  %v1443 = vadd.f32 %v1442, 1.0
  %v1444 = vrcp.pop %v1443
  %v1445 = vmul.f32 1.0, %v1444
  %v1446 = vxor.u32 %v1437, 2147483648
  %v1447 = vmul.f32 %v1446, 1.442695
  %v1448 = vpow.pop %v1447
  %v1449 = vadd.f32 %v1448, 1.0
  %v1450 = vrcp.pop %v1449
  %v1451 = vmul.f32 1.0, %v1450
  %v1452 = vtanh.pop %v1438
  %v1453 = vxor.u32 %v1439, 2147483648
  %v1454 = vmul.f32 %v1453, 1.442695
  %v1455 = vpow.pop %v1454
  %v1456 = vadd.f32 %v1455, 1.0
  %v1457 = vrcp.pop %v1456
  %v1458 = vmul.f32 1.0, %v1457
  %v1459 = vmul.f32 %v1451, %v1220
  %v1460 = vmul.f32 %v1445, %v1452
  %v1461 = vadd.f32 %v1459, %v1460
  %v1462 = vtanh.pop %v1461
  %v1463 = vmul.f32 %v1458, %v1462
  %v1465 = vcombine.high %v1463, %v1463
  %v1467 = vunpack.c.l.s4 1966171168
  %v1468 = vunpack.c.0.s8 %v1467
  %v1469 = vlaneseq
  %v1470 = vshrl.u32 %v1469, 7
  %v1471 = vsub.s32 %v1468, %v1470
  %v1472 = vrot.slane %v1463, %v1471
  %v1474 = vunpack.c.l.s4 1966171168
  %v1475 = vunpack.c.0.s8 %v1474
  %v1476 = vlaneseq
  %v1477 = vshrl.u32 %v1476, 7
  %v1478 = vsub.s32 %v1475, %v1477
  %v1479 = vrot.slane %v1465, %v1478
  %v1480 = vcombine.high %v1472, %v1472
  %v1481 = vcombine.high %v1479, %v1479
  %v1483 = vunpack.c.l.s4 1966171168
  %v1484 = vunpack.c.0.s8 %v1483
  %v1485 = vlaneseq
  %v1486 = vshrl.u32 %v1485, 7
  %v1487 = vsub.s32 %v1484, %v1486
  %v1488 = vrot.slane %v1472, %v1487
  %v1490 = vunpack.c.l.s4 1966171168
  %v1491 = vunpack.c.0.s8 %v1490
  %v1492 = vlaneseq
  %v1493 = vshrl.u32 %v1492, 7
  %v1494 = vsub.s32 %v1491, %v1493
  %v1495 = vrot.slane %v1479, %v1494
  %v1497 = vunpack.c.l.s4 1966171168
  %v1498 = vunpack.c.0.s8 %v1497
  %v1499 = vlaneseq
  %v1500 = vshrl.u32 %v1499, 7
  %v1501 = vsub.s32 %v1498, %v1500
  %v1502 = vrot.slane %v1480, %v1501
  %v1504 = vunpack.c.l.s4 1966171168
  %v1505 = vunpack.c.0.s8 %v1504
  %v1506 = vlaneseq
  %v1507 = vshrl.u32 %v1506, 7
  %v1508 = vsub.s32 %v1505, %v1507
  %v1509 = vrot.slane %v1481, %v1508
  %v1510 = vcombine.high %v1488, %v1488
  %v1511 = vcombine.high %v1495, %v1495
  %v1512 = vcombine.high %v1502, %v1502
  %v1513 = vcombine.high %v1509, %v1509
  %1522 = vst [vmem:[%s2 + $0x5] sm:$0x1] %v1488
  %1523 = vst [vmem:[%s2 + $0xd] sm:$0x1] %v1502
  %1524 = vst [vmem:[%s2 + $0x15] sm:$0x1] %v1510
  %1525 = vst [vmem:[%s2 + $0x1d] sm:$0x1] %v1512
  %1526 = vst [vmem:[%s2 + $0x25] sm:$0x1] %v1495
  %1527 = vst [vmem:[%s2 + $0x2d] sm:$0x1] %v1509
  %1528 = vst [vmem:[%s2 + $0x35] sm:$0x1] %v1511
  %1529 = vst [vmem:[%s2 + $0x3d] sm:$0x1] %v1513
  %s1530 = scalar_lea.vmem %s0, 192
  %v1531 = vld [vmem:[%s1530] sm:$0xff]
  %v1532 = vld [vmem:[%s1530 + $0x8] sm:$0xff]
  %v1533 = vld [vmem:[%s1530 + $0x10] sm:$0xff]
  %v1534 = vld [vmem:[%s1530 + $0x18] sm:$0xff]
  %1535 = vmatprep.subr.mxu0 %v82
  %1536 = vmatpush1.msra.mxu0 %v81
  %1537 = vmatprep.subr.mxu0 %v78
  %1538 = vmatpush1.msra.mxu0 %v77
  %1539 = vmatprep.subr.mxu0 %v74
  %1540 = vmatpush1.msra.mxu0 %v73
  %1541 = vmatprep.subr.mxu0 %v70
  %1542 = vmatpush1.msra.mxu0 %v69
  %1543 = vmatprep.subr.mxu0 %v66
  %1544 = vmatpush1.msra.mxu0 %v65
  %1545 = vmatprep.subr.mxu0 %v62
  %1546 = vmatpush1.msra.mxu0 %v61
  %1547 = vmatprep.subr.mxu0 %v58
  %1548 = vmatpush1.msra.mxu0 %v57
  %1549 = vmatprep.subr.mxu0 %v54
  %1550 = vmatpush1.msra.mxu0 %v53
  %1551 = vmatprep.subr.mxu0 %v50
  %1552 = vmatpush1.msra.mxu0 %v49
  %1553 = vmatprep.subr.mxu0 %v46
  %1554 = vmatpush1.msra.mxu0 %v45
  %1555 = vmatprep.subr.mxu0 %v42
  %1556 = vmatpush1.msra.mxu0 %v41
  %1557 = vmatprep.subr.mxu0 %v38
  %1558 = vmatpush1.msra.mxu0 %v37
  %1559 = vmatprep.subr.mxu0 %v34
  %1560 = vmatpush1.msra.mxu0 %v33
  %1561 = vmatprep.subr.mxu0 %v30
  %1562 = vmatpush1.msra.mxu0 %v29
  %1563 = vmatprep.subr.mxu0 %v26
  %1564 = vmatpush1.msra.mxu0 %v25
  %1565 = vmatprep.subr.mxu0 %v22
  %1566 = vmatpush1.msra.mxu0 %v21
  %1567 = vmatprep.subr.mxu0 0.0
  %1568 = vmatpush2.msra.mxu0 0.0
  %1569 = vmatprep.subr.mxu0 0.0
  %1570 = vmatpush2.msra.mxu0 0.0
  %1571 = vmatprep.subr.mxu0 0.0
  %1572 = vmatpush2.msra.mxu0 0.0
  %1573 = vmatprep.subr.mxu0 0.0
  %1574 = vmatpush2.msra.mxu0 0.0
  %1575 = vmatprep.subr.mxu0 0.0
  %1576 = vmatpush2.msra.mxu0 0.0
  %1577 = vmatprep.subr.mxu0 0.0
  %1578 = vmatpush2.msra.mxu0 0.0
  %1579 = vmatprep.subr.mxu0 0.0
  %1580 = vmatpush2.msra.mxu0 0.0
  %1581 = vmatprep.subr.mxu0 0.0
  %1582 = vmatpush2.msra.mxu0 0.0
  %1583 = vmatprep.subr.mxu0 0.0
  %1584 = vmatpush2.msra.mxu0 0.0
  %1585 = vmatprep.subr.mxu0 0.0
  %1586 = vmatpush2.msra.mxu0 0.0
  %1587 = vmatprep.subr.mxu0 0.0
  %1588 = vmatpush2.msra.mxu0 0.0
  %1589 = vmatprep.subr.mxu0 0.0
  %1590 = vmatpush2.msra.mxu0 0.0
  %1591 = vmatprep.subr.mxu0 0.0
  %1592 = vmatpush2.msra.mxu0 0.0
  %1593 = vmatprep.subr.mxu0 0.0
  %1594 = vmatpush2.msra.mxu0 0.0
  %1595 = vmatprep.subr.mxu0 0.0
  %1596 = vmatpush2.msra.mxu0 0.0
  %1597 = vmatprep.subr.mxu0 0.0
  %1598 = vmatpush2.msra.mxu0 0.0
  %1599 = vmatprep.mubr.f32.mxu0 0.0
  %1600 = vmatmul.mubr.f32.gmra.mxu0 %v1463
  %v1601 = vpop.f32.mrf.mxu0
  %v1602 = vadd.f32 0.0, %v1601
  %v1603 = vpop.f32.mrf.mxu0
  %v1604 = vadd.f32 0.0, %v1603
  %1605 = vdwg.mxu0
  %1606 = vmatprep.subr.mxu0 %v84
  %1607 = vmatpush1.msra.mxu0 %v83
  %1608 = vmatprep.subr.mxu0 %v80
  %1609 = vmatpush1.msra.mxu0 %v79
  %1610 = vmatprep.subr.mxu0 %v76
  %1611 = vmatpush1.msra.mxu0 %v75
  %1612 = vmatprep.subr.mxu0 %v72
  %1613 = vmatpush1.msra.mxu0 %v71
  %1614 = vmatprep.subr.mxu0 %v68
  %1615 = vmatpush1.msra.mxu0 %v67
  %1616 = vmatprep.subr.mxu0 %v64
  %1617 = vmatpush1.msra.mxu0 %v63
  %1618 = vmatprep.subr.mxu0 %v60
  %1619 = vmatpush1.msra.mxu0 %v59
  %1620 = vmatprep.subr.mxu0 %v56
  %1621 = vmatpush1.msra.mxu0 %v55
  %1622 = vmatprep.subr.mxu0 %v52
  %1623 = vmatpush1.msra.mxu0 %v51
  %1624 = vmatprep.subr.mxu0 %v48
  %1625 = vmatpush1.msra.mxu0 %v47
  %1626 = vmatprep.subr.mxu0 %v44
  %1627 = vmatpush1.msra.mxu0 %v43
  %1628 = vmatprep.subr.mxu0 %v40
  %1629 = vmatpush1.msra.mxu0 %v39
  %1630 = vmatprep.subr.mxu0 %v36
  %1631 = vmatpush1.msra.mxu0 %v35
  %1632 = vmatprep.subr.mxu0 %v32
  %1633 = vmatpush1.msra.mxu0 %v31
  %1634 = vmatprep.subr.mxu0 %v28
  %1635 = vmatpush1.msra.mxu0 %v27
  %1636 = vmatprep.subr.mxu0 %v24
  %1637 = vmatpush1.msra.mxu0 %v23
  %1638 = vmatprep.subr.mxu0 0.0
  %1639 = vmatpush2.msra.mxu0 0.0
  %1640 = vmatprep.subr.mxu0 0.0
  %1641 = vmatpush2.msra.mxu0 0.0
  %1642 = vmatprep.subr.mxu0 0.0
  %1643 = vmatpush2.msra.mxu0 0.0
  %1644 = vmatprep.subr.mxu0 0.0
  %1645 = vmatpush2.msra.mxu0 0.0
  %1646 = vmatprep.subr.mxu0 0.0
  %1647 = vmatpush2.msra.mxu0 0.0
  %1648 = vmatprep.subr.mxu0 0.0
  %1649 = vmatpush2.msra.mxu0 0.0
  %1650 = vmatprep.subr.mxu0 0.0
  %1651 = vmatpush2.msra.mxu0 0.0
  %1652 = vmatprep.subr.mxu0 0.0
  %1653 = vmatpush2.msra.mxu0 0.0
  %1654 = vmatprep.subr.mxu0 0.0
  %1655 = vmatpush2.msra.mxu0 0.0
  %1656 = vmatprep.subr.mxu0 0.0
  %1657 = vmatpush2.msra.mxu0 0.0
  %1658 = vmatprep.subr.mxu0 0.0
  %1659 = vmatpush2.msra.mxu0 0.0
  %1660 = vmatprep.subr.mxu0 0.0
  %1661 = vmatpush2.msra.mxu0 0.0
  %1662 = vmatprep.subr.mxu0 0.0
  %1663 = vmatpush2.msra.mxu0 0.0
  %1664 = vmatprep.subr.mxu0 0.0
  %1665 = vmatpush2.msra.mxu0 0.0
  %1666 = vmatprep.subr.mxu0 0.0
  %1667 = vmatpush2.msra.mxu0 0.0
  %1668 = vmatprep.subr.mxu0 0.0
  %1669 = vmatpush2.msra.mxu0 0.0
  %1670 = vmatprep.mubr.f32.mxu0 0.0
  %1671 = vmatmul.mubr.f32.gmra.mxu0 %v1463
  %v1672 = vpop.f32.mrf.mxu0
  %v1673 = vadd.f32 0.0, %v1672
  %v1674 = vpop.f32.mrf.mxu0
  %v1675 = vadd.f32 0.0, %v1674
  %1676 = vdwg.mxu0
  %v1677 = vadd.f32 %v1531, %v1602
  %v1678 = vadd.f32 %v1532, %v1604
  %v1679 = vadd.f32 %v1533, %v1673
  %v1680 = vadd.f32 %v1534, %v1675
  %v1681 = vxor.u32 %v1677, 2147483648
  %v1682 = vmul.f32 %v1681, 1.442695
  %v1683 = vpow.pop %v1682
  %v1684 = vadd.f32 %v1683, 1.0
  %v1685 = vrcp.pop %v1684
  %v1686 = vmul.f32 1.0, %v1685
  %v1687 = vxor.u32 %v1678, 2147483648
  %v1688 = vmul.f32 %v1687, 1.442695
  %v1689 = vpow.pop %v1688
  %v1690 = vadd.f32 %v1689, 1.0
  %v1691 = vrcp.pop %v1690
  %v1692 = vmul.f32 1.0, %v1691
  %v1693 = vtanh.pop %v1679
  %v1694 = vxor.u32 %v1680, 2147483648
  %v1695 = vmul.f32 %v1694, 1.442695
  %v1696 = vpow.pop %v1695
  %v1697 = vadd.f32 %v1696, 1.0
  %v1698 = vrcp.pop %v1697
  %v1699 = vmul.f32 1.0, %v1698
  %v1700 = vmul.f32 %v1692, %v1461
  %v1701 = vmul.f32 %v1686, %v1693
  %v1702 = vadd.f32 %v1700, %v1701
  %v1703 = vtanh.pop %v1702
  %v1704 = vmul.f32 %v1699, %v1703
  %v1706 = vcombine.high %v1704, %v1704
  %v1708 = vunpack.c.l.s4 1966171168
  %v1709 = vunpack.c.0.s8 %v1708
  %v1710 = vlaneseq
  %v1711 = vshrl.u32 %v1710, 7
  %v1712 = vsub.s32 %v1709, %v1711
  %v1713 = vrot.slane %v1704, %v1712
  %v1715 = vunpack.c.l.s4 1966171168
  %v1716 = vunpack.c.0.s8 %v1715
  %v1717 = vlaneseq
  %v1718 = vshrl.u32 %v1717, 7
  %v1719 = vsub.s32 %v1716, %v1718
  %v1720 = vrot.slane %v1706, %v1719
  %v1721 = vcombine.high %v1713, %v1713
  %v1722 = vcombine.high %v1720, %v1720
  %v1724 = vunpack.c.l.s4 1966171168
  %v1725 = vunpack.c.0.s8 %v1724
  %v1726 = vlaneseq
  %v1727 = vshrl.u32 %v1726, 7
  %v1728 = vsub.s32 %v1725, %v1727
  %v1729 = vrot.slane %v1713, %v1728
  %v1731 = vunpack.c.l.s4 1966171168
  %v1732 = vunpack.c.0.s8 %v1731
  %v1733 = vlaneseq
  %v1734 = vshrl.u32 %v1733, 7
  %v1735 = vsub.s32 %v1732, %v1734
  %v1736 = vrot.slane %v1720, %v1735
  %v1738 = vunpack.c.l.s4 1966171168
  %v1739 = vunpack.c.0.s8 %v1738
  %v1740 = vlaneseq
  %v1741 = vshrl.u32 %v1740, 7
  %v1742 = vsub.s32 %v1739, %v1741
  %v1743 = vrot.slane %v1721, %v1742
  %v1745 = vunpack.c.l.s4 1966171168
  %v1746 = vunpack.c.0.s8 %v1745
  %v1747 = vlaneseq
  %v1748 = vshrl.u32 %v1747, 7
  %v1749 = vsub.s32 %v1746, %v1748
  %v1750 = vrot.slane %v1722, %v1749
  %v1751 = vcombine.high %v1729, %v1729
  %v1752 = vcombine.high %v1736, %v1736
  %v1753 = vcombine.high %v1743, %v1743
  %v1754 = vcombine.high %v1750, %v1750
  %1763 = vst [vmem:[%s2 + $0x6] sm:$0x1] %v1729
  %1764 = vst [vmem:[%s2 + $0xe] sm:$0x1] %v1743
  %1765 = vst [vmem:[%s2 + $0x16] sm:$0x1] %v1751
  %1766 = vst [vmem:[%s2 + $0x1e] sm:$0x1] %v1753
  %1767 = vst [vmem:[%s2 + $0x26] sm:$0x1] %v1736
  %1768 = vst [vmem:[%s2 + $0x2e] sm:$0x1] %v1750
  %1769 = vst [vmem:[%s2 + $0x36] sm:$0x1] %v1752
  %1770 = vst [vmem:[%s2 + $0x3e] sm:$0x1] %v1754
  %s1771 = scalar_lea.vmem %s0, 224
  %v1772 = vld [vmem:[%s1771] sm:$0xff]
  %v1773 = vld [vmem:[%s1771 + $0x8] sm:$0xff]
  %v1774 = vld [vmem:[%s1771 + $0x10] sm:$0xff]
  %v1775 = vld [vmem:[%s1771 + $0x18] sm:$0xff]
  %1776 = vmatprep.subr.mxu0 %v82
  %1777 = vmatpush1.msra.mxu0 %v81
  %1778 = vmatprep.subr.mxu0 %v78
  %1779 = vmatpush1.msra.mxu0 %v77
  %1780 = vmatprep.subr.mxu0 %v74
  %1781 = vmatpush1.msra.mxu0 %v73
  %1782 = vmatprep.subr.mxu0 %v70
  %1783 = vmatpush1.msra.mxu0 %v69
  %1784 = vmatprep.subr.mxu0 %v66
  %1785 = vmatpush1.msra.mxu0 %v65
  %1786 = vmatprep.subr.mxu0 %v62
  %1787 = vmatpush1.msra.mxu0 %v61
  %1788 = vmatprep.subr.mxu0 %v58
  %1789 = vmatpush1.msra.mxu0 %v57
  %1790 = vmatprep.subr.mxu0 %v54
  %1791 = vmatpush1.msra.mxu0 %v53
  %1792 = vmatprep.subr.mxu0 %v50
  %1793 = vmatpush1.msra.mxu0 %v49
  %1794 = vmatprep.subr.mxu0 %v46
  %1795 = vmatpush1.msra.mxu0 %v45
  %1796 = vmatprep.subr.mxu0 %v42
  %1797 = vmatpush1.msra.mxu0 %v41
  %1798 = vmatprep.subr.mxu0 %v38
  %1799 = vmatpush1.msra.mxu0 %v37
  %1800 = vmatprep.subr.mxu0 %v34
  %1801 = vmatpush1.msra.mxu0 %v33
  %1802 = vmatprep.subr.mxu0 %v30
  %1803 = vmatpush1.msra.mxu0 %v29
  %1804 = vmatprep.subr.mxu0 %v26
  %1805 = vmatpush1.msra.mxu0 %v25
  %1806 = vmatprep.subr.mxu0 %v22
  %1807 = vmatpush1.msra.mxu0 %v21
  %1808 = vmatprep.subr.mxu0 0.0
  %1809 = vmatpush2.msra.mxu0 0.0
  %1810 = vmatprep.subr.mxu0 0.0
  %1811 = vmatpush2.msra.mxu0 0.0
  %1812 = vmatprep.subr.mxu0 0.0
  %1813 = vmatpush2.msra.mxu0 0.0
  %1814 = vmatprep.subr.mxu0 0.0
  %1815 = vmatpush2.msra.mxu0 0.0
  %1816 = vmatprep.subr.mxu0 0.0
  %1817 = vmatpush2.msra.mxu0 0.0
  %1818 = vmatprep.subr.mxu0 0.0
  %1819 = vmatpush2.msra.mxu0 0.0
  %1820 = vmatprep.subr.mxu0 0.0
  %1821 = vmatpush2.msra.mxu0 0.0
  %1822 = vmatprep.subr.mxu0 0.0
  %1823 = vmatpush2.msra.mxu0 0.0
  %1824 = vmatprep.subr.mxu0 0.0
  %1825 = vmatpush2.msra.mxu0 0.0
  %1826 = vmatprep.subr.mxu0 0.0
  %1827 = vmatpush2.msra.mxu0 0.0
  %1828 = vmatprep.subr.mxu0 0.0
  %1829 = vmatpush2.msra.mxu0 0.0
  %1830 = vmatprep.subr.mxu0 0.0
  %1831 = vmatpush2.msra.mxu0 0.0
  %1832 = vmatprep.subr.mxu0 0.0
  %1833 = vmatpush2.msra.mxu0 0.0
  %1834 = vmatprep.subr.mxu0 0.0
  %1835 = vmatpush2.msra.mxu0 0.0
  %1836 = vmatprep.subr.mxu0 0.0
  %1837 = vmatpush2.msra.mxu0 0.0
  %1838 = vmatprep.subr.mxu0 0.0
  %1839 = vmatpush2.msra.mxu0 0.0
  %1840 = vmatprep.mubr.f32.mxu0 0.0
  %1841 = vmatmul.mubr.f32.gmra.mxu0 %v1704
  %v1842 = vpop.f32.mrf.mxu0
  %v1843 = vadd.f32 0.0, %v1842
  %v1844 = vpop.f32.mrf.mxu0
  %v1845 = vadd.f32 0.0, %v1844
  %1846 = vdwg.mxu0
  %1847 = vmatprep.subr.mxu0 %v84
  %1848 = vmatpush1.msra.mxu0 %v83
  %1849 = vmatprep.subr.mxu0 %v80
  %1850 = vmatpush1.msra.mxu0 %v79
  %1851 = vmatprep.subr.mxu0 %v76
  %1852 = vmatpush1.msra.mxu0 %v75
  %1853 = vmatprep.subr.mxu0 %v72
  %1854 = vmatpush1.msra.mxu0 %v71
  %1855 = vmatprep.subr.mxu0 %v68
  %1856 = vmatpush1.msra.mxu0 %v67
  %1857 = vmatprep.subr.mxu0 %v64
  %1858 = vmatpush1.msra.mxu0 %v63
  %1859 = vmatprep.subr.mxu0 %v60
  %1860 = vmatpush1.msra.mxu0 %v59
  %1861 = vmatprep.subr.mxu0 %v56
  %1862 = vmatpush1.msra.mxu0 %v55
  %1863 = vmatprep.subr.mxu0 %v52
  %1864 = vmatpush1.msra.mxu0 %v51
  %1865 = vmatprep.subr.mxu0 %v48
  %1866 = vmatpush1.msra.mxu0 %v47
  %1867 = vmatprep.subr.mxu0 %v44
  %1868 = vmatpush1.msra.mxu0 %v43
  %1869 = vmatprep.subr.mxu0 %v40
  %1870 = vmatpush1.msra.mxu0 %v39
  %1871 = vmatprep.subr.mxu0 %v36
  %1872 = vmatpush1.msra.mxu0 %v35
  %1873 = vmatprep.subr.mxu0 %v32
  %1874 = vmatpush1.msra.mxu0 %v31
  %1875 = vmatprep.subr.mxu0 %v28
  %1876 = vmatpush1.msra.mxu0 %v27
  %1877 = vmatprep.subr.mxu0 %v24
  %1878 = vmatpush1.msra.mxu0 %v23
  %1879 = vmatprep.subr.mxu0 0.0
  %1880 = vmatpush2.msra.mxu0 0.0
  %1881 = vmatprep.subr.mxu0 0.0
  %1882 = vmatpush2.msra.mxu0 0.0
  %1883 = vmatprep.subr.mxu0 0.0
  %1884 = vmatpush2.msra.mxu0 0.0
  %1885 = vmatprep.subr.mxu0 0.0
  %1886 = vmatpush2.msra.mxu0 0.0
  %1887 = vmatprep.subr.mxu0 0.0
  %1888 = vmatpush2.msra.mxu0 0.0
  %1889 = vmatprep.subr.mxu0 0.0
  %1890 = vmatpush2.msra.mxu0 0.0
  %1891 = vmatprep.subr.mxu0 0.0
  %1892 = vmatpush2.msra.mxu0 0.0
  %1893 = vmatprep.subr.mxu0 0.0
  %1894 = vmatpush2.msra.mxu0 0.0
  %1895 = vmatprep.subr.mxu0 0.0
  %1896 = vmatpush2.msra.mxu0 0.0
  %1897 = vmatprep.subr.mxu0 0.0
  %1898 = vmatpush2.msra.mxu0 0.0
  %1899 = vmatprep.subr.mxu0 0.0
  %1900 = vmatpush2.msra.mxu0 0.0
  %1901 = vmatprep.subr.mxu0 0.0
  %1902 = vmatpush2.msra.mxu0 0.0
  %1903 = vmatprep.subr.mxu0 0.0
  %1904 = vmatpush2.msra.mxu0 0.0
  %1905 = vmatprep.subr.mxu0 0.0
  %1906 = vmatpush2.msra.mxu0 0.0
  %1907 = vmatprep.subr.mxu0 0.0
  %1908 = vmatpush2.msra.mxu0 0.0
  %1909 = vmatprep.subr.mxu0 0.0
  %1910 = vmatpush2.msra.mxu0 0.0
  %1911 = vmatprep.mubr.f32.mxu0 0.0
  %1912 = vmatmul.mubr.f32.gmra.mxu0 %v1704
  %v1913 = vpop.f32.mrf.mxu0
  %v1914 = vadd.f32 0.0, %v1913
  %v1915 = vpop.f32.mrf.mxu0
  %v1916 = vadd.f32 0.0, %v1915
  %1917 = vdwg.mxu0
  %v1918 = vadd.f32 %v1772, %v1843
  %v1919 = vadd.f32 %v1773, %v1845
  %v1920 = vadd.f32 %v1774, %v1914
  %v1921 = vadd.f32 %v1775, %v1916
  %v1922 = vxor.u32 %v1918, 2147483648
  %v1923 = vmul.f32 %v1922, 1.442695
  %v1924 = vpow.pop %v1923
  %v1925 = vadd.f32 %v1924, 1.0
  %v1926 = vrcp.pop %v1925
  %v1927 = vmul.f32 1.0, %v1926
  %v1928 = vxor.u32 %v1919, 2147483648
  %v1929 = vmul.f32 %v1928, 1.442695
  %v1930 = vpow.pop %v1929
  %v1931 = vadd.f32 %v1930, 1.0
  %v1932 = vrcp.pop %v1931
  %v1933 = vmul.f32 1.0, %v1932
  %v1934 = vtanh.pop %v1920
  %v1935 = vxor.u32 %v1921, 2147483648
  %v1936 = vmul.f32 %v1935, 1.442695
  %v1937 = vpow.pop %v1936
  %v1938 = vadd.f32 %v1937, 1.0
  %v1939 = vrcp.pop %v1938
  %v1940 = vmul.f32 1.0, %v1939
  %v1941 = vmul.f32 %v1933, %v1702
  %v1942 = vmul.f32 %v1927, %v1934
  %v1943 = vadd.f32 %v1941, %v1942
  %v1944 = vtanh.pop %v1943
  %v1945 = vmul.f32 %v1940, %v1944
  %v1947 = vcombine.high %v1945, %v1945
  %v1949 = vunpack.c.l.s4 1966171168
  %v1950 = vunpack.c.0.s8 %v1949
  %v1951 = vlaneseq
  %v1952 = vshrl.u32 %v1951, 7
  %v1953 = vsub.s32 %v1950, %v1952
  %v1954 = vrot.slane %v1945, %v1953
  %v1956 = vunpack.c.l.s4 1966171168
  %v1957 = vunpack.c.0.s8 %v1956
  %v1958 = vlaneseq
  %v1959 = vshrl.u32 %v1958, 7
  %v1960 = vsub.s32 %v1957, %v1959
  %v1961 = vrot.slane %v1947, %v1960
  %v1962 = vcombine.high %v1954, %v1954
  %v1963 = vcombine.high %v1961, %v1961
  %v1965 = vunpack.c.l.s4 1966171168
  %v1966 = vunpack.c.0.s8 %v1965
  %v1967 = vlaneseq
  %v1968 = vshrl.u32 %v1967, 7
  %v1969 = vsub.s32 %v1966, %v1968
  %v1970 = vrot.slane %v1954, %v1969
  %v1972 = vunpack.c.l.s4 1966171168
  %v1973 = vunpack.c.0.s8 %v1972
  %v1974 = vlaneseq
  %v1975 = vshrl.u32 %v1974, 7
  %v1976 = vsub.s32 %v1973, %v1975
  %v1977 = vrot.slane %v1961, %v1976
  %v1979 = vunpack.c.l.s4 1966171168
  %v1980 = vunpack.c.0.s8 %v1979
  %v1981 = vlaneseq
  %v1982 = vshrl.u32 %v1981, 7
  %v1983 = vsub.s32 %v1980, %v1982
  %v1984 = vrot.slane %v1962, %v1983
  %v1986 = vunpack.c.l.s4 1966171168
  %v1987 = vunpack.c.0.s8 %v1986
  %v1988 = vlaneseq
  %v1989 = vshrl.u32 %v1988, 7
  %v1990 = vsub.s32 %v1987, %v1989
  %v1991 = vrot.slane %v1963, %v1990
  %v1992 = vcombine.high %v1970, %v1970
  %v1993 = vcombine.high %v1977, %v1977
  %v1994 = vcombine.high %v1984, %v1984
  %v1995 = vcombine.high %v1991, %v1991
  %2004 = vst [vmem:[%s2 + $0x7] sm:$0x1] %v1970
  %2005 = vst [vmem:[%s2 + $0xf] sm:$0x1] %v1984
  %2006 = vst [vmem:[%s2 + $0x17] sm:$0x1] %v1992
  %2007 = vst [vmem:[%s2 + $0x1f] sm:$0x1] %v1994
  %2008 = vst [vmem:[%s2 + $0x27] sm:$0x1] %v1977
  %2009 = vst [vmem:[%s2 + $0x2f] sm:$0x1] %v1991
  %2010 = vst [vmem:[%s2 + $0x37] sm:$0x1] %v1993
  %2011 = vst [vmem:[%s2 + $0x3f] sm:$0x1] %v1995
  %2012 = vst [vmem:[#allocation2] sm:$0xff] %v1945
  %2013 = vst [vmem:[#allocation3] sm:$0xff] %v1943
  %2014 = vst [vmem:[%s3] sm:$0xff] %v1945
  // Predicated region
  $region14: #{attn_seq2seq_forward.2} parent=0 // pred_check
    _
  $region15: #{attn_seq2seq_forward.2} parent=0 // pred_check_branch
    %2016 = sbr.rel (0) target = $region17
  $region16: #{attn_seq2seq_forward.2} parent=0 // pred_region
    _
  $region17: #{attn_seq2seq_forward.2} parent=0 // pred_fallthru
    _
  // Predicated region
  $region18: #{attn_seq2seq_forward.2} parent=0 // pred_check
    _
  $region19: #{attn_seq2seq_forward.2} parent=0 // pred_check_branch
    %2018 = sbr.rel (0) target = $region21
  $region20: #{attn_seq2seq_forward.2} parent=0 // pred_region
    _
  $region21: #{attn_seq2seq_forward.2} parent=0 // pred_fallthru
    _
  // Predicated region
  $region22: #{attn_seq2seq_forward.2} parent=0 // pred_check
    _
  $region23: #{attn_seq2seq_forward.2} parent=0 // pred_check_branch
    %2020 = sbr.rel (0) target = $region25
  $region24: #{attn_seq2seq_forward.2} parent=0 // pred_region
    _
  $region25: #{attn_seq2seq_forward.2} parent=0 // pred_fallthru
    _
  // Predicated region
  $region26: #{attn_seq2seq_forward.2} parent=0 // pred_check
    _
  $region27: #{attn_seq2seq_forward.2} parent=0 // pred_check_branch
    %2022 = sbr.rel (0) target = $region29
  $region28: #{attn_seq2seq_forward.2} parent=0 // pred_region
    _
  $region29: #{attn_seq2seq_forward.2} parent=0 // pred_fallthru
    _

// kernel: attn_seq2seq_forward.3
$region0: #{attn_seq2seq_forward.3}
  #allocation0 [shape = 'u32[]', space=smem, size = 0x4, offset = 0x4, fixed_abs, tag = 'smem constant byte address 0x4 - core index']
  #allocation1 [shape = 'u32[144,128]{1,0:T(1,128)}', space=vmem, size = 0x12000, scoped, tag = 'internal scratch']
  #allocation2 [shape = 'f32[8,128]{1,0:T(8,128)}', space=vmem, size = 0x1000, scoped, tag = 'scratch operand']
  #allocation3 [shape = 'f32[8,128]{1,0:T(8,128)}', space=vmem, size = 0x1000, scoped, tag = 'scratch operand']
  #allocation4 [shape = 's32[8,1]{1,0:T(8,128)}', space=vmem, size = 0x1000, scoped, tag = 'scratch operand']
  #allocation5 [shape = 's32[1]{0}', space=sflag, size = 0x4, scoped, tag = 'scoped memory for attn_seq2seq_forward.3']
  #allocation6 [shape = 'u8[512]{0}', space=smem, size = 0x200, scoped, tag = 'prefetched SMEM operand 0']
  #allocation7 [shape = 'u8[4096]{0}', space=smem, size = 0x1000, scoped, tag = 'prefetched SMEM operand 1']
  %s0 = inlined_call_operand.hbm [shape: s32[8], index: 0, kind: input, shape index: {}]
  %s1 = inlined_call_operand.hbm [shape: s32[8,8], index: 1, kind: input, shape index: {}]
  %s2 = inlined_call_operand.vmem [shape: f32[8,128], index: 2, kind: input, shape index: {}]
  %s3 = inlined_call_operand.vmem [shape: f32[8,8,128], index: 3, kind: input, shape index: {}]
  %s4 = inlined_call_operand.vmem [shape: f32[8,8,128], index: 4, kind: input, shape index: {}]
  %s5 = inlined_call_operand.vmem [shape: f32[128,128], index: 5, kind: input, shape index: {}]
  %s6 = inlined_call_operand.vmem [shape: f32[128,128], index: 6, kind: input, shape index: {}]
  %s7 = inlined_call_operand.hbm [shape: f32[1,128], index: 7, kind: input, shape index: {}]
  %s8 = inlined_call_operand.vmem [shape: f32[128,384], index: 8, kind: input, shape index: {}]
  %s9 = inlined_call_operand.vmem [shape: f32[128,384], index: 9, kind: input, shape index: {}]
  %s10 = inlined_call_operand.vmem [shape: f32[128,384], index: 10, kind: input, shape index: {}]
  %s11 = inlined_call_operand.hbm [shape: f32[1,384], index: 11, kind: input, shape index: {}]
  %s12 = inlined_call_operand.hbm [shape: f32[1,384], index: 12, kind: input, shape index: {}]
  %s13 = inlined_call_operand.vmem [shape: f32[128,128], index: 13, kind: input, shape index: {}]
  %s14 = inlined_call_operand.hbm [shape: f32[128,128], index: 14, kind: input, shape index: {}]
  %s15 = inlined_call_operand.hbm [shape: f32[1,128], index: 15, kind: input, shape index: {}]
  %s16 = inlined_call_operand.vmem [shape: f32[7,8,128], index: 16, kind: output, shape index: {}]
  %s17 = sld [smem:[#allocation0]]
  $region113: #{attn_seq2seq_forward.3} parent=0
    _
  %s19 = ssub.s32 1, %s17
  %s20 = scalar_select 0, %s19, %s17
  %22 = dma.hbm_to_smem %s0, 16, [#allocation6], [#allocation5]
  %24 = dma.hbm_to_smem %s1, 128, [#allocation7], [#allocation5]
  %25 = dma.done [#allocation5], 144
  %26 = sfence
  $region1: #{attn_seq2seq_forward.3} parent=0
    #allocation8 [shape = 'u8[512]{0}', space=vmem, size = 0x400, scoped, tag = 'input window, operand 7, single buffered']
    #allocation9 [shape = 's32[2]{0}', space=sflag, size = 0x8, scoped, tag = 'scoped memory for attn_seq2seq_forward.3']
    #allocation10 [shape = 'u8[1536]{0}', space=vmem, size = 0x800, scoped, tag = 'input window, operand 11, single buffered']
    #allocation11 [shape = 's32[1]{0}', space=sflag, size = 0x4, scoped, tag = 'scoped memory for attn_seq2seq_forward.3']
    #allocation12 [shape = 'u8[1536]{0}', space=vmem, size = 0x800, scoped, tag = 'input window, operand 12, single buffered']
    #allocation13 [shape = 'u8[65536]{0}', space=vmem, size = 0x10000, scoped, tag = 'input window, operand 14, single buffered']
    #allocation14 [shape = 's32[1]{0}', space=sflag, size = 0x4, scoped, tag = 'scoped memory for attn_seq2seq_forward.3']
    #allocation15 [shape = 'u8[512]{0}', space=vmem, size = 0x400, scoped, tag = 'input window, operand 15, single buffered']
    %27 = vsyncpa [#allocation9], 0
    %28 = vsyncpa [#allocation11], 0
    %29 = vsyncpa [#allocation14], 0
    loop: start=0, step=1, limit=9
    $region2: #{attn_seq2seq_forward.3} parent=1 // loop_pre_header
      _
    $region3: #{attn_seq2seq_forward.3} parent=1 // loop_header
      %s31 = sphi 0, %s35
      %p32 = scmp.ge.s32.totalorder %s31, 9
      %s39 = sphi 0, %s39
      %s41 = sphi 0, %s39
      %s42 = sphi 0, %s41
      %s56 = sphi 0, %s42
      %s60 = sphi 0, %s60
      %s62 = sphi 0, %s60
      %s63 = sphi 0, %s62
      %s77 = sphi 0, %s63
      %s81 = sphi 0, %s81
      %s83 = sphi 0, %s81
      %s84 = sphi 0, %s83
      %s98 = sphi 0, %s84
      %s102 = sphi 0, %s102
      %s104 = sphi 0, %s102
      %s105 = sphi 0, %s104
      %s119 = sphi 0, %s105
      %s123 = sphi 0, %s123
      %s125 = sphi 0, %s123
      %s126 = sphi 0, %s125
      %s140 = sphi 0, %s126
      %s144 = sphi 0, %s144
      %s146 = sphi 0, %s144
      %s147 = sphi 0, %s146
      %s161 = sphi 0, %s147
      %s165 = sphi 0, %s165
      %s167 = sphi 0, %s165
      %s168 = sphi 0, %s167
      %s182 = sphi 0, %s168
      %s186 = sphi 0, %s186
      %s188 = sphi 0, %s186
      %s189 = sphi 0, %s188
      %s203 = sphi 0, %s189
      %s207 = sphi 0, %s207
      %s209 = sphi 0, %s207
      %s210 = sphi 0, %s209
      %s224 = sphi 0, %s210
      %s228 = sphi 0, %s228
      %s230 = sphi 0, %s228
      %s231 = sphi 0, %s230
      %s245 = sphi 0, %s231
      %s249 = sphi 0, %s249
      %s251 = sphi 0, %s249
      %s252 = sphi 0, %s251
      %s266 = sphi 0, %s252
      %s270 = sphi 0, %s270
      %s272 = sphi 0, %s270
      %s273 = sphi 0, %s272
      %s287 = sphi 0, %s273
      %s291 = sphi 0, %s291
      %s293 = sphi 0, %s291
      %s294 = sphi 0, %s293
      %s308 = sphi 0, %s294
      %s312 = sphi 0, %s312
      %s314 = sphi 0, %s312
      %s315 = sphi 0, %s314
      %s329 = sphi 0, %s315
      %s335 = sphi 0, %s337
      %s338 = sphi 0, %s335
      %s339 = sphi 0, %s338
      %s355 = sphi 0, %s339
    $region4: #{attn_seq2seq_forward.3} parent=1 // loop_header_branch
      %34 = sbr.rel (%p32) target = $region8
    $region5: #{attn_seq2seq_forward.3} parent=1 // loop_body
      %s36 = ssub.s32 %s31, 1
      %s37 = ssub.s32 %s31, 2
      %s38 = sadd.s32 %s31, 1
      %s40 = sadd.s32 %s39, 1
      %p43 = scmp.eq.s32.totalorder %s31, 6
      %p44 = scmp.ne.s32.totalorder %s39, %s41
      %p45 = scmp.eq.s32.totalorder %s31, 0
      %p46 = por %p44, %p45
      %p47 = scmp.ne.s32.totalorder %s39, %s41
      %p48 = scmp.eq.s32.totalorder %s36, 6
      %p49 = por %p47, %p48
      %p50 = scmp.ne.s32.totalorder %s41, %s42
      %p51 = scmp.eq.s32.totalorder %s36, 0
      %p52 = por %p50, %p51
      %p53 = scmp.ne.s32.totalorder %s41, %s42
      %p54 = scmp.eq.s32.totalorder %s37, 6
      %p55 = por %p53, %p54
      %p57 = scmp.ne.s32.totalorder %s42, %s56
      %p58 = scmp.eq.s32.totalorder %s37, 0
      %p59 = por %p57, %p58
      %s61 = sadd.s32 %s60, 1
      %p64 = scmp.eq.s32.totalorder %s31, 6
      %p65 = scmp.ne.s32.totalorder %s60, %s62
      %p66 = scmp.eq.s32.totalorder %s31, 0
      %p67 = por %p65, %p66
      %p68 = scmp.ne.s32.totalorder %s60, %s62
      %p69 = scmp.eq.s32.totalorder %s36, 6
      %p70 = por %p68, %p69
      %p71 = scmp.ne.s32.totalorder %s62, %s63
      %p72 = scmp.eq.s32.totalorder %s36, 0
      %p73 = por %p71, %p72
      %p74 = scmp.ne.s32.totalorder %s62, %s63
      %p75 = scmp.eq.s32.totalorder %s37, 6
      %p76 = por %p74, %p75
      %p78 = scmp.ne.s32.totalorder %s63, %s77
      %p79 = scmp.eq.s32.totalorder %s37, 0
      %p80 = por %p78, %p79
      %s82 = sadd.s32 %s81, 1
      %p85 = scmp.eq.s32.totalorder %s31, 6
      %p86 = scmp.ne.s32.totalorder %s81, %s83
      %p87 = scmp.eq.s32.totalorder %s31, 0
      %p88 = por %p86, %p87
      %p89 = scmp.ne.s32.totalorder %s81, %s83
      %p90 = scmp.eq.s32.totalorder %s36, 6
      %p91 = por %p89, %p90
      %p92 = scmp.ne.s32.totalorder %s83, %s84
      %p93 = scmp.eq.s32.totalorder %s36, 0
      %p94 = por %p92, %p93
      %p95 = scmp.ne.s32.totalorder %s83, %s84
      %p96 = scmp.eq.s32.totalorder %s37, 6
      %p97 = por %p95, %p96
      %p99 = scmp.ne.s32.totalorder %s84, %s98
      %p100 = scmp.eq.s32.totalorder %s37, 0
      %p101 = por %p99, %p100
      %s103 = sadd.s32 %s102, 1
      %p106 = scmp.eq.s32.totalorder %s31, 6
      %p107 = scmp.ne.s32.totalorder %s102, %s104
      %p108 = scmp.eq.s32.totalorder %s31, 0
      %p109 = por %p107, %p108
      %p110 = scmp.ne.s32.totalorder %s102, %s104
      %p111 = scmp.eq.s32.totalorder %s36, 6
      %p112 = por %p110, %p111
      %p113 = scmp.ne.s32.totalorder %s104, %s105
      %p114 = scmp.eq.s32.totalorder %s36, 0
      %p115 = por %p113, %p114
      %p116 = scmp.ne.s32.totalorder %s104, %s105
      %p117 = scmp.eq.s32.totalorder %s37, 6
      %p118 = por %p116, %p117
      %p120 = scmp.ne.s32.totalorder %s105, %s119
      %p121 = scmp.eq.s32.totalorder %s37, 0
      %p122 = por %p120, %p121
      %s124 = sadd.s32 %s123, 1
      %p127 = scmp.eq.s32.totalorder %s31, 6
      %p128 = scmp.ne.s32.totalorder %s123, %s125
      %p129 = scmp.eq.s32.totalorder %s31, 0
      %p130 = por %p128, %p129
      %p131 = scmp.ne.s32.totalorder %s123, %s125
      %p132 = scmp.eq.s32.totalorder %s36, 6
      %p133 = por %p131, %p132
      %p134 = scmp.ne.s32.totalorder %s125, %s126
      %p135 = scmp.eq.s32.totalorder %s36, 0
      %p136 = por %p134, %p135
      %p137 = scmp.ne.s32.totalorder %s125, %s126
      %p138 = scmp.eq.s32.totalorder %s37, 6
      %p139 = por %p137, %p138
      %p141 = scmp.ne.s32.totalorder %s126, %s140
      %p142 = scmp.eq.s32.totalorder %s37, 0
      %p143 = por %p141, %p142
      %s145 = sadd.s32 %s144, 1
      %p148 = scmp.eq.s32.totalorder %s31, 6
      %p149 = scmp.ne.s32.totalorder %s144, %s146
      %p150 = scmp.eq.s32.totalorder %s31, 0
      %p151 = por %p149, %p150
      %p152 = scmp.ne.s32.totalorder %s144, %s146
      %p153 = scmp.eq.s32.totalorder %s36, 6
      %p154 = por %p152, %p153
      %p155 = scmp.ne.s32.totalorder %s146, %s147
      %p156 = scmp.eq.s32.totalorder %s36, 0
      %p157 = por %p155, %p156
      %p158 = scmp.ne.s32.totalorder %s146, %s147
      %p159 = scmp.eq.s32.totalorder %s37, 6
      %p160 = por %p158, %p159
      %p162 = scmp.ne.s32.totalorder %s147, %s161
      %p163 = scmp.eq.s32.totalorder %s37, 0
      %p164 = por %p162, %p163
      %s166 = sadd.s32 %s165, 1
      %p169 = scmp.eq.s32.totalorder %s31, 6
      %p170 = scmp.ne.s32.totalorder %s165, %s167
      %p171 = scmp.eq.s32.totalorder %s31, 0
      %p172 = por %p170, %p171
      %p173 = scmp.ne.s32.totalorder %s165, %s167
      %p174 = scmp.eq.s32.totalorder %s36, 6
      %p175 = por %p173, %p174
      %p176 = scmp.ne.s32.totalorder %s167, %s168
      %p177 = scmp.eq.s32.totalorder %s36, 0
      %p178 = por %p176, %p177
      %p179 = scmp.ne.s32.totalorder %s167, %s168
      %p180 = scmp.eq.s32.totalorder %s37, 6
      %p181 = por %p179, %p180
      %p183 = scmp.ne.s32.totalorder %s168, %s182
      %p184 = scmp.eq.s32.totalorder %s37, 0
      %p185 = por %p183, %p184
      %s187 = sadd.s32 %s186, 1
      %p190 = scmp.eq.s32.totalorder %s31, 6
      %p191 = scmp.ne.s32.totalorder %s186, %s188
      %p192 = scmp.eq.s32.totalorder %s31, 0
      %p193 = por %p191, %p192
      %p194 = scmp.ne.s32.totalorder %s186, %s188
      %p195 = scmp.eq.s32.totalorder %s36, 6
      %p196 = por %p194, %p195
      %p197 = scmp.ne.s32.totalorder %s188, %s189
      %p198 = scmp.eq.s32.totalorder %s36, 0
      %p199 = por %p197, %p198
      %p200 = scmp.ne.s32.totalorder %s188, %s189
      %p201 = scmp.eq.s32.totalorder %s37, 6
      %p202 = por %p200, %p201
      %p204 = scmp.ne.s32.totalorder %s189, %s203
      %p205 = scmp.eq.s32.totalorder %s37, 0
      %p206 = por %p204, %p205
      %s208 = sadd.s32 %s207, 1
      %p211 = scmp.eq.s32.totalorder %s31, 6
      %p212 = scmp.ne.s32.totalorder %s207, %s209
      %p213 = scmp.eq.s32.totalorder %s31, 0
      %p214 = por %p212, %p213
      %p215 = scmp.ne.s32.totalorder %s207, %s209
      %p216 = scmp.eq.s32.totalorder %s36, 6
      %p217 = por %p215, %p216
      %p218 = scmp.ne.s32.totalorder %s209, %s210
      %p219 = scmp.eq.s32.totalorder %s36, 0
      %p220 = por %p218, %p219
      %p221 = scmp.ne.s32.totalorder %s209, %s210
      %p222 = scmp.eq.s32.totalorder %s37, 6
      %p223 = por %p221, %p222
      %p225 = scmp.ne.s32.totalorder %s210, %s224
      %p226 = scmp.eq.s32.totalorder %s37, 0
      %p227 = por %p225, %p226
      %s229 = sadd.s32 %s228, 1
      %p232 = scmp.eq.s32.totalorder %s31, 6
      %p233 = scmp.ne.s32.totalorder %s228, %s230
      %p234 = scmp.eq.s32.totalorder %s31, 0
      %p235 = por %p233, %p234
      %p236 = scmp.ne.s32.totalorder %s228, %s230
      %p237 = scmp.eq.s32.totalorder %s36, 6
      %p238 = por %p236, %p237
      %p239 = scmp.ne.s32.totalorder %s230, %s231
      %p240 = scmp.eq.s32.totalorder %s36, 0
      %p241 = por %p239, %p240
      %p242 = scmp.ne.s32.totalorder %s230, %s231
      %p243 = scmp.eq.s32.totalorder %s37, 6
      %p244 = por %p242, %p243
      %p246 = scmp.ne.s32.totalorder %s231, %s245
      %p247 = scmp.eq.s32.totalorder %s37, 0
      %p248 = por %p246, %p247
      %s250 = sadd.s32 %s249, 1
      %p253 = scmp.eq.s32.totalorder %s31, 6
      %p254 = scmp.ne.s32.totalorder %s249, %s251
      %p255 = scmp.eq.s32.totalorder %s31, 0
      %p256 = por %p254, %p255
      %p257 = scmp.ne.s32.totalorder %s249, %s251
      %p258 = scmp.eq.s32.totalorder %s36, 6
      %p259 = por %p257, %p258
      %p260 = scmp.ne.s32.totalorder %s251, %s252
      %p261 = scmp.eq.s32.totalorder %s36, 0
      %p262 = por %p260, %p261
      %p263 = scmp.ne.s32.totalorder %s251, %s252
      %p264 = scmp.eq.s32.totalorder %s37, 6
      %p265 = por %p263, %p264
      %p267 = scmp.ne.s32.totalorder %s252, %s266
      %p268 = scmp.eq.s32.totalorder %s37, 0
      %p269 = por %p267, %p268
      %s271 = sadd.s32 %s270, 1
      %p274 = scmp.eq.s32.totalorder %s31, 6
      %p275 = scmp.ne.s32.totalorder %s270, %s272
      %p276 = scmp.eq.s32.totalorder %s31, 0
      %p277 = por %p275, %p276
      %p278 = scmp.ne.s32.totalorder %s270, %s272
      %p279 = scmp.eq.s32.totalorder %s36, 6
      %p280 = por %p278, %p279
      %p281 = scmp.ne.s32.totalorder %s272, %s273
      %p282 = scmp.eq.s32.totalorder %s36, 0
      %p283 = por %p281, %p282
      %p284 = scmp.ne.s32.totalorder %s272, %s273
      %p285 = scmp.eq.s32.totalorder %s37, 6
      %p286 = por %p284, %p285
      %p288 = scmp.ne.s32.totalorder %s273, %s287
      %p289 = scmp.eq.s32.totalorder %s37, 0
      %p290 = por %p288, %p289
      %s292 = sadd.s32 %s291, 1
      %p295 = scmp.eq.s32.totalorder %s31, 6
      %p296 = scmp.ne.s32.totalorder %s291, %s293
      %p297 = scmp.eq.s32.totalorder %s31, 0
      %p298 = por %p296, %p297
      %p299 = scmp.ne.s32.totalorder %s291, %s293
      %p300 = scmp.eq.s32.totalorder %s36, 6
      %p301 = por %p299, %p300
      %p302 = scmp.ne.s32.totalorder %s293, %s294
      %p303 = scmp.eq.s32.totalorder %s36, 0
      %p304 = por %p302, %p303
      %p305 = scmp.ne.s32.totalorder %s293, %s294
      %p306 = scmp.eq.s32.totalorder %s37, 6
      %p307 = por %p305, %p306
      %p309 = scmp.ne.s32.totalorder %s294, %s308
      %p310 = scmp.eq.s32.totalorder %s37, 0
      %p311 = por %p309, %p310
      %s313 = sadd.s32 %s312, 1
      %p316 = scmp.eq.s32.totalorder %s31, 6
      %p317 = scmp.ne.s32.totalorder %s312, %s314
      %p318 = scmp.eq.s32.totalorder %s31, 0
      %p319 = por %p317, %p318
      %p320 = scmp.ne.s32.totalorder %s312, %s314
      %p321 = scmp.eq.s32.totalorder %s36, 6
      %p322 = por %p320, %p321
      %p323 = scmp.ne.s32.totalorder %s314, %s315
      %p324 = scmp.eq.s32.totalorder %s36, 0
      %p325 = por %p323, %p324
      %p326 = scmp.ne.s32.totalorder %s314, %s315
      %p327 = scmp.eq.s32.totalorder %s37, 6
      %p328 = por %p326, %p327
      %p330 = scmp.ne.s32.totalorder %s315, %s329
      %p331 = scmp.eq.s32.totalorder %s37, 0
      %p332 = por %p330, %p331
      %s333 = ssub.s32 %s31, %s38
      %p334 = scmp.eq.s32.totalorder %s333, 0
      %s336 = sadd.s32 %s335, 1
      %s337 = scalar_select %p334, %s335, %s336
      %p340 = pneg %p334
      %p341 = scmp.eq.s32.totalorder %s31, 6
      %p342 = por %p340, %p341
      %p343 = scmp.ne.s32.totalorder %s335, %s338
      %p344 = scmp.eq.s32.totalorder %s31, 0
      %p345 = por %p343, %p344
      %p346 = scmp.ne.s32.totalorder %s335, %s338
      %p347 = scmp.eq.s32.totalorder %s36, 6
      %p348 = por %p346, %p347
      %p349 = scmp.ne.s32.totalorder %s338, %s339
      %p350 = scmp.eq.s32.totalorder %s36, 0
      %p351 = por %p349, %p350
      %p352 = scmp.ne.s32.totalorder %s338, %s339
      %p353 = scmp.eq.s32.totalorder %s37, 6
      %p354 = por %p352, %p353
      %p356 = scmp.ne.s32.totalorder %s339, %s355
      %p357 = scmp.eq.s32.totalorder %s37, 0
      %p358 = por %p356, %p357
      %p359 = scmp.le.s32.totalorder 1, %s31
      %p360 = scmp.lt.s32.totalorder %s31, 8
      %p361 = pnand %p359, %p360
      %p362 = pneg %p361
      // Predicated region
      $region9: #{attn_seq2seq_forward.3} parent=5 // pred_check
        _
      $region10: #{attn_seq2seq_forward.3} parent=5 // pred_check_branch
        %364 = sbr.rel (%p361) target = $region12
      $region11: #{attn_seq2seq_forward.3} parent=5 // pred_region
        %s365 = ssub.s32 %s31, 1
        // Predicated region
        $region13: #{attn_seq2seq_forward.3} parent=11 // pred_check
          %p366 = pneg %p52
        $region14: #{attn_seq2seq_forward.3} parent=11 // pred_check_branch
          %368 = sbr.rel (%p366) target = $region16
        $region15: #{attn_seq2seq_forward.3} parent=11 // pred_region
          _
        $region16: #{attn_seq2seq_forward.3} parent=11 // pred_fallthru
          _
        // Predicated region
        $region17: #{attn_seq2seq_forward.3} parent=11 // pred_check
          %p369 = pneg %p73
        $region18: #{attn_seq2seq_forward.3} parent=11 // pred_check_branch
          %371 = sbr.rel (%p369) target = $region20
        $region19: #{attn_seq2seq_forward.3} parent=11 // pred_region
          _
        $region20: #{attn_seq2seq_forward.3} parent=11 // pred_fallthru
          _
        // Predicated region
        $region21: #{attn_seq2seq_forward.3} parent=11 // pred_check
          %p372 = pneg %p94
        $region22: #{attn_seq2seq_forward.3} parent=11 // pred_check_branch
          %374 = sbr.rel (%p372) target = $region24
        $region23: #{attn_seq2seq_forward.3} parent=11 // pred_region
          _
        $region24: #{attn_seq2seq_forward.3} parent=11 // pred_fallthru
          _
        // Predicated region
        $region25: #{attn_seq2seq_forward.3} parent=11 // pred_check
          %p375 = pneg %p115
        $region26: #{attn_seq2seq_forward.3} parent=11 // pred_check_branch
          %377 = sbr.rel (%p375) target = $region28
        $region27: #{attn_seq2seq_forward.3} parent=11 // pred_region
          _
        $region28: #{attn_seq2seq_forward.3} parent=11 // pred_fallthru
          _
        // Predicated region
        $region29: #{attn_seq2seq_forward.3} parent=11 // pred_check
          %p378 = pneg %p136
        $region30: #{attn_seq2seq_forward.3} parent=11 // pred_check_branch
          %380 = sbr.rel (%p378) target = $region32
        $region31: #{attn_seq2seq_forward.3} parent=11 // pred_region
          _
        $region32: #{attn_seq2seq_forward.3} parent=11 // pred_fallthru
          _
        // Predicated region
        $region33: #{attn_seq2seq_forward.3} parent=11 // pred_check
          %p381 = pneg %p157
        $region34: #{attn_seq2seq_forward.3} parent=11 // pred_check_branch
          %383 = sbr.rel (%p381) target = $region36
        $region35: #{attn_seq2seq_forward.3} parent=11 // pred_region
          %s385 = ssub.s32 16, 16
          %386 = vsyncadd [#allocation9], %s385
          %s388 = sshll.u32 [#allocation8], 4
          %s389 = int_to_ptr.vmem [resolvable:$true] %s388
          %391 = dma.hbm_to_vmem [thread:$0]  %s7, 16, %s389, [#allocation9]
        $region36: #{attn_seq2seq_forward.3} parent=11 // pred_fallthru
          _
        // Predicated region
        $region37: #{attn_seq2seq_forward.3} parent=11 // pred_check
          %p392 = pneg %p178
        $region38: #{attn_seq2seq_forward.3} parent=11 // pred_check_branch
          %394 = sbr.rel (%p392) target = $region40
        $region39: #{attn_seq2seq_forward.3} parent=11 // pred_region
          _
        $region40: #{attn_seq2seq_forward.3} parent=11 // pred_fallthru
          _
        // Predicated region
        $region41: #{attn_seq2seq_forward.3} parent=11 // pred_check
          %p395 = pneg %p199
        $region42: #{attn_seq2seq_forward.3} parent=11 // pred_check_branch
          %397 = sbr.rel (%p395) target = $region44
        $region43: #{attn_seq2seq_forward.3} parent=11 // pred_region
          _
        $region44: #{attn_seq2seq_forward.3} parent=11 // pred_fallthru
          _
        // Predicated region
        $region45: #{attn_seq2seq_forward.3} parent=11 // pred_check
          %p398 = pneg %p220
        $region46: #{attn_seq2seq_forward.3} parent=11 // pred_check_branch
          %400 = sbr.rel (%p398) target = $region48
        $region47: #{attn_seq2seq_forward.3} parent=11 // pred_region
          _
        $region48: #{attn_seq2seq_forward.3} parent=11 // pred_fallthru
          _
        // Predicated region
        $region49: #{attn_seq2seq_forward.3} parent=11 // pred_check
          %p401 = pneg %p241
        $region50: #{attn_seq2seq_forward.3} parent=11 // pred_check_branch
          %403 = sbr.rel (%p401) target = $region52
        $region51: #{attn_seq2seq_forward.3} parent=11 // pred_region
          %s405 = ssub.s32 48, 48
          %406 = vsyncadd [#allocation11], %s405
          %s408 = sshll.u32 [#allocation10], 4
          %s409 = int_to_ptr.vmem [resolvable:$true] %s408
          %411 = dma.hbm_to_vmem [thread:$0]  %s11, 48, %s409, [#allocation11]
        $region52: #{attn_seq2seq_forward.3} parent=11 // pred_fallthru
          _
        // Predicated region
        $region53: #{attn_seq2seq_forward.3} parent=11 // pred_check
          %p412 = pneg %p262
        $region54: #{attn_seq2seq_forward.3} parent=11 // pred_check_branch
          %414 = sbr.rel (%p412) target = $region56
        $region55: #{attn_seq2seq_forward.3} parent=11 // pred_region
          %s416 = ssub.s32 48, 48
          %417 = vsyncadd [#allocation11], %s416
          %s419 = sshll.u32 [#allocation12], 4
          %s420 = int_to_ptr.vmem [resolvable:$true] %s419
          %422 = dma.hbm_to_vmem [thread:$0]  %s12, 48, %s420, [#allocation11]
        $region56: #{attn_seq2seq_forward.3} parent=11 // pred_fallthru
          _
        // Predicated region
        $region57: #{attn_seq2seq_forward.3} parent=11 // pred_check
          %p423 = pneg %p283
        $region58: #{attn_seq2seq_forward.3} parent=11 // pred_check_branch
          %425 = sbr.rel (%p423) target = $region60
        $region59: #{attn_seq2seq_forward.3} parent=11 // pred_region
          _
        $region60: #{attn_seq2seq_forward.3} parent=11 // pred_fallthru
          _
        // Predicated region
        $region61: #{attn_seq2seq_forward.3} parent=11 // pred_check
          %p426 = pneg %p304
        $region62: #{attn_seq2seq_forward.3} parent=11 // pred_check_branch
          %428 = sbr.rel (%p426) target = $region64
        $region63: #{attn_seq2seq_forward.3} parent=11 // pred_region
          %s430 = ssub.s32 2048, 2048
          %431 = vsyncadd [#allocation14], %s430
          %s432 = sshll.u32 [#allocation13], 4
          %s433 = int_to_ptr.vmem [resolvable:$true] %s432
          %438 = dma.hbm_to_vmem [thread:$0]  %s14, 2048, %s433, [#allocation14], 128, 128, 8
        $region64: #{attn_seq2seq_forward.3} parent=11 // pred_fallthru
          _
        // Predicated region
        $region65: #{attn_seq2seq_forward.3} parent=11 // pred_check
          %p439 = pneg %p325
        $region66: #{attn_seq2seq_forward.3} parent=11 // pred_check_branch
          %441 = sbr.rel (%p439) target = $region68
        $region67: #{attn_seq2seq_forward.3} parent=11 // pred_region
          %s443 = ssub.s32 16, 16
          %444 = vsyncadd [#allocation14], %s443
          %s446 = sshll.u32 [#allocation15], 4
          %s447 = int_to_ptr.vmem [resolvable:$true] %s446
          %449 = dma.hbm_to_vmem [thread:$0]  %s15, 16, %s447, [#allocation14]
        $region68: #{attn_seq2seq_forward.3} parent=11 // pred_fallthru
          _
      $region12: #{attn_seq2seq_forward.3} parent=5 // pred_fallthru
        _
      %p450 = scmp.lt.s32.totalorder %s31, 7
      // Predicated region
      $region69: #{attn_seq2seq_forward.3} parent=5 // pred_check
        %p451 = pneg %p450
      $region70: #{attn_seq2seq_forward.3} parent=5 // pred_check_branch
        %453 = sbr.rel (%p451) target = $region72
      $region71: #{attn_seq2seq_forward.3} parent=5 // pred_region
        _
      $region72: #{attn_seq2seq_forward.3} parent=5 // pred_fallthru
        _
      %p454 = scmp.le.s32.totalorder 1, %s31
      %p455 = scmp.lt.s32.totalorder %s31, 8
      %p456 = pnand %p454, %p455
      %p457 = pneg %p456
      // Predicated region
      $region73: #{attn_seq2seq_forward.3} parent=5 // pred_check
        _
      $region74: #{attn_seq2seq_forward.3} parent=5 // pred_check_branch
        %459 = sbr.rel (%p456) target = $region76
      $region75: #{attn_seq2seq_forward.3} parent=5 // pred_region
        %s460 = ssub.s32 %s31, 1
        // Predicated region
        $region77: #{attn_seq2seq_forward.3} parent=75 // pred_check
          %p461 = pneg %p157
        $region78: #{attn_seq2seq_forward.3} parent=75 // pred_check_branch
          %463 = sbr.rel (%p461) target = $region80
        $region79: #{attn_seq2seq_forward.3} parent=75 // pred_region
          %464 = dma.done [#allocation9], 16
        $region80: #{attn_seq2seq_forward.3} parent=75 // pred_fallthru
          _
        // Predicated region
        $region81: #{attn_seq2seq_forward.3} parent=75 // pred_check
          %p465 = pneg %p241
        $region82: #{attn_seq2seq_forward.3} parent=75 // pred_check_branch
          %467 = sbr.rel (%p465) target = $region84
        $region83: #{attn_seq2seq_forward.3} parent=75 // pred_region
          %468 = dma.done [#allocation11], 48
        $region84: #{attn_seq2seq_forward.3} parent=75 // pred_fallthru
          _
        // Predicated region
        $region85: #{attn_seq2seq_forward.3} parent=75 // pred_check
          %p469 = pneg %p262
        $region86: #{attn_seq2seq_forward.3} parent=75 // pred_check_branch
          %471 = sbr.rel (%p469) target = $region88
        $region87: #{attn_seq2seq_forward.3} parent=75 // pred_region
          %472 = dma.done [#allocation11], 48
        $region88: #{attn_seq2seq_forward.3} parent=75 // pred_fallthru
          _
        // Predicated region
        $region89: #{attn_seq2seq_forward.3} parent=75 // pred_check
          %p473 = pneg %p304
        $region90: #{attn_seq2seq_forward.3} parent=75 // pred_check_branch
          %475 = sbr.rel (%p473) target = $region92
        $region91: #{attn_seq2seq_forward.3} parent=75 // pred_region
          %476 = dma.done [#allocation14], 2048
        $region92: #{attn_seq2seq_forward.3} parent=75 // pred_fallthru
          _
        // Predicated region
        $region93: #{attn_seq2seq_forward.3} parent=75 // pred_check
          %p477 = pneg %p325
        $region94: #{attn_seq2seq_forward.3} parent=75 // pred_check_branch
          %479 = sbr.rel (%p477) target = $region96
        $region95: #{attn_seq2seq_forward.3} parent=75 // pred_region
          %480 = dma.done [#allocation14], 16
        $region96: #{attn_seq2seq_forward.3} parent=75 // pred_fallthru
          _
        %p481 = pneg %p52
        %p482 = pneg %p49
        %p483 = pneg %p73
        %p484 = pneg %p70
        %p485 = pneg %p94
        %p486 = pneg %p91
        %p487 = pneg %p115
        %p488 = pneg %p112
        %p489 = pneg %p136
        %p490 = pneg %p133
        %p491 = pneg %p157
        %p492 = pneg %p154
        %p493 = pneg %p178
        %p494 = pneg %p175
        %p495 = pneg %p199
        %p496 = pneg %p196
        %p497 = pneg %p220
        %p498 = pneg %p217
        %p499 = pneg %p241
        %p500 = pneg %p238
        %p501 = pneg %p262
        %p502 = pneg %p259
        %p503 = pneg %p283
        %p504 = pneg %p280
        %p505 = pneg %p304
        %p506 = pneg %p301
        %p507 = pneg %p325
        %p508 = pneg %p322
        %p509 = pneg %p351
        %p510 = pneg %p348
        %p511 = scmp.lt.s32.totalorder %s36, 6
        %s512 = scalar_select %p511, %s36, 6
        %s513 = smul.addr %s512, 8
        %s514 = scalar_lea.vmem %s16, %s513
        %p515 = scmp.lt.s32.totalorder %s36, 6
        %s516 = scalar_select %p515, %s36, 6
        %s517 = smul.addr %s516, 8
        %s518 = scalar_lea.vmem %s16, %s517
        %p519 = scmp.eq.s32.totalorder %s36, 0
        // Predicated region
        $region97: #{attn_seq2seq_forward.3} parent=75 // pred_check
          %p520 = pneg %p519
        $region98: #{attn_seq2seq_forward.3} parent=75 // pred_check_branch
          %522 = sbr.rel (%p520) target = $region100
        $region99: #{attn_seq2seq_forward.3} parent=75 // pred_region
          %v523 = vld [vmem:[%s2] sm:$0xff]
          %524 = vst [vmem:[#allocation2] sm:$0xff] %v523
        $region100: #{attn_seq2seq_forward.3} parent=75 // pred_fallthru
          _
        %s525 = sld [smem:[#allocation6 + %s36]]
        %p526 = scmp.gt.s32.totalorder %s525, 0
        %p527 = por %p519, %p526
        %s528 = smul.u32 %s36, 128
        %s529 = sld [smem:[#allocation7 + %s528]]
        %v530 = vld [vmem:[#allocation4] sm:$0x1]
        %s531 = vtos %v530
        %s532 = scalar_select %p527, %s529, %s531
        %s533 = scalar_lea.vmem %s5, %s532
        %v534 = vld [vmem:[%s533] sm:$0x1]
        %535 = vst [vmem:[#allocation3] sm:$0x1] %v534
        %s536 = sadd.s32 %s528, 1
        %s537 = sld [smem:[#allocation7 + %s536]]
        %v538 = vld [vmem:[#allocation4 + $0x1] sm:$0x1]
        %s539 = vtos %v538
        %s540 = scalar_select %p527, %s537, %s539
        %s541 = scalar_lea.vmem %s5, %s540
        %v542 = vld [vmem:[%s541] sm:$0x1]
        %543 = vst [vmem:[#allocation3 + $0x1] sm:$0x1] %v542
        %s544 = sadd.s32 %s528, 2
        %s545 = sld [smem:[#allocation7 + %s544]]
        %v546 = vld [vmem:[#allocation4 + $0x2] sm:$0x1]
        %s547 = vtos %v546
        %s548 = scalar_select %p527, %s545, %s547
        %s549 = scalar_lea.vmem %s5, %s548
        %v550 = vld [vmem:[%s549] sm:$0x1]
        %551 = vst [vmem:[#allocation3 + $0x2] sm:$0x1] %v550
        %s552 = sadd.s32 %s528, 3
        %s553 = sld [smem:[#allocation7 + %s552]]
        %v554 = vld [vmem:[#allocation4 + $0x3] sm:$0x1]
        %s555 = vtos %v554
        %s556 = scalar_select %p527, %s553, %s555
        %s557 = scalar_lea.vmem %s5, %s556
        %v558 = vld [vmem:[%s557] sm:$0x1]
        %559 = vst [vmem:[#allocation3 + $0x3] sm:$0x1] %v558
        %s560 = sadd.s32 %s528, 4
        %s561 = sld [smem:[#allocation7 + %s560]]
        %v562 = vld [vmem:[#allocation4 + $0x4] sm:$0x1]
        %s563 = vtos %v562
        %s564 = scalar_select %p527, %s561, %s563
        %s565 = scalar_lea.vmem %s5, %s564
        %v566 = vld [vmem:[%s565] sm:$0x1]
        %567 = vst [vmem:[#allocation3 + $0x4] sm:$0x1] %v566
        %s568 = sadd.s32 %s528, 5
        %s569 = sld [smem:[#allocation7 + %s568]]
        %v570 = vld [vmem:[#allocation4 + $0x5] sm:$0x1]
        %s571 = vtos %v570
        %s572 = scalar_select %p527, %s569, %s571
        %s573 = scalar_lea.vmem %s5, %s572
        %v574 = vld [vmem:[%s573] sm:$0x1]
        %575 = vst [vmem:[#allocation3 + $0x5] sm:$0x1] %v574
        %s576 = sadd.s32 %s528, 6
        %s577 = sld [smem:[#allocation7 + %s576]]
        %v578 = vld [vmem:[#allocation4 + $0x6] sm:$0x1]
        %s579 = vtos %v578
        %s580 = scalar_select %p527, %s577, %s579
        %s581 = scalar_lea.vmem %s5, %s580
        %v582 = vld [vmem:[%s581] sm:$0x1]
        %583 = vst [vmem:[#allocation3 + $0x6] sm:$0x1] %v582
        %s584 = sadd.s32 %s528, 7
        %s585 = sld [smem:[#allocation7 + %s584]]
        %v586 = vld [vmem:[#allocation4 + $0x7] sm:$0x1]
        %s587 = vtos %v586
        %s588 = scalar_select %p527, %s585, %s587
        %s589 = scalar_lea.vmem %s5, %s588
        %v590 = vld [vmem:[%s589] sm:$0x1]
        %591 = vst [vmem:[#allocation3 + $0x7] sm:$0x1] %v590
        %v592 = vld [vmem:[#allocation3] sm:$0xff]
        %v593 = vld [vmem:[#allocation2] sm:$0xff]
        %v594 = vld [vmem:[%s3] sm:$0xff]
        %v595 = vld [vmem:[%s3 + $0x8] sm:$0xff]
        %v596 = vld [vmem:[%s3 + $0x10] sm:$0xff]
        %v597 = vld [vmem:[%s3 + $0x18] sm:$0xff]
        %v598 = vld [vmem:[%s3 + $0x20] sm:$0xff]
        %v599 = vld [vmem:[%s3 + $0x28] sm:$0xff]
        %v600 = vld [vmem:[%s3 + $0x30] sm:$0xff]
        %v601 = vld [vmem:[%s3 + $0x38] sm:$0xff]
        %v602 = vld [vmem:[%s4] sm:$0xff]
        %v603 = vld [vmem:[%s4 + $0x8] sm:$0xff]
        %v604 = vld [vmem:[%s4 + $0x10] sm:$0xff]
        %v605 = vld [vmem:[%s4 + $0x18] sm:$0xff]
        %v606 = vld [vmem:[%s4 + $0x20] sm:$0xff]
        %v607 = vld [vmem:[%s4 + $0x28] sm:$0xff]
        %v608 = vld [vmem:[%s4 + $0x30] sm:$0xff]
        %v609 = vld [vmem:[%s4 + $0x38] sm:$0xff]
        %v610 = vld [vmem:[%s6] sm:$0xff]
        %v611 = vld [vmem:[%s6 + $0x8] sm:$0xff]
        %v612 = vld [vmem:[%s6 + $0x10] sm:$0xff]
        %v613 = vld [vmem:[%s6 + $0x18] sm:$0xff]
        %v614 = vld [vmem:[%s6 + $0x20] sm:$0xff]
        %v615 = vld [vmem:[%s6 + $0x28] sm:$0xff]
        %v616 = vld [vmem:[%s6 + $0x30] sm:$0xff]
        %v617 = vld [vmem:[%s6 + $0x38] sm:$0xff]
        %v618 = vld [vmem:[%s6 + $0x40] sm:$0xff]
        %v619 = vld [vmem:[%s6 + $0x48] sm:$0xff]
        %v620 = vld [vmem:[%s6 + $0x50] sm:$0xff]
        %v621 = vld [vmem:[%s6 + $0x58] sm:$0xff]
        %v622 = vld [vmem:[%s6 + $0x60] sm:$0xff]
        %v623 = vld [vmem:[%s6 + $0x68] sm:$0xff]
        %v624 = vld [vmem:[%s6 + $0x70] sm:$0xff]
        %v625 = vld [vmem:[%s6 + $0x78] sm:$0xff]
        %626 = vmatprep.subr.mxu0 0.0
        %627 = vmatpush1.msra.mxu0 %v625
        %628 = vmatprep.subr.mxu0 0.0
        %629 = vmatpush1.msra.mxu0 %v624
        %630 = vmatprep.subr.mxu0 0.0
        %631 = vmatpush1.msra.mxu0 %v623
        %632 = vmatprep.subr.mxu0 0.0
        %633 = vmatpush1.msra.mxu0 %v622
        %634 = vmatprep.subr.mxu0 0.0
        %635 = vmatpush1.msra.mxu0 %v621
        %636 = vmatprep.subr.mxu0 0.0
        %637 = vmatpush1.msra.mxu0 %v620
        %638 = vmatprep.subr.mxu0 0.0
        %639 = vmatpush1.msra.mxu0 %v619
        %640 = vmatprep.subr.mxu0 0.0
        %641 = vmatpush1.msra.mxu0 %v618
        %642 = vmatprep.subr.mxu0 0.0
        %643 = vmatpush1.msra.mxu0 %v617
        %644 = vmatprep.subr.mxu0 0.0
        %645 = vmatpush1.msra.mxu0 %v616
        %646 = vmatprep.subr.mxu0 0.0
        %647 = vmatpush1.msra.mxu0 %v615
        %648 = vmatprep.subr.mxu0 0.0
        %649 = vmatpush1.msra.mxu0 %v614
        %650 = vmatprep.subr.mxu0 0.0
        %651 = vmatpush1.msra.mxu0 %v613
        %652 = vmatprep.subr.mxu0 0.0
        %653 = vmatpush1.msra.mxu0 %v612
        %654 = vmatprep.subr.mxu0 0.0
        %655 = vmatpush1.msra.mxu0 %v611
        %656 = vmatprep.subr.mxu0 0.0
        %657 = vmatpush1.msra.mxu0 %v610
        %658 = vmatprep.subr.mxu0 0.0
        %659 = vmatpush2.msra.mxu0 0.0
        %660 = vmatprep.subr.mxu0 0.0
        %661 = vmatpush2.msra.mxu0 0.0
        %662 = vmatprep.subr.mxu0 0.0
        %663 = vmatpush2.msra.mxu0 0.0
        %664 = vmatprep.subr.mxu0 0.0
        %665 = vmatpush2.msra.mxu0 0.0
        %666 = vmatprep.subr.mxu0 0.0
        %667 = vmatpush2.msra.mxu0 0.0
        %668 = vmatprep.subr.mxu0 0.0
        %669 = vmatpush2.msra.mxu0 0.0
        %670 = vmatprep.subr.mxu0 0.0
        %671 = vmatpush2.msra.mxu0 0.0
        %672 = vmatprep.subr.mxu0 0.0
        %673 = vmatpush2.msra.mxu0 0.0
        %674 = vmatprep.subr.mxu0 0.0
        %675 = vmatpush2.msra.mxu0 0.0
        %676 = vmatprep.subr.mxu0 0.0
        %677 = vmatpush2.msra.mxu0 0.0
        %678 = vmatprep.subr.mxu0 0.0
        %679 = vmatpush2.msra.mxu0 0.0
        %680 = vmatprep.subr.mxu0 0.0
        %681 = vmatpush2.msra.mxu0 0.0
        %682 = vmatprep.subr.mxu0 0.0
        %683 = vmatpush2.msra.mxu0 0.0
        %684 = vmatprep.subr.mxu0 0.0
        %685 = vmatpush2.msra.mxu0 0.0
        %686 = vmatprep.subr.mxu0 0.0
        %687 = vmatpush2.msra.mxu0 0.0
        %688 = vmatprep.subr.mxu0 0.0
        %689 = vmatpush2.msra.mxu0 0.0
        %690 = vmatprep.mubr.f32.mxu0 0.0
        %691 = vmatmul.mubr.f32.gmra.mxu0 %v593
        %v692 = vpop.f32.mrf.mxu0
        %v693 = vadd.f32 0.0, %v692
        %v694 = vpop.f32.mrf.mxu0
        %695 = vdwg.mxu0
        %v697 = vcombine.high %v693, %v693
        %v699 = vunpack.c.l.s4 1966171168
        %v700 = vunpack.c.0.s8 %v699
        %v701 = vlaneseq
        %v702 = vshrl.u32 %v701, 7
        %v703 = vsub.s32 %v700, %v702
        %v704 = vrot.slane %v693, %v703
        %v706 = vunpack.c.l.s4 1966171168
        %v707 = vunpack.c.0.s8 %v706
        %v708 = vlaneseq
        %v709 = vshrl.u32 %v708, 7
        %v710 = vsub.s32 %v707, %v709
        %v711 = vrot.slane %v697, %v710
        %v712 = vcombine.high %v704, %v704
        %v713 = vcombine.high %v711, %v711
        %v715 = vunpack.c.l.s4 1966171168
        %v716 = vunpack.c.0.s8 %v715
        %v717 = vlaneseq
        %v718 = vshrl.u32 %v717, 7
        %v719 = vsub.s32 %v716, %v718
        %v720 = vrot.slane %v704, %v719
        %v722 = vunpack.c.l.s4 1966171168
        %v723 = vunpack.c.0.s8 %v722
        %v724 = vlaneseq
        %v725 = vshrl.u32 %v724, 7
        %v726 = vsub.s32 %v723, %v725
        %v727 = vrot.slane %v711, %v726
        %v729 = vunpack.c.l.s4 1966171168
        %v730 = vunpack.c.0.s8 %v729
        %v731 = vlaneseq
        %v732 = vshrl.u32 %v731, 7
        %v733 = vsub.s32 %v730, %v732
        %v734 = vrot.slane %v712, %v733
        %v736 = vunpack.c.l.s4 1966171168
        %v737 = vunpack.c.0.s8 %v736
        %v738 = vlaneseq
        %v739 = vshrl.u32 %v738, 7
        %v740 = vsub.s32 %v737, %v739
        %v741 = vrot.slane %v713, %v740
        %v742 = vcombine.high %v720, %v720
        %v743 = vcombine.high %v727, %v727
        %v744 = vcombine.high %v734, %v734
        %v745 = vcombine.high %v741, %v741
        %v746 = vlaneseq
        %v747 = vshrl.u32 %v746, 7
        %v748 = vsub.s32 0, %v747
        %v749 = vrot.slane %v720, %v748
        %v750 = vlaneseq
        %v751 = vshrl.u32 %v750, 7
        %v752 = vsub.s32 0, %v751
        %v753 = vrot.slane %v734, %v752
        %v754 = vlaneseq
        %v755 = vshrl.u32 %v754, 7
        %v756 = vsub.s32 0, %v755
        %v757 = vrot.slane %v742, %v756
        %v758 = vlaneseq
        %v759 = vshrl.u32 %v758, 7
        %v760 = vsub.s32 0, %v759
        %v761 = vrot.slane %v744, %v760
        %v762 = vlaneseq
        %v763 = vshrl.u32 %v762, 7
        %v764 = vsub.s32 0, %v763
        %v765 = vrot.slane %v727, %v764
        %v766 = vlaneseq
        %v767 = vshrl.u32 %v766, 7
        %v768 = vsub.s32 0, %v767
        %v769 = vrot.slane %v741, %v768
        %v770 = vlaneseq
        %v771 = vshrl.u32 %v770, 7
        %v772 = vsub.s32 0, %v771
        %v773 = vrot.slane %v743, %v772
        %v774 = vlaneseq
        %v775 = vshrl.u32 %v774, 7
        %v776 = vsub.s32 0, %v775
        %v777 = vrot.slane %v745, %v776
        %v786 = vadd.f32 %v602, %v749
        %v787 = vadd.f32 %v603, %v753
        %v788 = vadd.f32 %v604, %v757
        %v789 = vadd.f32 %v605, %v761
        %v790 = vadd.f32 %v606, %v765
        %v791 = vadd.f32 %v607, %v769
        %v792 = vadd.f32 %v608, %v773
        %v793 = vadd.f32 %v609, %v777
        %v794 = vtanh.pop %v786
        %v795 = vtanh.pop %v787
        %v796 = vtanh.pop %v788
        %v797 = vtanh.pop %v789
        %v798 = vtanh.pop %v790
        %v799 = vtanh.pop %v791
        %v800 = vtanh.pop %v792
        %v801 = vtanh.pop %v793
        %v802 = vld [vmem:[#allocation8] sm:$0x1]
        %v804 = vlaneseq
        %v805 = vshrl.u32 %v804, 7
        %v806 = vsub.s32 0, %v805
        %v807 = vrot.slane %v802, %v806
        %v809 = vmul.f32 %v794, %v807
        %v810 = vmul.f32 %v795, %v807
        %v811 = vmul.f32 %v796, %v807
        %v812 = vmul.f32 %v797, %v807
        %v813 = vmul.f32 %v798, %v807
        %v814 = vmul.f32 %v799, %v807
        %v815 = vmul.f32 %v800, %v807
        %v816 = vmul.f32 %v801, %v807
        %817 = vadd.xlane.f32.xlu0 %v809
        %v818 = vpop.xlane.xlu0 %817
        %819 = vadd.xlane.f32.xlu0 %v810
        %v820 = vpop.xlane.xlu0 %819
        %821 = vadd.xlane.f32.xlu0 %v811
        %v822 = vpop.xlane.xlu0 %821
        %823 = vadd.xlane.f32.xlu0 %v812
        %v824 = vpop.xlane.xlu0 %823
        %825 = vadd.xlane.f32.xlu0 %v813
        %v826 = vpop.xlane.xlu0 %825
        %827 = vadd.xlane.f32.xlu0 %v814
        %v828 = vpop.xlane.xlu0 %827
        %829 = vadd.xlane.f32.xlu0 %v815
        %v830 = vpop.xlane.xlu0 %829
        %831 = vadd.xlane.f32.xlu0 %v816
        %v832 = vpop.xlane.xlu0 %831
        %v841 = vlaneseq
        %v842 = vand.u32 %v841, 127
        %v843 = vlaneseq
        %v844 = vshrl.u32 %v843, 7
        %v845 = vsub.s32 %v842, %v844
        %v846 = vrot.slane %v818, %v845
        %v847 = vlaneseq
        %v848 = vshrl.u32 %v847, 7
        %v849 = vsub.s32 %v842, %v848
        %v850 = vrot.slane %v820, %v849
        %v851 = vlaneseq
        %v852 = vshrl.u32 %v851, 7
        %v853 = vsub.s32 %v842, %v852
        %v854 = vrot.slane %v822, %v853
        %v855 = vlaneseq
        %v856 = vshrl.u32 %v855, 7
        %v857 = vsub.s32 %v842, %v856
        %v858 = vrot.slane %v824, %v857
        %v859 = vlaneseq
        %v860 = vshrl.u32 %v859, 7
        %v861 = vsub.s32 %v842, %v860
        %v862 = vrot.slane %v826, %v861
        %v863 = vlaneseq
        %v864 = vshrl.u32 %v863, 7
        %v865 = vsub.s32 %v842, %v864
        %v866 = vrot.slane %v828, %v865
        %v867 = vlaneseq
        %v868 = vshrl.u32 %v867, 7
        %v869 = vsub.s32 %v842, %v868
        %v870 = vrot.slane %v830, %v869
        %v871 = vlaneseq
        %v872 = vshrl.u32 %v871, 7
        %v873 = vsub.s32 %v842, %v872
        %v874 = vrot.slane %v832, %v873
        %vm875 = vcmask 1041409
        %v876 = vsel %vm875, %v850, %v846
        %vm877 = vcmask 1042434
        %v878 = vsel %vm877, %v854, %v876
        %vm879 = vcmask 1043459
        %v880 = vsel %vm879, %v858, %v878
        %vm881 = vcmask 1044484
        %v882 = vsel %vm881, %v862, %v880
        %vm883 = vcmask 1045509
        %v884 = vsel %vm883, %v866, %v882
        %vm885 = vcmask 1046534
        %v886 = vsel %vm885, %v870, %v884
        %vm887 = vcmask 1047559
        %v888 = vsel %vm887, %v874, %v886
        %vm890 = vcmask 64512
        %v891 = vsel %vm890, %v888, -inf
        %892 = vmax.xlane.f32.xlu0 %v891
        %v893 = vpop.xlane.xlu0 %892
        %v895 = vlaneseq
        %v896 = vshrl.u32 %v895, 7
        %v897 = vsub.s32 0, %v896
        %v898 = vrot.slane %v893, %v897
        %v899 = vlaneseq
        %v900 = vshrl.u32 %v899, 7
        %v901 = vsub.s32 1, %v900
        %v902 = vrot.slane %v893, %v901
        %v903 = vlaneseq
        %v904 = vshrl.u32 %v903, 7
        %v905 = vsub.s32 2, %v904
        %v906 = vrot.slane %v893, %v905
        %v907 = vlaneseq
        %v908 = vshrl.u32 %v907, 7
        %v909 = vsub.s32 3, %v908
        %v910 = vrot.slane %v893, %v909
        %v911 = vlaneseq
        %v912 = vshrl.u32 %v911, 7
        %v913 = vsub.s32 4, %v912
        %v914 = vrot.slane %v893, %v913
        %v915 = vlaneseq
        %v916 = vshrl.u32 %v915, 7
        %v917 = vsub.s32 5, %v916
        %v918 = vrot.slane %v893, %v917
        %v919 = vlaneseq
        %v920 = vshrl.u32 %v919, 7
        %v921 = vsub.s32 6, %v920
        %v922 = vrot.slane %v893, %v921
        %v923 = vlaneseq
        %v924 = vshrl.u32 %v923, 7
        %v925 = vsub.s32 7, %v924
        %v926 = vrot.slane %v893, %v925
        %v935 = vsub.f32 %v818, %v898
        %v936 = vsub.f32 %v820, %v902
        %v937 = vsub.f32 %v822, %v906
        %v938 = vsub.f32 %v824, %v910
        %v939 = vsub.f32 %v826, %v914
        %v940 = vsub.f32 %v828, %v918
        %v941 = vsub.f32 %v830, %v922
        %v942 = vsub.f32 %v832, %v926
        %v943 = vmul.f32 %v935, 1.442695
        %v944 = vpow.pop %v943
        %v945 = vmul.f32 %v936, 1.442695
        %v946 = vpow.pop %v945
        %v947 = vmul.f32 %v937, 1.442695
        %v948 = vpow.pop %v947
        %v949 = vmul.f32 %v938, 1.442695
        %v950 = vpow.pop %v949
        %v951 = vmul.f32 %v939, 1.442695
        %v952 = vpow.pop %v951
        %v953 = vmul.f32 %v940, 1.442695
        %v954 = vpow.pop %v953
        %v955 = vmul.f32 %v941, 1.442695
        %v956 = vpow.pop %v955
        %v957 = vmul.f32 %v942, 1.442695
        %v958 = vpow.pop %v957
        %967 = vset.pattern.permute.xlu0 0
        %968 = vperm.xlu0 %967, %v944
        %v969 = vpop.permute.xlu0 %968
        %970 = vset.pattern.permute.xlu0 0
        %971 = vperm.xlu0 %970, %v946
        %v972 = vpop.permute.xlu0 %971
        %973 = vset.pattern.permute.xlu0 0
        %974 = vperm.xlu0 %973, %v948
        %v975 = vpop.permute.xlu0 %974
        %976 = vset.pattern.permute.xlu0 0
        %977 = vperm.xlu0 %976, %v950
        %v978 = vpop.permute.xlu0 %977
        %979 = vset.pattern.permute.xlu0 0
        %980 = vperm.xlu0 %979, %v952
        %v981 = vpop.permute.xlu0 %980
        %982 = vset.pattern.permute.xlu0 0
        %983 = vperm.xlu0 %982, %v954
        %v984 = vpop.permute.xlu0 %983
        %985 = vset.pattern.permute.xlu0 0
        %986 = vperm.xlu0 %985, %v956
        %v987 = vpop.permute.xlu0 %986
        %988 = vset.pattern.permute.xlu0 0
        %989 = vperm.xlu0 %988, %v958
        %v990 = vpop.permute.xlu0 %989
        %v991 = vlaneseq
        %v992 = vshrl.u32 %v991, 7
        %v993 = vsub.s32 %v842, %v992
        %v994 = vrot.slane %v969, %v993
        %v995 = vlaneseq
        %v996 = vshrl.u32 %v995, 7
        %v997 = vsub.s32 %v842, %v996
        %v998 = vrot.slane %v972, %v997
        %v999 = vlaneseq
        %v1000 = vshrl.u32 %v999, 7
        %v1001 = vsub.s32 %v842, %v1000
        %v1002 = vrot.slane %v975, %v1001
        %v1003 = vlaneseq
        %v1004 = vshrl.u32 %v1003, 7
        %v1005 = vsub.s32 %v842, %v1004
        %v1006 = vrot.slane %v978, %v1005
        %v1007 = vlaneseq
        %v1008 = vshrl.u32 %v1007, 7
        %v1009 = vsub.s32 %v842, %v1008
        %v1010 = vrot.slane %v981, %v1009
        %v1011 = vlaneseq
        %v1012 = vshrl.u32 %v1011, 7
        %v1013 = vsub.s32 %v842, %v1012
        %v1014 = vrot.slane %v984, %v1013
        %v1015 = vlaneseq
        %v1016 = vshrl.u32 %v1015, 7
        %v1017 = vsub.s32 %v842, %v1016
        %v1018 = vrot.slane %v987, %v1017
        %v1019 = vlaneseq
        %v1020 = vshrl.u32 %v1019, 7
        %v1021 = vsub.s32 %v842, %v1020
        %v1022 = vrot.slane %v990, %v1021
        %v1023 = vsel %vm875, %v998, %v994
        %v1024 = vsel %vm877, %v1002, %v1023
        %v1025 = vsel %vm879, %v1006, %v1024
        %v1026 = vsel %vm881, %v1010, %v1025
        %v1027 = vsel %vm883, %v1014, %v1026
        %v1028 = vsel %vm885, %v1018, %v1027
        %v1029 = vsel %vm887, %v1022, %v1028
        %v1031 = vsel %vm890, %v1029, 0.0
        %1032 = vadd.xlane.f32.xlu0 %v1031
        %v1033 = vpop.xlane.xlu0 %1032
        %v1035 = vlaneseq
        %v1036 = vshrl.u32 %v1035, 7
        %v1037 = vsub.s32 0, %v1036
        %v1038 = vrot.slane %v1033, %v1037
        %v1039 = vlaneseq
        %v1040 = vshrl.u32 %v1039, 7
        %v1041 = vsub.s32 1, %v1040
        %v1042 = vrot.slane %v1033, %v1041
        %v1043 = vlaneseq
        %v1044 = vshrl.u32 %v1043, 7
        %v1045 = vsub.s32 2, %v1044
        %v1046 = vrot.slane %v1033, %v1045
        %v1047 = vlaneseq
        %v1048 = vshrl.u32 %v1047, 7
        %v1049 = vsub.s32 3, %v1048
        %v1050 = vrot.slane %v1033, %v1049
        %v1051 = vlaneseq
        %v1052 = vshrl.u32 %v1051, 7
        %v1053 = vsub.s32 4, %v1052
        %v1054 = vrot.slane %v1033, %v1053
        %v1055 = vlaneseq
        %v1056 = vshrl.u32 %v1055, 7
        %v1057 = vsub.s32 5, %v1056
        %v1058 = vrot.slane %v1033, %v1057
        %v1059 = vlaneseq
        %v1060 = vshrl.u32 %v1059, 7
        %v1061 = vsub.s32 6, %v1060
        %v1062 = vrot.slane %v1033, %v1061
        %v1063 = vlaneseq
        %v1064 = vshrl.u32 %v1063, 7
        %v1065 = vsub.s32 7, %v1064
        %v1066 = vrot.slane %v1033, %v1065
        %v1075 = vrcp.pop %v1038
        %v1076 = vmul.f32 %v944, %v1075
        %v1077 = vrcp.pop %v1042
        %v1078 = vmul.f32 %v946, %v1077
        %v1079 = vrcp.pop %v1046
        %v1080 = vmul.f32 %v948, %v1079
        %v1081 = vrcp.pop %v1050
        %v1082 = vmul.f32 %v950, %v1081
        %v1083 = vrcp.pop %v1054
        %v1084 = vmul.f32 %v952, %v1083
        %v1085 = vrcp.pop %v1058
        %v1086 = vmul.f32 %v954, %v1085
        %v1087 = vrcp.pop %v1062
        %v1088 = vmul.f32 %v956, %v1087
        %v1089 = vrcp.pop %v1066
        %v1090 = vmul.f32 %v958, %v1089
        %1092 = vset.pattern.permute.xlu0 0
        %1093 = vperm.xlu0 %1092, %v1076
        %v1094 = vpop.permute.xlu0 %1093
        %1097 = vset.pattern.permute.xlu0 0
        %1098 = vperm.xlu0 %1097, %v1078
        %v1099 = vpop.permute.xlu0 %1098
        %1102 = vset.pattern.permute.xlu0 0
        %1103 = vperm.xlu0 %1102, %v1080
        %v1104 = vpop.permute.xlu0 %1103
        %1107 = vset.pattern.permute.xlu0 0
        %1108 = vperm.xlu0 %1107, %v1082
        %v1109 = vpop.permute.xlu0 %1108
        %1112 = vset.pattern.permute.xlu0 0
        %1113 = vperm.xlu0 %1112, %v1084
        %v1114 = vpop.permute.xlu0 %1113
        %1117 = vset.pattern.permute.xlu0 0
        %1118 = vperm.xlu0 %1117, %v1086
        %v1119 = vpop.permute.xlu0 %1118
        %1122 = vset.pattern.permute.xlu0 0
        %1123 = vperm.xlu0 %1122, %v1088
        %v1124 = vpop.permute.xlu0 %1123
        %1127 = vset.pattern.permute.xlu0 0
        %1128 = vperm.xlu0 %1127, %v1090
        %v1129 = vpop.permute.xlu0 %1128
        %v1131 = vmul.f32 %v1094, %v594
        %v1132 = vmul.f32 %v1099, %v595
        %v1133 = vmul.f32 %v1104, %v596
        %v1134 = vmul.f32 %v1109, %v597
        %v1135 = vmul.f32 %v1114, %v598
        %v1136 = vmul.f32 %v1119, %v599
        %v1137 = vmul.f32 %v1124, %v600
        %v1138 = vmul.f32 %v1129, %v601
        %v1139 = vrot.slane %v1131, 4
        %v1140 = vadd.f32 %v1131, %v1139
        %v1141 = vrot.slane %v1140, 2
        %v1142 = vadd.f32 %v1140, %v1141
        %v1143 = vrot.slane %v1142, 1
        %v1144 = vadd.f32 %v1142, %v1143
        %v1145 = vrot.slane %v1132, 4
        %v1146 = vadd.f32 %v1132, %v1145
        %v1147 = vrot.slane %v1146, 2
        %v1148 = vadd.f32 %v1146, %v1147
        %v1149 = vrot.slane %v1148, 1
        %v1150 = vadd.f32 %v1148, %v1149
        %v1151 = vrot.slane %v1133, 4
        %v1152 = vadd.f32 %v1133, %v1151
        %v1153 = vrot.slane %v1152, 2
        %v1154 = vadd.f32 %v1152, %v1153
        %v1155 = vrot.slane %v1154, 1
        %v1156 = vadd.f32 %v1154, %v1155
        %v1157 = vrot.slane %v1134, 4
        %v1158 = vadd.f32 %v1134, %v1157
        %v1159 = vrot.slane %v1158, 2
        %v1160 = vadd.f32 %v1158, %v1159
        %v1161 = vrot.slane %v1160, 1
        %v1162 = vadd.f32 %v1160, %v1161
        %v1163 = vrot.slane %v1135, 4
        %v1164 = vadd.f32 %v1135, %v1163
        %v1165 = vrot.slane %v1164, 2
        %v1166 = vadd.f32 %v1164, %v1165
        %v1167 = vrot.slane %v1166, 1
        %v1168 = vadd.f32 %v1166, %v1167
        %v1169 = vrot.slane %v1136, 4
        %v1170 = vadd.f32 %v1136, %v1169
        %v1171 = vrot.slane %v1170, 2
        %v1172 = vadd.f32 %v1170, %v1171
        %v1173 = vrot.slane %v1172, 1
        %v1174 = vadd.f32 %v1172, %v1173
        %v1175 = vrot.slane %v1137, 4
        %v1176 = vadd.f32 %v1137, %v1175
        %v1177 = vrot.slane %v1176, 2
        %v1178 = vadd.f32 %v1176, %v1177
        %v1179 = vrot.slane %v1178, 1
        %v1180 = vadd.f32 %v1178, %v1179
        %v1181 = vrot.slane %v1138, 4
        %v1182 = vadd.f32 %v1138, %v1181
        %v1183 = vrot.slane %v1182, 2
        %v1184 = vadd.f32 %v1182, %v1183
        %v1185 = vrot.slane %v1184, 1
        %v1186 = vadd.f32 %v1184, %v1185
        %v1187 = vld [vmem:[%s8] sm:$0xff]
        %v1188 = vld [vmem:[%s8 + $0x8] sm:$0xff]
        %v1189 = vld [vmem:[%s8 + $0x10] sm:$0xff]
        %v1190 = vld [vmem:[%s8 + $0x18] sm:$0xff]
        %v1191 = vld [vmem:[%s8 + $0x20] sm:$0xff]
        %v1192 = vld [vmem:[%s8 + $0x28] sm:$0xff]
        %v1193 = vld [vmem:[%s8 + $0x30] sm:$0xff]
        %v1194 = vld [vmem:[%s8 + $0x38] sm:$0xff]
        %v1195 = vld [vmem:[%s8 + $0x40] sm:$0xff]
        %v1196 = vld [vmem:[%s8 + $0x48] sm:$0xff]
        %v1197 = vld [vmem:[%s8 + $0x50] sm:$0xff]
        %v1198 = vld [vmem:[%s8 + $0x58] sm:$0xff]
        %v1199 = vld [vmem:[%s8 + $0x60] sm:$0xff]
        %v1200 = vld [vmem:[%s8 + $0x68] sm:$0xff]
        %v1201 = vld [vmem:[%s8 + $0x70] sm:$0xff]
        %v1202 = vld [vmem:[%s8 + $0x78] sm:$0xff]
        %v1203 = vld [vmem:[%s8 + $0x80] sm:$0xff]
        %v1204 = vld [vmem:[%s8 + $0x88] sm:$0xff]
        %v1205 = vld [vmem:[%s8 + $0x90] sm:$0xff]
        %v1206 = vld [vmem:[%s8 + $0x98] sm:$0xff]
        %v1207 = vld [vmem:[%s8 + $0xa0] sm:$0xff]
        %v1208 = vld [vmem:[%s8 + $0xa8] sm:$0xff]
        %v1209 = vld [vmem:[%s8 + $0xb0] sm:$0xff]
        %v1210 = vld [vmem:[%s8 + $0xb8] sm:$0xff]
        %v1211 = vld [vmem:[%s8 + $0xc0] sm:$0xff]
        %v1212 = vld [vmem:[%s8 + $0xc8] sm:$0xff]
        %v1213 = vld [vmem:[%s8 + $0xd0] sm:$0xff]
        %v1214 = vld [vmem:[%s8 + $0xd8] sm:$0xff]
        %v1215 = vld [vmem:[%s8 + $0xe0] sm:$0xff]
        %v1216 = vld [vmem:[%s8 + $0xe8] sm:$0xff]
        %v1217 = vld [vmem:[%s8 + $0xf0] sm:$0xff]
        %v1218 = vld [vmem:[%s8 + $0xf8] sm:$0xff]
        %v1219 = vld [vmem:[%s8 + $0x100] sm:$0xff]
        %v1220 = vld [vmem:[%s8 + $0x108] sm:$0xff]
        %v1221 = vld [vmem:[%s8 + $0x110] sm:$0xff]
        %v1222 = vld [vmem:[%s8 + $0x118] sm:$0xff]
        %v1223 = vld [vmem:[%s8 + $0x120] sm:$0xff]
        %v1224 = vld [vmem:[%s8 + $0x128] sm:$0xff]
        %v1225 = vld [vmem:[%s8 + $0x130] sm:$0xff]
        %v1226 = vld [vmem:[%s8 + $0x138] sm:$0xff]
        %v1227 = vld [vmem:[%s8 + $0x140] sm:$0xff]
        %v1228 = vld [vmem:[%s8 + $0x148] sm:$0xff]
        %v1229 = vld [vmem:[%s8 + $0x150] sm:$0xff]
        %v1230 = vld [vmem:[%s8 + $0x158] sm:$0xff]
        %v1231 = vld [vmem:[%s8 + $0x160] sm:$0xff]
        %v1232 = vld [vmem:[%s8 + $0x168] sm:$0xff]
        %v1233 = vld [vmem:[%s8 + $0x170] sm:$0xff]
        %v1234 = vld [vmem:[%s8 + $0x178] sm:$0xff]
        %v1235 = vld [vmem:[%s9] sm:$0xff]
        %v1236 = vld [vmem:[%s9 + $0x8] sm:$0xff]
        %v1237 = vld [vmem:[%s9 + $0x10] sm:$0xff]
        %v1238 = vld [vmem:[%s9 + $0x18] sm:$0xff]
        %v1239 = vld [vmem:[%s9 + $0x20] sm:$0xff]
        %v1240 = vld [vmem:[%s9 + $0x28] sm:$0xff]
        %v1241 = vld [vmem:[%s9 + $0x30] sm:$0xff]
        %v1242 = vld [vmem:[%s9 + $0x38] sm:$0xff]
        %v1243 = vld [vmem:[%s9 + $0x40] sm:$0xff]
        %v1244 = vld [vmem:[%s9 + $0x48] sm:$0xff]
        %v1245 = vld [vmem:[%s9 + $0x50] sm:$0xff]
        %v1246 = vld [vmem:[%s9 + $0x58] sm:$0xff]
        %v1247 = vld [vmem:[%s9 + $0x60] sm:$0xff]
        %v1248 = vld [vmem:[%s9 + $0x68] sm:$0xff]
        %v1249 = vld [vmem:[%s9 + $0x70] sm:$0xff]
        %v1250 = vld [vmem:[%s9 + $0x78] sm:$0xff]
        %v1251 = vld [vmem:[%s9 + $0x80] sm:$0xff]
        %v1252 = vld [vmem:[%s9 + $0x88] sm:$0xff]
        %v1253 = vld [vmem:[%s9 + $0x90] sm:$0xff]
        %v1254 = vld [vmem:[%s9 + $0x98] sm:$0xff]
        %v1255 = vld [vmem:[%s9 + $0xa0] sm:$0xff]
        %v1256 = vld [vmem:[%s9 + $0xa8] sm:$0xff]
        %v1257 = vld [vmem:[%s9 + $0xb0] sm:$0xff]
        %v1258 = vld [vmem:[%s9 + $0xb8] sm:$0xff]
        %v1259 = vld [vmem:[%s9 + $0xc0] sm:$0xff]
        %v1260 = vld [vmem:[%s9 + $0xc8] sm:$0xff]
        %v1261 = vld [vmem:[%s9 + $0xd0] sm:$0xff]
        %v1262 = vld [vmem:[%s9 + $0xd8] sm:$0xff]
        %v1263 = vld [vmem:[%s9 + $0xe0] sm:$0xff]
        %v1264 = vld [vmem:[%s9 + $0xe8] sm:$0xff]
        %v1265 = vld [vmem:[%s9 + $0xf0] sm:$0xff]
        %v1266 = vld [vmem:[%s9 + $0xf8] sm:$0xff]
        %v1267 = vld [vmem:[%s9 + $0x100] sm:$0xff]
        %v1268 = vld [vmem:[%s9 + $0x108] sm:$0xff]
        %v1269 = vld [vmem:[%s9 + $0x110] sm:$0xff]
        %v1270 = vld [vmem:[%s9 + $0x118] sm:$0xff]
        %v1271 = vld [vmem:[%s9 + $0x120] sm:$0xff]
        %v1272 = vld [vmem:[%s9 + $0x128] sm:$0xff]
        %v1273 = vld [vmem:[%s9 + $0x130] sm:$0xff]
        %v1274 = vld [vmem:[%s9 + $0x138] sm:$0xff]
        %v1275 = vld [vmem:[%s9 + $0x140] sm:$0xff]
        %v1276 = vld [vmem:[%s9 + $0x148] sm:$0xff]
        %v1277 = vld [vmem:[%s9 + $0x150] sm:$0xff]
        %v1278 = vld [vmem:[%s9 + $0x158] sm:$0xff]
        %v1279 = vld [vmem:[%s9 + $0x160] sm:$0xff]
        %v1280 = vld [vmem:[%s9 + $0x168] sm:$0xff]
        %v1281 = vld [vmem:[%s9 + $0x170] sm:$0xff]
        %v1282 = vld [vmem:[%s9 + $0x178] sm:$0xff]
        %v1291 = vsel %vm875, %v1150, %v1144
        %v1292 = vsel %vm877, %v1156, %v1291
        %v1293 = vsel %vm879, %v1162, %v1292
        %v1294 = vsel %vm881, %v1168, %v1293
        %v1295 = vsel %vm883, %v1174, %v1294
        %v1296 = vsel %vm885, %v1180, %v1295
        %v1297 = vsel %vm887, %v1186, %v1296
        %1299 = vmatprep.subr.mxu0 %v1281
        %1300 = vmatpush1.msra.mxu0 %v1280
        %1301 = vmatprep.subr.mxu0 %v1278
        %1302 = vmatpush1.msra.mxu0 %v1277
        %1303 = vmatprep.subr.mxu0 %v1275
        %1304 = vmatpush1.msra.mxu0 %v1274
        %1305 = vmatprep.subr.mxu0 %v1272
        %1306 = vmatpush1.msra.mxu0 %v1271
        %1307 = vmatprep.subr.mxu0 %v1269
        %1308 = vmatpush1.msra.mxu0 %v1268
        %1309 = vmatprep.subr.mxu0 %v1266
        %1310 = vmatpush1.msra.mxu0 %v1265
        %1311 = vmatprep.subr.mxu0 %v1263
        %1312 = vmatpush1.msra.mxu0 %v1262
        %1313 = vmatprep.subr.mxu0 %v1260
        %1314 = vmatpush1.msra.mxu0 %v1259
        %1315 = vmatprep.subr.mxu0 %v1257
        %1316 = vmatpush1.msra.mxu0 %v1256
        %1317 = vmatprep.subr.mxu0 %v1254
        %1318 = vmatpush1.msra.mxu0 %v1253
        %1319 = vmatprep.subr.mxu0 %v1251
        %1320 = vmatpush1.msra.mxu0 %v1250
        %1321 = vmatprep.subr.mxu0 %v1248
        %1322 = vmatpush1.msra.mxu0 %v1247
        %1323 = vmatprep.subr.mxu0 %v1245
        %1324 = vmatpush1.msra.mxu0 %v1244
        %1325 = vmatprep.subr.mxu0 %v1242
        %1326 = vmatpush1.msra.mxu0 %v1241
        %1327 = vmatprep.subr.mxu0 %v1239
        %1328 = vmatpush1.msra.mxu0 %v1238
        %1329 = vmatprep.subr.mxu0 %v1236
        %1330 = vmatpush1.msra.mxu0 %v1235
        %1331 = vmatprep.subr.mxu0 0.0
        %1332 = vmatpush2.msra.mxu0 0.0
        %1333 = vmatprep.subr.mxu0 0.0
        %1334 = vmatpush2.msra.mxu0 0.0
        %1335 = vmatprep.subr.mxu0 0.0
        %1336 = vmatpush2.msra.mxu0 0.0
        %1337 = vmatprep.subr.mxu0 0.0
        %1338 = vmatpush2.msra.mxu0 0.0
        %1339 = vmatprep.subr.mxu0 0.0
        %1340 = vmatpush2.msra.mxu0 0.0
        %1341 = vmatprep.subr.mxu0 0.0
        %1342 = vmatpush2.msra.mxu0 0.0
        %1343 = vmatprep.subr.mxu0 0.0
        %1344 = vmatpush2.msra.mxu0 0.0
        %1345 = vmatprep.subr.mxu0 0.0
        %1346 = vmatpush2.msra.mxu0 0.0
        %1347 = vmatprep.subr.mxu0 0.0
        %1348 = vmatpush2.msra.mxu0 0.0
        %1349 = vmatprep.subr.mxu0 0.0
        %1350 = vmatpush2.msra.mxu0 0.0
        %1351 = vmatprep.subr.mxu0 0.0
        %1352 = vmatpush2.msra.mxu0 0.0
        %1353 = vmatprep.subr.mxu0 0.0
        %1354 = vmatpush2.msra.mxu0 0.0
        %1355 = vmatprep.subr.mxu0 0.0
        %1356 = vmatpush2.msra.mxu0 0.0
        %1357 = vmatprep.subr.mxu0 0.0
        %1358 = vmatpush2.msra.mxu0 0.0
        %1359 = vmatprep.subr.mxu0 0.0
        %1360 = vmatpush2.msra.mxu0 0.0
        %1361 = vmatprep.subr.mxu0 0.0
        %1362 = vmatpush2.msra.mxu0 0.0
        %1363 = vmatprep.mubr.f32.mxu0 0.0
        %1364 = vmatmul.mubr.f32.gmra.mxu0 %v1297
        %v1365 = vpop.f32.mrf.mxu0
        %v1366 = vadd.f32 0.0, %v1365
        %v1367 = vpop.f32.mrf.mxu0
        %v1368 = vadd.f32 0.0, %v1367
        %1369 = vdwg.mxu0
        %1370 = vmatprep.subr.mxu0 0.0
        %1371 = vmatpush1.msra.mxu0 %v1282
        %1372 = vmatprep.subr.mxu0 0.0
        %1373 = vmatpush1.msra.mxu0 %v1279
        %1374 = vmatprep.subr.mxu0 0.0
        %1375 = vmatpush1.msra.mxu0 %v1276
        %1376 = vmatprep.subr.mxu0 0.0
        %1377 = vmatpush1.msra.mxu0 %v1273
        %1378 = vmatprep.subr.mxu0 0.0
        %1379 = vmatpush1.msra.mxu0 %v1270
        %1380 = vmatprep.subr.mxu0 0.0
        %1381 = vmatpush1.msra.mxu0 %v1267
        %1382 = vmatprep.subr.mxu0 0.0
        %1383 = vmatpush1.msra.mxu0 %v1264
        %1384 = vmatprep.subr.mxu0 0.0
        %1385 = vmatpush1.msra.mxu0 %v1261
        %1386 = vmatprep.subr.mxu0 0.0
        %1387 = vmatpush1.msra.mxu0 %v1258
        %1388 = vmatprep.subr.mxu0 0.0
        %1389 = vmatpush1.msra.mxu0 %v1255
        %1390 = vmatprep.subr.mxu0 0.0
        %1391 = vmatpush1.msra.mxu0 %v1252
        %1392 = vmatprep.subr.mxu0 0.0
        %1393 = vmatpush1.msra.mxu0 %v1249
        %1394 = vmatprep.subr.mxu0 0.0
        %1395 = vmatpush1.msra.mxu0 %v1246
        %1396 = vmatprep.subr.mxu0 0.0
        %1397 = vmatpush1.msra.mxu0 %v1243
        %1398 = vmatprep.subr.mxu0 0.0
        %1399 = vmatpush1.msra.mxu0 %v1240
        %1400 = vmatprep.subr.mxu0 0.0
        %1401 = vmatpush1.msra.mxu0 %v1237
        %1402 = vmatprep.subr.mxu0 0.0
        %1403 = vmatpush2.msra.mxu0 0.0
        %1404 = vmatprep.subr.mxu0 0.0
        %1405 = vmatpush2.msra.mxu0 0.0
        %1406 = vmatprep.subr.mxu0 0.0
        %1407 = vmatpush2.msra.mxu0 0.0
        %1408 = vmatprep.subr.mxu0 0.0
        %1409 = vmatpush2.msra.mxu0 0.0
        %1410 = vmatprep.subr.mxu0 0.0
        %1411 = vmatpush2.msra.mxu0 0.0
        %1412 = vmatprep.subr.mxu0 0.0
        %1413 = vmatpush2.msra.mxu0 0.0
        %1414 = vmatprep.subr.mxu0 0.0
        %1415 = vmatpush2.msra.mxu0 0.0
        %1416 = vmatprep.subr.mxu0 0.0
        %1417 = vmatpush2.msra.mxu0 0.0
        %1418 = vmatprep.subr.mxu0 0.0
        %1419 = vmatpush2.msra.mxu0 0.0
        %1420 = vmatprep.subr.mxu0 0.0
        %1421 = vmatpush2.msra.mxu0 0.0
        %1422 = vmatprep.subr.mxu0 0.0
        %1423 = vmatpush2.msra.mxu0 0.0
        %1424 = vmatprep.subr.mxu0 0.0
        %1425 = vmatpush2.msra.mxu0 0.0
        %1426 = vmatprep.subr.mxu0 0.0
        %1427 = vmatpush2.msra.mxu0 0.0
        %1428 = vmatprep.subr.mxu0 0.0
        %1429 = vmatpush2.msra.mxu0 0.0
        %1430 = vmatprep.subr.mxu0 0.0
        %1431 = vmatpush2.msra.mxu0 0.0
        %1432 = vmatprep.subr.mxu0 0.0
        %1433 = vmatpush2.msra.mxu0 0.0
        %1434 = vmatprep.mubr.f32.mxu0 0.0
        %1435 = vmatmul.mubr.f32.gmra.mxu0 %v1297
        %v1436 = vpop.f32.mrf.mxu0
        %v1437 = vadd.f32 0.0, %v1436
        %v1438 = vpop.f32.mrf.mxu0
        %1439 = vdwg.mxu0
        %1440 = vmatprep.subr.mxu0 %v1233
        %1441 = vmatpush1.msra.mxu0 %v1232
        %1442 = vmatprep.subr.mxu0 %v1230
        %1443 = vmatpush1.msra.mxu0 %v1229
        %1444 = vmatprep.subr.mxu0 %v1227
        %1445 = vmatpush1.msra.mxu0 %v1226
        %1446 = vmatprep.subr.mxu0 %v1224
        %1447 = vmatpush1.msra.mxu0 %v1223
        %1448 = vmatprep.subr.mxu0 %v1221
        %1449 = vmatpush1.msra.mxu0 %v1220
        %1450 = vmatprep.subr.mxu0 %v1218
        %1451 = vmatpush1.msra.mxu0 %v1217
        %1452 = vmatprep.subr.mxu0 %v1215
        %1453 = vmatpush1.msra.mxu0 %v1214
        %1454 = vmatprep.subr.mxu0 %v1212
        %1455 = vmatpush1.msra.mxu0 %v1211
        %1456 = vmatprep.subr.mxu0 %v1209
        %1457 = vmatpush1.msra.mxu0 %v1208
        %1458 = vmatprep.subr.mxu0 %v1206
        %1459 = vmatpush1.msra.mxu0 %v1205
        %1460 = vmatprep.subr.mxu0 %v1203
        %1461 = vmatpush1.msra.mxu0 %v1202
        %1462 = vmatprep.subr.mxu0 %v1200
        %1463 = vmatpush1.msra.mxu0 %v1199
        %1464 = vmatprep.subr.mxu0 %v1197
        %1465 = vmatpush1.msra.mxu0 %v1196
        %1466 = vmatprep.subr.mxu0 %v1194
        %1467 = vmatpush1.msra.mxu0 %v1193
        %1468 = vmatprep.subr.mxu0 %v1191
        %1469 = vmatpush1.msra.mxu0 %v1190
        %1470 = vmatprep.subr.mxu0 %v1188
        %1471 = vmatpush1.msra.mxu0 %v1187
        %1472 = vmatprep.subr.mxu0 0.0
        %1473 = vmatpush2.msra.mxu0 0.0
        %1474 = vmatprep.subr.mxu0 0.0
        %1475 = vmatpush2.msra.mxu0 0.0
        %1476 = vmatprep.subr.mxu0 0.0
        %1477 = vmatpush2.msra.mxu0 0.0
        %1478 = vmatprep.subr.mxu0 0.0
        %1479 = vmatpush2.msra.mxu0 0.0
        %1480 = vmatprep.subr.mxu0 0.0
        %1481 = vmatpush2.msra.mxu0 0.0
        %1482 = vmatprep.subr.mxu0 0.0
        %1483 = vmatpush2.msra.mxu0 0.0
        %1484 = vmatprep.subr.mxu0 0.0
        %1485 = vmatpush2.msra.mxu0 0.0
        %1486 = vmatprep.subr.mxu0 0.0
        %1487 = vmatpush2.msra.mxu0 0.0
        %1488 = vmatprep.subr.mxu0 0.0
        %1489 = vmatpush2.msra.mxu0 0.0
        %1490 = vmatprep.subr.mxu0 0.0
        %1491 = vmatpush2.msra.mxu0 0.0
        %1492 = vmatprep.subr.mxu0 0.0
        %1493 = vmatpush2.msra.mxu0 0.0
        %1494 = vmatprep.subr.mxu0 0.0
        %1495 = vmatpush2.msra.mxu0 0.0
        %1496 = vmatprep.subr.mxu0 0.0
        %1497 = vmatpush2.msra.mxu0 0.0
        %1498 = vmatprep.subr.mxu0 0.0
        %1499 = vmatpush2.msra.mxu0 0.0
        %1500 = vmatprep.subr.mxu0 0.0
        %1501 = vmatpush2.msra.mxu0 0.0
        %1502 = vmatprep.subr.mxu0 0.0
        %1503 = vmatpush2.msra.mxu0 0.0
        %1504 = vmatprep.mubr.f32.mxu0 0.0
        %1505 = vmatmul.mubr.f32.gmra.mxu0 %v592
        %v1506 = vpop.f32.mrf.mxu0
        %v1507 = vadd.f32 %v1366, %v1506
        %v1508 = vpop.f32.mrf.mxu0
        %v1509 = vadd.f32 %v1368, %v1508
        %1510 = vdwg.mxu0
        %1511 = vmatprep.subr.mxu0 0.0
        %1512 = vmatpush1.msra.mxu0 %v1234
        %1513 = vmatprep.subr.mxu0 0.0
        %1514 = vmatpush1.msra.mxu0 %v1231
        %1515 = vmatprep.subr.mxu0 0.0
        %1516 = vmatpush1.msra.mxu0 %v1228
        %1517 = vmatprep.subr.mxu0 0.0
        %1518 = vmatpush1.msra.mxu0 %v1225
        %1519 = vmatprep.subr.mxu0 0.0
        %1520 = vmatpush1.msra.mxu0 %v1222
        %1521 = vmatprep.subr.mxu0 0.0
        %1522 = vmatpush1.msra.mxu0 %v1219
        %1523 = vmatprep.subr.mxu0 0.0
        %1524 = vmatpush1.msra.mxu0 %v1216
        %1525 = vmatprep.subr.mxu0 0.0
        %1526 = vmatpush1.msra.mxu0 %v1213
        %1527 = vmatprep.subr.mxu0 0.0
        %1528 = vmatpush1.msra.mxu0 %v1210
        %1529 = vmatprep.subr.mxu0 0.0
        %1530 = vmatpush1.msra.mxu0 %v1207
        %1531 = vmatprep.subr.mxu0 0.0
        %1532 = vmatpush1.msra.mxu0 %v1204
        %1533 = vmatprep.subr.mxu0 0.0
        %1534 = vmatpush1.msra.mxu0 %v1201
        %1535 = vmatprep.subr.mxu0 0.0
        %1536 = vmatpush1.msra.mxu0 %v1198
        %1537 = vmatprep.subr.mxu0 0.0
        %1538 = vmatpush1.msra.mxu0 %v1195
        %1539 = vmatprep.subr.mxu0 0.0
        %1540 = vmatpush1.msra.mxu0 %v1192
        %1541 = vmatprep.subr.mxu0 0.0
        %1542 = vmatpush1.msra.mxu0 %v1189
        %1543 = vmatprep.subr.mxu0 0.0
        %1544 = vmatpush2.msra.mxu0 0.0
        %1545 = vmatprep.subr.mxu0 0.0
        %1546 = vmatpush2.msra.mxu0 0.0
        %1547 = vmatprep.subr.mxu0 0.0
        %1548 = vmatpush2.msra.mxu0 0.0
        %1549 = vmatprep.subr.mxu0 0.0
        %1550 = vmatpush2.msra.mxu0 0.0
        %1551 = vmatprep.subr.mxu0 0.0
        %1552 = vmatpush2.msra.mxu0 0.0
        %1553 = vmatprep.subr.mxu0 0.0
        %1554 = vmatpush2.msra.mxu0 0.0
        %1555 = vmatprep.subr.mxu0 0.0
        %1556 = vmatpush2.msra.mxu0 0.0
        %1557 = vmatprep.subr.mxu0 0.0
        %1558 = vmatpush2.msra.mxu0 0.0
        %1559 = vmatprep.subr.mxu0 0.0
        %1560 = vmatpush2.msra.mxu0 0.0
        %1561 = vmatprep.subr.mxu0 0.0
        %1562 = vmatpush2.msra.mxu0 0.0
        %1563 = vmatprep.subr.mxu0 0.0
        %1564 = vmatpush2.msra.mxu0 0.0
        %1565 = vmatprep.subr.mxu0 0.0
        %1566 = vmatpush2.msra.mxu0 0.0
        %1567 = vmatprep.subr.mxu0 0.0
        %1568 = vmatpush2.msra.mxu0 0.0
        %1569 = vmatprep.subr.mxu0 0.0
        %1570 = vmatpush2.msra.mxu0 0.0
        %1571 = vmatprep.subr.mxu0 0.0
        %1572 = vmatpush2.msra.mxu0 0.0
        %1573 = vmatprep.subr.mxu0 0.0
        %1574 = vmatpush2.msra.mxu0 0.0
        %1575 = vmatprep.mubr.f32.mxu0 0.0
        %1576 = vmatmul.mubr.f32.gmra.mxu0 %v592
        %v1577 = vpop.f32.mrf.mxu0
        %v1578 = vadd.f32 %v1437, %v1577
        %v1579 = vpop.f32.mrf.mxu0
        %1580 = vdwg.mxu0
        %v1581 = vld [vmem:[#allocation10] sm:$0x7]
        %v1583 = vlaneseq
        %v1584 = vshrl.u32 %v1583, 7
        %v1585 = vsub.s32 0, %v1584
        %v1586 = vrot.slane %v1581, %v1585
        %v1587 = vlaneseq
        %v1588 = vshrl.u32 %v1587, 7
        %v1589 = vsub.s32 1, %v1588
        %v1590 = vrot.slane %v1581, %v1589
        %v1591 = vlaneseq
        %v1592 = vshrl.u32 %v1591, 7
        %v1593 = vsub.s32 2, %v1592
        %v1594 = vrot.slane %v1581, %v1593
        %v1598 = vadd.f32 %v1507, %v1586
        %v1599 = vadd.f32 %v1509, %v1590
        %v1600 = vadd.f32 %v1578, %v1594
        %v1601 = vld [vmem:[%s10] sm:$0xff]
        %v1602 = vld [vmem:[%s10 + $0x8] sm:$0xff]
        %v1603 = vld [vmem:[%s10 + $0x10] sm:$0xff]
        %v1604 = vld [vmem:[%s10 + $0x18] sm:$0xff]
        %v1605 = vld [vmem:[%s10 + $0x20] sm:$0xff]
        %v1606 = vld [vmem:[%s10 + $0x28] sm:$0xff]
        %v1607 = vld [vmem:[%s10 + $0x30] sm:$0xff]
        %v1608 = vld [vmem:[%s10 + $0x38] sm:$0xff]
        %v1609 = vld [vmem:[%s10 + $0x40] sm:$0xff]
        %v1610 = vld [vmem:[%s10 + $0x48] sm:$0xff]
        %v1611 = vld [vmem:[%s10 + $0x50] sm:$0xff]
        %v1612 = vld [vmem:[%s10 + $0x58] sm:$0xff]
        %v1613 = vld [vmem:[%s10 + $0x60] sm:$0xff]
        %v1614 = vld [vmem:[%s10 + $0x68] sm:$0xff]
        %v1615 = vld [vmem:[%s10 + $0x70] sm:$0xff]
        %v1616 = vld [vmem:[%s10 + $0x78] sm:$0xff]
        %v1617 = vld [vmem:[%s10 + $0x80] sm:$0xff]
        %v1618 = vld [vmem:[%s10 + $0x88] sm:$0xff]
        %v1619 = vld [vmem:[%s10 + $0x90] sm:$0xff]
        %v1620 = vld [vmem:[%s10 + $0x98] sm:$0xff]
        %v1621 = vld [vmem:[%s10 + $0xa0] sm:$0xff]
        %v1622 = vld [vmem:[%s10 + $0xa8] sm:$0xff]
        %v1623 = vld [vmem:[%s10 + $0xb0] sm:$0xff]
        %v1624 = vld [vmem:[%s10 + $0xb8] sm:$0xff]
        %v1625 = vld [vmem:[%s10 + $0xc0] sm:$0xff]
        %v1626 = vld [vmem:[%s10 + $0xc8] sm:$0xff]
        %v1627 = vld [vmem:[%s10 + $0xd0] sm:$0xff]
        %v1628 = vld [vmem:[%s10 + $0xd8] sm:$0xff]
        %v1629 = vld [vmem:[%s10 + $0xe0] sm:$0xff]
        %v1630 = vld [vmem:[%s10 + $0xe8] sm:$0xff]
        %v1631 = vld [vmem:[%s10 + $0xf0] sm:$0xff]
        %v1632 = vld [vmem:[%s10 + $0xf8] sm:$0xff]
        %v1633 = vld [vmem:[%s10 + $0x100] sm:$0xff]
        %v1634 = vld [vmem:[%s10 + $0x108] sm:$0xff]
        %v1635 = vld [vmem:[%s10 + $0x110] sm:$0xff]
        %v1636 = vld [vmem:[%s10 + $0x118] sm:$0xff]
        %v1637 = vld [vmem:[%s10 + $0x120] sm:$0xff]
        %v1638 = vld [vmem:[%s10 + $0x128] sm:$0xff]
        %v1639 = vld [vmem:[%s10 + $0x130] sm:$0xff]
        %v1640 = vld [vmem:[%s10 + $0x138] sm:$0xff]
        %v1641 = vld [vmem:[%s10 + $0x140] sm:$0xff]
        %v1642 = vld [vmem:[%s10 + $0x148] sm:$0xff]
        %v1643 = vld [vmem:[%s10 + $0x150] sm:$0xff]
        %v1644 = vld [vmem:[%s10 + $0x158] sm:$0xff]
        %v1645 = vld [vmem:[%s10 + $0x160] sm:$0xff]
        %v1646 = vld [vmem:[%s10 + $0x168] sm:$0xff]
        %v1647 = vld [vmem:[%s10 + $0x170] sm:$0xff]
        %v1648 = vld [vmem:[%s10 + $0x178] sm:$0xff]
        %v1649 = vld [vmem:[#allocation12] sm:$0x7]
        %v1651 = vlaneseq
        %v1652 = vshrl.u32 %v1651, 7
        %v1653 = vsub.s32 0, %v1652
        %v1654 = vrot.slane %v1649, %v1653
        %v1655 = vlaneseq
        %v1656 = vshrl.u32 %v1655, 7
        %v1657 = vsub.s32 1, %v1656
        %v1658 = vrot.slane %v1649, %v1657
        %v1659 = vlaneseq
        %v1660 = vshrl.u32 %v1659, 7
        %v1661 = vsub.s32 2, %v1660
        %v1662 = vrot.slane %v1649, %v1661
        %1666 = vmatprep.subr.mxu0 %v1647
        %1667 = vmatpush1.msra.mxu0 %v1646
        %1668 = vmatprep.subr.mxu0 %v1644
        %1669 = vmatpush1.msra.mxu0 %v1643
        %1670 = vmatprep.subr.mxu0 %v1641
        %1671 = vmatpush1.msra.mxu0 %v1640
        %1672 = vmatprep.subr.mxu0 %v1638
        %1673 = vmatpush1.msra.mxu0 %v1637
        %1674 = vmatprep.subr.mxu0 %v1635
        %1675 = vmatpush1.msra.mxu0 %v1634
        %1676 = vmatprep.subr.mxu0 %v1632
        %1677 = vmatpush1.msra.mxu0 %v1631
        %1678 = vmatprep.subr.mxu0 %v1629
        %1679 = vmatpush1.msra.mxu0 %v1628
        %1680 = vmatprep.subr.mxu0 %v1626
        %1681 = vmatpush1.msra.mxu0 %v1625
        %1682 = vmatprep.subr.mxu0 %v1623
        %1683 = vmatpush1.msra.mxu0 %v1622
        %1684 = vmatprep.subr.mxu0 %v1620
        %1685 = vmatpush1.msra.mxu0 %v1619
        %1686 = vmatprep.subr.mxu0 %v1617
        %1687 = vmatpush1.msra.mxu0 %v1616
        %1688 = vmatprep.subr.mxu0 %v1614
        %1689 = vmatpush1.msra.mxu0 %v1613
        %1690 = vmatprep.subr.mxu0 %v1611
        %1691 = vmatpush1.msra.mxu0 %v1610
        %1692 = vmatprep.subr.mxu0 %v1608
        %1693 = vmatpush1.msra.mxu0 %v1607
        %1694 = vmatprep.subr.mxu0 %v1605
        %1695 = vmatpush1.msra.mxu0 %v1604
        %1696 = vmatprep.subr.mxu0 %v1602
        %1697 = vmatpush1.msra.mxu0 %v1601
        %1698 = vmatprep.subr.mxu0 0.0
        %1699 = vmatpush2.msra.mxu0 0.0
        %1700 = vmatprep.subr.mxu0 0.0
        %1701 = vmatpush2.msra.mxu0 0.0
        %1702 = vmatprep.subr.mxu0 0.0
        %1703 = vmatpush2.msra.mxu0 0.0
        %1704 = vmatprep.subr.mxu0 0.0
        %1705 = vmatpush2.msra.mxu0 0.0
        %1706 = vmatprep.subr.mxu0 0.0
        %1707 = vmatpush2.msra.mxu0 0.0
        %1708 = vmatprep.subr.mxu0 0.0
        %1709 = vmatpush2.msra.mxu0 0.0
        %1710 = vmatprep.subr.mxu0 0.0
        %1711 = vmatpush2.msra.mxu0 0.0
        %1712 = vmatprep.subr.mxu0 0.0
        %1713 = vmatpush2.msra.mxu0 0.0
        %1714 = vmatprep.subr.mxu0 0.0
        %1715 = vmatpush2.msra.mxu0 0.0
        %1716 = vmatprep.subr.mxu0 0.0
        %1717 = vmatpush2.msra.mxu0 0.0
        %1718 = vmatprep.subr.mxu0 0.0
        %1719 = vmatpush2.msra.mxu0 0.0
        %1720 = vmatprep.subr.mxu0 0.0
        %1721 = vmatpush2.msra.mxu0 0.0
        %1722 = vmatprep.subr.mxu0 0.0
        %1723 = vmatpush2.msra.mxu0 0.0
        %1724 = vmatprep.subr.mxu0 0.0
        %1725 = vmatpush2.msra.mxu0 0.0
        %1726 = vmatprep.subr.mxu0 0.0
        %1727 = vmatpush2.msra.mxu0 0.0
        %1728 = vmatprep.subr.mxu0 0.0
        %1729 = vmatpush2.msra.mxu0 0.0
        %1730 = vmatprep.mubr.f32.mxu0 0.0
        %1731 = vmatmul.mubr.f32.gmra.mxu0 %v593
        %v1732 = vpop.f32.mrf.mxu0
        %v1733 = vadd.f32 %v1654, %v1732
        %v1734 = vpop.f32.mrf.mxu0
        %v1735 = vadd.f32 %v1658, %v1734
        %1736 = vdwg.mxu0
        %1737 = vmatprep.subr.mxu0 0.0
        %1738 = vmatpush1.msra.mxu0 %v1648
        %1739 = vmatprep.subr.mxu0 0.0
        %1740 = vmatpush1.msra.mxu0 %v1645
        %1741 = vmatprep.subr.mxu0 0.0
        %1742 = vmatpush1.msra.mxu0 %v1642
        %1743 = vmatprep.subr.mxu0 0.0
        %1744 = vmatpush1.msra.mxu0 %v1639
        %1745 = vmatprep.subr.mxu0 0.0
        %1746 = vmatpush1.msra.mxu0 %v1636
        %1747 = vmatprep.subr.mxu0 0.0
        %1748 = vmatpush1.msra.mxu0 %v1633
        %1749 = vmatprep.subr.mxu0 0.0
        %1750 = vmatpush1.msra.mxu0 %v1630
        %1751 = vmatprep.subr.mxu0 0.0
        %1752 = vmatpush1.msra.mxu0 %v1627
        %1753 = vmatprep.subr.mxu0 0.0
        %1754 = vmatpush1.msra.mxu0 %v1624
        %1755 = vmatprep.subr.mxu0 0.0
        %1756 = vmatpush1.msra.mxu0 %v1621
        %1757 = vmatprep.subr.mxu0 0.0
        %1758 = vmatpush1.msra.mxu0 %v1618
        %1759 = vmatprep.subr.mxu0 0.0
        %1760 = vmatpush1.msra.mxu0 %v1615
        %1761 = vmatprep.subr.mxu0 0.0
        %1762 = vmatpush1.msra.mxu0 %v1612
        %1763 = vmatprep.subr.mxu0 0.0
        %1764 = vmatpush1.msra.mxu0 %v1609
        %1765 = vmatprep.subr.mxu0 0.0
        %1766 = vmatpush1.msra.mxu0 %v1606
        %1767 = vmatprep.subr.mxu0 0.0
        %1768 = vmatpush1.msra.mxu0 %v1603
        %1769 = vmatprep.subr.mxu0 0.0
        %1770 = vmatpush2.msra.mxu0 0.0
        %1771 = vmatprep.subr.mxu0 0.0
        %1772 = vmatpush2.msra.mxu0 0.0
        %1773 = vmatprep.subr.mxu0 0.0
        %1774 = vmatpush2.msra.mxu0 0.0
        %1775 = vmatprep.subr.mxu0 0.0
        %1776 = vmatpush2.msra.mxu0 0.0
        %1777 = vmatprep.subr.mxu0 0.0
        %1778 = vmatpush2.msra.mxu0 0.0
        %1779 = vmatprep.subr.mxu0 0.0
        %1780 = vmatpush2.msra.mxu0 0.0
        %1781 = vmatprep.subr.mxu0 0.0
        %1782 = vmatpush2.msra.mxu0 0.0
        %1783 = vmatprep.subr.mxu0 0.0
        %1784 = vmatpush2.msra.mxu0 0.0
        %1785 = vmatprep.subr.mxu0 0.0
        %1786 = vmatpush2.msra.mxu0 0.0
        %1787 = vmatprep.subr.mxu0 0.0
        %1788 = vmatpush2.msra.mxu0 0.0
        %1789 = vmatprep.subr.mxu0 0.0
        %1790 = vmatpush2.msra.mxu0 0.0
        %1791 = vmatprep.subr.mxu0 0.0
        %1792 = vmatpush2.msra.mxu0 0.0
        %1793 = vmatprep.subr.mxu0 0.0
        %1794 = vmatpush2.msra.mxu0 0.0
        %1795 = vmatprep.subr.mxu0 0.0
        %1796 = vmatpush2.msra.mxu0 0.0
        %1797 = vmatprep.subr.mxu0 0.0
        %1798 = vmatpush2.msra.mxu0 0.0
        %1799 = vmatprep.subr.mxu0 0.0
        %1800 = vmatpush2.msra.mxu0 0.0
        %1801 = vmatprep.mubr.f32.mxu0 0.0
        %1802 = vmatmul.mubr.f32.gmra.mxu0 %v593
        %v1803 = vpop.f32.mrf.mxu0
        %v1804 = vadd.f32 %v1662, %v1803
        %v1805 = vpop.f32.mrf.mxu0
        %1806 = vdwg.mxu0
        %v1807 = vadd.f32 %v1598, %v1733
        %v1808 = vxor.u32 %v1807, 2147483648
        %v1809 = vmul.f32 %v1808, 1.442695
        %v1810 = vpow.pop %v1809
        %v1811 = vadd.f32 %v1810, 1.0
        %v1812 = vrcp.pop %v1811
        %v1813 = vmul.f32 1.0, %v1812
        %v1814 = vadd.f32 %v1599, %v1735
        %v1815 = vxor.u32 %v1814, 2147483648
        %v1816 = vmul.f32 %v1815, 1.442695
        %v1817 = vpow.pop %v1816
        %v1818 = vadd.f32 %v1817, 1.0
        %v1819 = vrcp.pop %v1818
        %v1820 = vmul.f32 1.0, %v1819
        %v1821 = vmul.f32 %v1813, %v1804
        %v1822 = vadd.f32 %v1600, %v1821
        %v1823 = vtanh.pop %v1822
        %v1824 = vsub.f32 1.0, %v1820
        %v1825 = vmul.f32 %v1824, %v1823
        %v1826 = vmul.f32 %v1820, %v593
        %v1827 = vadd.f32 %v1825, %v1826
        %v1828 = vld [vmem:[%s13] sm:$0xff]
        %v1829 = vld [vmem:[%s13 + $0x8] sm:$0xff]
        %v1830 = vld [vmem:[%s13 + $0x10] sm:$0xff]
        %v1831 = vld [vmem:[%s13 + $0x18] sm:$0xff]
        %v1832 = vld [vmem:[%s13 + $0x20] sm:$0xff]
        %v1833 = vld [vmem:[%s13 + $0x28] sm:$0xff]
        %v1834 = vld [vmem:[%s13 + $0x30] sm:$0xff]
        %v1835 = vld [vmem:[%s13 + $0x38] sm:$0xff]
        %v1836 = vld [vmem:[%s13 + $0x40] sm:$0xff]
        %v1837 = vld [vmem:[%s13 + $0x48] sm:$0xff]
        %v1838 = vld [vmem:[%s13 + $0x50] sm:$0xff]
        %v1839 = vld [vmem:[%s13 + $0x58] sm:$0xff]
        %v1840 = vld [vmem:[%s13 + $0x60] sm:$0xff]
        %v1841 = vld [vmem:[%s13 + $0x68] sm:$0xff]
        %v1842 = vld [vmem:[%s13 + $0x70] sm:$0xff]
        %v1843 = vld [vmem:[%s13 + $0x78] sm:$0xff]
        %v1844 = vld [vmem:[#allocation13] sm:$0xff]
        %v1845 = vld [vmem:[#allocation13 + $0x8] sm:$0xff]
        %v1846 = vld [vmem:[#allocation13 + $0x10] sm:$0xff]
        %v1847 = vld [vmem:[#allocation13 + $0x18] sm:$0xff]
        %v1848 = vld [vmem:[#allocation13 + $0x20] sm:$0xff]
        %v1849 = vld [vmem:[#allocation13 + $0x28] sm:$0xff]
        %v1850 = vld [vmem:[#allocation13 + $0x30] sm:$0xff]
        %v1851 = vld [vmem:[#allocation13 + $0x38] sm:$0xff]
        %v1852 = vld [vmem:[#allocation13 + $0x40] sm:$0xff]
        %v1853 = vld [vmem:[#allocation13 + $0x48] sm:$0xff]
        %v1854 = vld [vmem:[#allocation13 + $0x50] sm:$0xff]
        %v1855 = vld [vmem:[#allocation13 + $0x58] sm:$0xff]
        %v1856 = vld [vmem:[#allocation13 + $0x60] sm:$0xff]
        %v1857 = vld [vmem:[#allocation13 + $0x68] sm:$0xff]
        %v1858 = vld [vmem:[#allocation13 + $0x70] sm:$0xff]
        %v1859 = vld [vmem:[#allocation13 + $0x78] sm:$0xff]
        %1860 = vmatprep.subr.mxu0 0.0
        %1861 = vmatpush1.msra.mxu0 %v1859
        %1862 = vmatprep.subr.mxu0 0.0
        %1863 = vmatpush1.msra.mxu0 %v1858
        %1864 = vmatprep.subr.mxu0 0.0
        %1865 = vmatpush1.msra.mxu0 %v1857
        %1866 = vmatprep.subr.mxu0 0.0
        %1867 = vmatpush1.msra.mxu0 %v1856
        %1868 = vmatprep.subr.mxu0 0.0
        %1869 = vmatpush1.msra.mxu0 %v1855
        %1870 = vmatprep.subr.mxu0 0.0
        %1871 = vmatpush1.msra.mxu0 %v1854
        %1872 = vmatprep.subr.mxu0 0.0
        %1873 = vmatpush1.msra.mxu0 %v1853
        %1874 = vmatprep.subr.mxu0 0.0
        %1875 = vmatpush1.msra.mxu0 %v1852
        %1876 = vmatprep.subr.mxu0 0.0
        %1877 = vmatpush1.msra.mxu0 %v1851
        %1878 = vmatprep.subr.mxu0 0.0
        %1879 = vmatpush1.msra.mxu0 %v1850
        %1880 = vmatprep.subr.mxu0 0.0
        %1881 = vmatpush1.msra.mxu0 %v1849
        %1882 = vmatprep.subr.mxu0 0.0
        %1883 = vmatpush1.msra.mxu0 %v1848
        %1884 = vmatprep.subr.mxu0 0.0
        %1885 = vmatpush1.msra.mxu0 %v1847
        %1886 = vmatprep.subr.mxu0 0.0
        %1887 = vmatpush1.msra.mxu0 %v1846
        %1888 = vmatprep.subr.mxu0 0.0
        %1889 = vmatpush1.msra.mxu0 %v1845
        %1890 = vmatprep.subr.mxu0 0.0
        %1891 = vmatpush1.msra.mxu0 %v1844
        %1892 = vmatprep.subr.mxu0 0.0
        %1893 = vmatpush2.msra.mxu0 0.0
        %1894 = vmatprep.subr.mxu0 0.0
        %1895 = vmatpush2.msra.mxu0 0.0
        %1896 = vmatprep.subr.mxu0 0.0
        %1897 = vmatpush2.msra.mxu0 0.0
        %1898 = vmatprep.subr.mxu0 0.0
        %1899 = vmatpush2.msra.mxu0 0.0
        %1900 = vmatprep.subr.mxu0 0.0
        %1901 = vmatpush2.msra.mxu0 0.0
        %1902 = vmatprep.subr.mxu0 0.0
        %1903 = vmatpush2.msra.mxu0 0.0
        %1904 = vmatprep.subr.mxu0 0.0
        %1905 = vmatpush2.msra.mxu0 0.0
        %1906 = vmatprep.subr.mxu0 0.0
        %1907 = vmatpush2.msra.mxu0 0.0
        %1908 = vmatprep.subr.mxu0 0.0
        %1909 = vmatpush2.msra.mxu0 0.0
        %1910 = vmatprep.subr.mxu0 0.0
        %1911 = vmatpush2.msra.mxu0 0.0
        %1912 = vmatprep.subr.mxu0 0.0
        %1913 = vmatpush2.msra.mxu0 0.0
        %1914 = vmatprep.subr.mxu0 0.0
        %1915 = vmatpush2.msra.mxu0 0.0
        %1916 = vmatprep.subr.mxu0 0.0
        %1917 = vmatpush2.msra.mxu0 0.0
        %1918 = vmatprep.subr.mxu0 0.0
        %1919 = vmatpush2.msra.mxu0 0.0
        %1920 = vmatprep.subr.mxu0 0.0
        %1921 = vmatpush2.msra.mxu0 0.0
        %1922 = vmatprep.subr.mxu0 0.0
        %1923 = vmatpush2.msra.mxu0 0.0
        %1924 = vmatprep.mubr.f32.mxu0 0.0
        %1925 = vmatmul.mubr.f32.gmra.mxu0 %v1297
        %v1926 = vpop.f32.mrf.mxu0
        %v1927 = vadd.f32 0.0, %v1926
        %v1928 = vpop.f32.mrf.mxu0
        %1929 = vdwg.mxu0
        %1930 = vmatprep.subr.mxu0 0.0
        %1931 = vmatpush1.msra.mxu0 %v1843
        %1932 = vmatprep.subr.mxu0 0.0
        %1933 = vmatpush1.msra.mxu0 %v1842
        %1934 = vmatprep.subr.mxu0 0.0
        %1935 = vmatpush1.msra.mxu0 %v1841
        %1936 = vmatprep.subr.mxu0 0.0
        %1937 = vmatpush1.msra.mxu0 %v1840
        %1938 = vmatprep.subr.mxu0 0.0
        %1939 = vmatpush1.msra.mxu0 %v1839
        %1940 = vmatprep.subr.mxu0 0.0
        %1941 = vmatpush1.msra.mxu0 %v1838
        %1942 = vmatprep.subr.mxu0 0.0
        %1943 = vmatpush1.msra.mxu0 %v1837
        %1944 = vmatprep.subr.mxu0 0.0
        %1945 = vmatpush1.msra.mxu0 %v1836
        %1946 = vmatprep.subr.mxu0 0.0
        %1947 = vmatpush1.msra.mxu0 %v1835
        %1948 = vmatprep.subr.mxu0 0.0
        %1949 = vmatpush1.msra.mxu0 %v1834
        %1950 = vmatprep.subr.mxu0 0.0
        %1951 = vmatpush1.msra.mxu0 %v1833
        %1952 = vmatprep.subr.mxu0 0.0
        %1953 = vmatpush1.msra.mxu0 %v1832
        %1954 = vmatprep.subr.mxu0 0.0
        %1955 = vmatpush1.msra.mxu0 %v1831
        %1956 = vmatprep.subr.mxu0 0.0
        %1957 = vmatpush1.msra.mxu0 %v1830
        %1958 = vmatprep.subr.mxu0 0.0
        %1959 = vmatpush1.msra.mxu0 %v1829
        %1960 = vmatprep.subr.mxu0 0.0
        %1961 = vmatpush1.msra.mxu0 %v1828
        %1962 = vmatprep.subr.mxu0 0.0
        %1963 = vmatpush2.msra.mxu0 0.0
        %1964 = vmatprep.subr.mxu0 0.0
        %1965 = vmatpush2.msra.mxu0 0.0
        %1966 = vmatprep.subr.mxu0 0.0
        %1967 = vmatpush2.msra.mxu0 0.0
        %1968 = vmatprep.subr.mxu0 0.0
        %1969 = vmatpush2.msra.mxu0 0.0
        %1970 = vmatprep.subr.mxu0 0.0
        %1971 = vmatpush2.msra.mxu0 0.0
        %1972 = vmatprep.subr.mxu0 0.0
        %1973 = vmatpush2.msra.mxu0 0.0
        %1974 = vmatprep.subr.mxu0 0.0
        %1975 = vmatpush2.msra.mxu0 0.0
        %1976 = vmatprep.subr.mxu0 0.0
        %1977 = vmatpush2.msra.mxu0 0.0
        %1978 = vmatprep.subr.mxu0 0.0
        %1979 = vmatpush2.msra.mxu0 0.0
        %1980 = vmatprep.subr.mxu0 0.0
        %1981 = vmatpush2.msra.mxu0 0.0
        %1982 = vmatprep.subr.mxu0 0.0
        %1983 = vmatpush2.msra.mxu0 0.0
        %1984 = vmatprep.subr.mxu0 0.0
        %1985 = vmatpush2.msra.mxu0 0.0
        %1986 = vmatprep.subr.mxu0 0.0
        %1987 = vmatpush2.msra.mxu0 0.0
        %1988 = vmatprep.subr.mxu0 0.0
        %1989 = vmatpush2.msra.mxu0 0.0
        %1990 = vmatprep.subr.mxu0 0.0
        %1991 = vmatpush2.msra.mxu0 0.0
        %1992 = vmatprep.subr.mxu0 0.0
        %1993 = vmatpush2.msra.mxu0 0.0
        %1994 = vmatprep.mubr.f32.mxu0 0.0
        %1995 = vmatmul.mubr.f32.gmra.mxu0 %v1827
        %v1996 = vpop.f32.mrf.mxu0
        %v1997 = vadd.f32 %v1927, %v1996
        %v1998 = vpop.f32.mrf.mxu0
        %1999 = vdwg.mxu0
        %v2000 = vld [vmem:[#allocation15] sm:$0x1]
        %v2002 = vlaneseq
        %v2003 = vshrl.u32 %v2002, 7
        %v2004 = vsub.s32 0, %v2003
        %v2005 = vrot.slane %v2000, %v2004
        %v2007 = vadd.f32 %v1997, %v2005
        %2008 = vst [vmem:[%s518] sm:$0xff] %v2007
        %2009 = vst [vmem:[#allocation2] sm:$0xff] %v1827
        %2010 = vmax.xlane.f32.xlu0 %v2007
        %v2011 = vpop.xlane.xlu0 %2010
        %vm2012 = vcmp.eq.f32.partialorder %v2007, %v2011
        %v2013 = vsel %vm2012, %v842, 128
        %v2014 = vand.u32 %v2013, 65535
        %v2015 = vshra.s32 %v2013, 16
        %v2016 = vcvt.s32.f32 %v2014
        %v2017 = vcvt.s32.f32 %v2015
        %2018 = vmin.xlane.f32.xlu0 %v2017
        %v2019 = vpop.xlane.xlu0 %2018
        %vm2020 = vcmp.eq.f32.partialorder %v2017, %v2019
        %v2021 = vsel %vm2020, %v2016, inf
        %2022 = vmin.xlane.f32.xlu0 %v2021
        %v2023 = vpop.xlane.xlu0 %2022
        %v2024 = vcvt.f32.s32 %v2023
        %v2025 = vcvt.f32.s32 %v2019
        %v2026 = vshll.u32 %v2025, 16
        %v2027 = vadd.s32 %v2026, %v2024
        %vm2028 = vcmask 7168
        %2029 = vst.msk [vmem:[#allocation4] sm:$0xff] %vm2028, %v2027
        %p2030 = scmp.lt.s32.totalorder %s36, 6
        %s2031 = scalar_select %p2030, %s36, 6
        %s2032 = smul.addr %s2031, 8
        %s2033 = scalar_lea.vmem %s16, %s2032
        // Predicated region
        $region101: #{attn_seq2seq_forward.3} parent=75 // pred_check
          %p2034 = pneg %p348
        $region102: #{attn_seq2seq_forward.3} parent=75 // pred_check_branch
          %2036 = sbr.rel (%p2034) target = $region104
        $region103: #{attn_seq2seq_forward.3} parent=75 // pred_region
          _
        $region104: #{attn_seq2seq_forward.3} parent=75 // pred_fallthru
          _
      $region76: #{attn_seq2seq_forward.3} parent=5 // pred_fallthru
        _
      %p2037 = scmp.le.s32.totalorder 2, %s31
      // Predicated region
      $region105: #{attn_seq2seq_forward.3} parent=5 // pred_check
        %p2038 = pneg %p2037
      $region106: #{attn_seq2seq_forward.3} parent=5 // pred_check_branch
        %2040 = sbr.rel (%p2038) target = $region108
      $region107: #{attn_seq2seq_forward.3} parent=5 // pred_region
        %s2041 = ssub.s32 %s31, 2
        // Predicated region
        $region109: #{attn_seq2seq_forward.3} parent=107 // pred_check
          %p2042 = pneg %p354
        $region110: #{attn_seq2seq_forward.3} parent=107 // pred_check_branch
          %2044 = sbr.rel (%p2042) target = $region112
        $region111: #{attn_seq2seq_forward.3} parent=107 // pred_region
          %p2045 = scmp.lt.s32.totalorder %s37, 6
          %s2046 = scalar_select %p2045, %s37, 6
          %s2047 = smul.addr %s2046, 8
          %s2048 = scalar_lea.vmem %s16, %s2047
        $region112: #{attn_seq2seq_forward.3} parent=107 // pred_fallthru
          _
      $region108: #{attn_seq2seq_forward.3} parent=5 // pred_fallthru
        _
    $region6: #{attn_seq2seq_forward.3} parent=1 // loop_footer
      %s35 = sadd.s32 1, %s31
    $region7: #{attn_seq2seq_forward.3} parent=1 // loop_footer_branch
      %30 = sbr.rel target = $region3
    $region8: #{attn_seq2seq_forward.3} parent=1 // loop_exit
      _
    %2049 = vsyncpa [#allocation9], 1
    %s2050 = scalar_lea.sflag [#allocation9], 1
    %2051 = vsyncpa %s2050, 1
    %2052 = vsyncpa [#allocation11], 1
    %2053 = vsyncpa [#allocation14], 1

</llo_original>
